<compile_context>
chip_gen: v5e
topology: v5e:2x2
jax: 0.10.0
libtpu: 0.0.40
codegen_flags: <defaults>
</compile_context>

<pallas_src>
import numpy as np
import jax
import jax.numpy as jnp
from jax.experimental import pallas as pl
from jax.experimental.pallas import tpu as pltpu


# ----------------------------------------------------------------------------
# In-kernel helpers
# ----------------------------------------------------------------------------
def _bdot(a, b):
    # bf16 x bf16 matmul on the MXU with f32 accumulation.
    return jnp.dot(a.astype(jnp.bfloat16), b.astype(jnp.bfloat16),
                   preferred_element_type=jnp.float32)


def _ln_lrelu(a):
    # LayerNorm over the whole per-sample block (i.e. over C,H,W), eps=1e-5, no affine,
    # followed by LeakyReLU(0.2).  One-pass statistics, kept in f32.
    mean = jnp.mean(a, keepdims=True)
    var = jnp.maximum(jnp.mean(a * a, keepdims=True) - mean * mean, 0.0)
    xn = (a - mean) * jax.lax.rsqrt(var + 1e-5)
    return jnp.maximum(xn, 0.2 * xn)            # LeakyReLU(0.2)


# ----------------------------------------------------------------------------
# Fully fused forward kernel (one grid step = one sample)
# ----------------------------------------------------------------------------
def _make_fused_kernel(c, h1, w1):
    h2, w2 = (h1 - 1) // 2 + 1, (w1 - 1) // 2 + 1
    h3, w3 = (h2 - 1) // 2 + 1, (w2 - 1) // 2 + 1
    cm = max(c // 4, 1)

    def rb(x, m1, m2cat, m3, h, w):
        # ResidualBlock: LN+lrelu -> 1x1 -> LN+lrelu -> 3x3(reflect) -> LN+lrelu -> 1x1 -> +x
        wcm = w * cm
        t = _ln_lrelu(x)
        t = _ln_lrelu(_bdot(t, m1))                      # 1x1 conv  C -> C/4
        q = _bdot(t, m2cat)                              # all 3 row taps in ONE matmul
        q0 = q[:, 0 * wcm:1 * wcm]                       # tap dy=-1 (per input row)
        q1 = q[:, 1 * wcm:2 * wcm]                       # tap dy= 0
        q2 = q[:, 2 * wcm:3 * wcm]                       # tap dy=+1
        # reflect row shifts via sublane concats (no MXU pass):
        up = jnp.concatenate([q0[1:2], q0[:h - 1]], axis=0)       # row y <- q0[reflect(y-1)]
        dn = jnp.concatenate([q2[1:h], q2[h - 2:h - 1]], axis=0)  # row y <- q2[reflect(y+1)]
        t = _ln_lrelu(up + q1 + dn)
        return _bdot(t, m3) + x                          # 1x1 conv C/4 -> C, + identity

    def pool(x, sel_ref, a_ref, h):
        # MaxPool2d(kernel=3, stride=2, padding=1): vertical 3-max with sublane shifts
        # (clamped taps are equivalent to -inf padding for a max), even-row subsample via a
        # single 0/1 selection matmul, horizontal 3-max via 0/1 column-selection matmuls.
        xm1 = jnp.concatenate([x[0:1], x[:h - 1]], axis=0)    # row y-1 (clamped)
        xp1 = jnp.concatenate([x[1:h], x[h - 1:h]], axis=0)   # row y+1 (clamped)
        rmax = jnp.maximum(jnp.maximum(x, xm1), xp1)
        rsel = _bdot(sel_ref[...], rmax)                      # keep rows 0,2,4,...
        return jnp.maximum(jnp.maximum(_bdot(rsel, a_ref[0]), _bdot(rsel, a_ref[1])),
                           _bdot(rsel, a_ref[2]))

    def kernel(x_ref,
               m1f, m2f, m3f,          # full-res RBs    [first, trunk1, trunk2, last]
               m1h, m2h, m3h,          # half-res RBs    [sm1, skip, sm3]
               m1q, m2q, m3q,          # quarter-res RBs [sm2a, sm2b]
               sel1, a1, sel2, a2,     # maxpool selection matrices
               u2h, u2b, u1h, u1b,     # bicubic interpolation matrices
               k1, k2,                 # softmax4 1x1 convs
               o_ref):
        x0 = x_ref[...]
        x = rb(x0, m1f[0], m2f[0], m3f[0], h1, w1)                       # first_residual_blocks
        tr = rb(x, m1f[1], m2f[1], m3f[1], h1, w1)
        tr = rb(tr, m1f[2], m2f[2], m3f[2], h1, w1)                      # trunk_branches

        p1 = pool(x, sel1, a1, h1)                                       # mpool1
        s1 = rb(p1, m1h[0], m2h[0], m3h[0], h2, w2)                      # softmax1_blocks
        sk = rb(s1, m1h[1], m2h[1], m3h[1], h2, w2)                      # skip1_connection

        p2 = pool(s1, sel2, a2, h2)                                      # mpool2
        s2 = rb(p2, m1q[0], m2q[0], m3q[0], h3, w3)
        s2 = rb(s2, m1q[1], m2q[1], m3q[1], h3, w3)                      # softmax2_blocks

        # bicubic upsample quarter->half (width-first) + softmax1 + skip
        out = _bdot(u2h[...], _bdot(s2, u2b[...])) + s1 + sk
        s3 = rb(out, m1h[2], m2h[2], m3h[2], h2, w2)                     # softmax3_blocks

        # bicubic upsample half->full (width-first) + trunk
        up1 = _bdot(u1h[...], _bdot(s3, u1b[...])) + tr

        # softmax4 tail fused with the gate:  (1 + sigmoid(f(up1))) * trunk = tr + tr*sigmoid(f)
        g = _ln_lrelu(up1)
        g = _ln_lrelu(_bdot(g, k1[...]))
        g = _bdot(g, k2[...])
        sig = 1.0 / (1.0 + jnp.exp(-g))
        gated = tr + tr * sig

        o_ref[...] = rb(gated, m1f[3], m2f[3], m3f[3], h1, w1)           # last_blocks

    return kernel


# ----------------------------------------------------------------------------
# pallas_call wrapper: one fused call, batch-gridded, all weights VMEM-resident
# ----------------------------------------------------------------------------
def attention_module_stage2(x_nchw, params):
    n, c, h, w = x_nchw.shape
    x = jnp.transpose(x_nchw, (0, 2, 3, 1)).reshape(n, h, w * c).astype(jnp.float32)
    consts = params['consts']
    kernel = _make_fused_kernel(c, h, w)

    in_specs = [pl.BlockSpec((None, h, w * c), lambda i: (i, 0, 0))]
    for a in consts:    # small weight matrices, whole-array resident
        in_specs.append(pl.BlockSpec(tuple(a.shape), lambda i, nd=a.ndim: (0,) * nd))

    out = pl.pallas_call(
        kernel,
        out_shape=jax.ShapeDtypeStruct((n, h, w * c), jnp.float32),
        grid=(n,),
        in_specs=in_specs,
        out_specs=pl.BlockSpec((None, h, w * c), lambda i: (i, 0, 0)),
        compiler_params=pltpu.CompilerParams(dimension_semantics=("parallel",)),
    )(x, *consts)

    return jnp.transpose(out.reshape(n, h, w, c), (0, 3, 1, 2))


# ----------------------------------------------------------------------------
# Host-side (numpy) weight expansion into the row-layout matrices used by the kernel
# ----------------------------------------------------------------------------
def _reflect(i, n):
    if i < 0:
        return -i
    if i >= n:
        return 2 * (n - 1) - i
    return i


def _kron_eye(w, width):
    # 1x1 conv (Cin->Cout) acting on a (H, W*Cin) row layout: x @ kron(I_W, w)
    return np.kron(np.eye(width, dtype=np.float32),
                   np.asarray(w, dtype=np.float32)).astype(np.float32)


def _conv3x3_cat(w2, width):
    # w2: (9*Cin, Cout), rows ordered [(ky,kx) outer, ci inner]
    # (real PyTorch weights (Cout,Cin,3,3) would map via w.transpose(2,3,1,0).reshape(9*Cin,Cout))
    # Returns a single (W*Cin, 3*W*Cout) matrix: the three row taps concatenated along columns,
    # with kx taps + reflect column padding folded in (one MXU push per 3x3 conv).
    cout = w2.shape[1]
    cin = w2.shape[0] // 9
    w4 = np.asarray(w2, dtype=np.float32).reshape(3, 3, cin, cout)
    m = np.zeros((width * cin, 3 * width * cout), dtype=np.float32)
    for ky in range(3):
        off = ky * width * cout
        for xo in range(width):
            for kx in range(3):
                xi = _reflect(xo + kx - 1, width)
                m[xi * cin:(xi + 1) * cin, off + xo * cout:off + (xo + 1) * cout] += w4[ky, kx]
    return m


def _maxpool_mats(height, width, c):
    # sel: (Ho, H) 0/1 matrix keeping even rows; a: (3, W*C, Wo*C) column-selection matrices.
    ho = (height - 1) // 2 + 1
    wo = (width - 1) // 2 + 1
    sel = np.zeros((ho, height), dtype=np.float32)
    for yo in range(ho):
        sel[yo, 2 * yo] = 1.0
    a = np.zeros((3, width * c, wo * c), dtype=np.float32)
    eye_c = np.eye(c, dtype=np.float32)
    for k in range(3):
        for xo in range(wo):
            xi = min(max(2 * xo + k - 1, 0), width - 1)
            a[k, xi * c:(xi + 1) * c, xo * c:(xo + 1) * c] = eye_c
    return sel, a


def _cubic_coeffs(t, A=-0.75):
    def c1(x):
        return ((A + 2.0) * x - (A + 3.0)) * x * x + 1.0

    def c2(x):
        return ((A * x - 5.0 * A) * x + 8.0 * A) * x - 4.0 * A

    return [c2(t + 1.0), c1(t), c1(1.0 - t), c2(2.0 - t)]


def _bicubic_matrix(out_size, in_size):
    # Matches torch.nn.functional.interpolate(mode='bicubic', align_corners=False)
    if out_size == in_size:
        return np.eye(out_size, dtype=np.float32)
    mat = np.zeros((out_size, in_size), dtype=np.float32)
    scale = in_size / out_size
    for i in range(out_size):
        src = (i + 0.5) * scale - 0.5
        x0 = int(np.floor(src))
        t = float(src - x0)
        coeffs = _cubic_coeffs(t)
        for k in range(4):
            idx = min(max(x0 - 1 + k, 0), in_size - 1)
            mat[i, idx] += coeffs[k]
    return mat


def _upsample_mats(h_in, w_in, h_out, w_out, c):
    uh = _bicubic_matrix(h_out, h_in).astype(np.float32)                        # (Hout, Hin)
    uw = _bicubic_matrix(w_out, w_in).astype(np.float32)                        # (Wout, Win)
    b = np.kron(uw.T.copy(), np.eye(c, dtype=np.float32)).astype(np.float32)    # (Win*C, Wout*C)
    return uh, b


def _prep_rb_mats(rbraw, width):
    return (_kron_eye(rbraw['w1'], width),
            _conv3x3_cat(rbraw['w2'], width),
            _kron_eye(rbraw['w3'], width))


def prepare_params(raw, c, h, w):
    h1, w1 = h, w
    h2, w2 = (h1 - 1) // 2 + 1, (w1 - 1) // 2 + 1
    h3, w3 = (h2 - 1) // 2 + 1, (w2 - 1) // 2 + 1

    full = [_prep_rb_mats(raw[k], w1) for k in ('first', 'trunk1', 'trunk2', 'last')]
    half = [_prep_rb_mats(raw[k], w2) for k in ('sm1', 'skip', 'sm3')]
    quar = [_prep_rb_mats(raw[k], w3) for k in ('sm2a', 'sm2b')]

    sel1, a1 = _maxpool_mats(h1, w1, c)
    sel2, a2 = _maxpool_mats(h2, w2, c)
    u2h, u2b = _upsample_mats(h3, w3, h2, w2, c)     # quarter -> half
    u1h, u1b = _upsample_mats(h2, w2, h1, w1, c)     # half -> full

    consts = [
        np.stack([m[0] for m in full]), np.stack([m[1] for m in full]), np.stack([m[2] for m in full]),
        np.stack([m[0] for m in half]), np.stack([m[1] for m in half]), np.stack([m[2] for m in half]),
        np.stack([m[0] for m in quar]), np.stack([m[1] for m in quar]), np.stack([m[2] for m in quar]),
        sel1, a1, sel2, a2,
        u2h, u2b, u1h, u1b,
        _kron_eye(raw['att_w1'], w1), _kron_eye(raw['att_w2'], w1),
    ]
    # Weights / selection / interpolation matrices are stored bf16 (MXU-native); accumulation
    # and all LayerNorm / elementwise math stay f32 inside the kernel.
    return {'consts': [jnp.asarray(m, dtype=jnp.bfloat16) for m in consts]}


# ----------------------------------------------------------------------------
# Deterministic synthetic parameters matching the module's conv shapes
# ----------------------------------------------------------------------------
def init_rb_params(key, c):
    cm = max(c // 4, 1)
    k1, k2, k3 = jax.random.split(key, 3)
    return {
        'w1': jax.random.normal(k1, (c, cm), jnp.float32) * 0.1,        # conv1 1x1: C -> C/4
        'w2': jax.random.normal(k2, (9 * cm, cm), jnp.float32) * 0.1,   # conv2 3x3: C/4 -> C/4
        'w3': jax.random.normal(k3, (cm, c), jnp.float32) * 0.1,        # conv3 1x1: C/4 -> C
    }


if __name__ == "__main__":
    key = jax.random.PRNGKey(0)
    N, C, H, W = 2, 8, 16, 16   # in_channels == out_channels == 8, spatial 16 -> 8 -> 4

    kx, kp = jax.random.split(key)
    x = jax.random.normal(kx, (N, C, H, W), jnp.float32)

    keys = jax.random.split(kp, 11)
    raw = {
        'first': init_rb_params(keys[0], C),
        'trunk1': init_rb_params(keys[1], C),
        'trunk2': init_rb_params(keys[2], C),
        'sm1': init_rb_params(keys[3], C),
        'skip': init_rb_params(keys[4], C),
        'sm2a': init_rb_params(keys[5], C),
        'sm2b': init_rb_params(keys[6], C),
        'sm3': init_rb_params(keys[7], C),
        'last': init_rb_params(keys[8], C),
        'att_w1': jax.random.normal(keys[9], (C, C), jnp.float32) * 0.1,
        'att_w2': jax.random.normal(keys[10], (C, C), jnp.float32) * 0.1,
    }

    params = prepare_params(raw, C, H, W)

    fwd = jax.jit(attention_module_stage2)
    out = jax.block_until_ready(fwd(x, params))

    assert out.shape == (N, C, H, W), out.shape
    assert bool(jnp.all(jnp.isfinite(out)))
    print("KERNEL_OK")
</pallas_src>

<mosaic_0001>
module attributes {stable_mosaic.version = 11 : i64} {
  func.func @kernel(%arg0: i32, %arg1: memref<1x16x128xf32, #tpu.memory_space<vmem>>, %arg2: memref<4x128x32xbf16, #tpu.memory_space<vmem>>, %arg3: memref<4x32x96xbf16, #tpu.memory_space<vmem>>, %arg4: memref<4x32x128xbf16, #tpu.memory_space<vmem>>, %arg5: memref<3x64x16xbf16, #tpu.memory_space<vmem>>, %arg6: memref<3x16x48xbf16, #tpu.memory_space<vmem>>, %arg7: memref<3x16x64xbf16, #tpu.memory_space<vmem>>, %arg8: memref<2x32x8xbf16, #tpu.memory_space<vmem>>, %arg9: memref<2x8x24xbf16, #tpu.memory_space<vmem>>, %arg10: memref<2x8x32xbf16, #tpu.memory_space<vmem>>, %arg11: memref<8x16xbf16, #tpu.memory_space<vmem>>, %arg12: memref<3x128x64xbf16, #tpu.memory_space<vmem>>, %arg13: memref<4x8xbf16, #tpu.memory_space<vmem>>, %arg14: memref<3x64x32xbf16, #tpu.memory_space<vmem>>, %arg15: memref<8x4xbf16, #tpu.memory_space<vmem>>, %arg16: memref<32x64xbf16, #tpu.memory_space<vmem>>, %arg17: memref<16x8xbf16, #tpu.memory_space<vmem>>, %arg18: memref<64x128xbf16, #tpu.memory_space<vmem>>, %arg19: memref<128x128xbf16, #tpu.memory_space<vmem>>, %arg20: memref<128x128xbf16, #tpu.memory_space<vmem>>, %arg21: memref<1x16x128xf32, #tpu.memory_space<vmem>>) attributes {dimension_semantics = [#tpu.dimension_semantics<parallel>], iteration_bounds = array<i64: 2>, scalar_prefetch = 0 : i64, scratch_operands = 0 : i64, tpu.core_type = #tpu.core_type<tc>, window_params = [{transform_indices = @transform_0, window_bounds = array<i64: 1, 16, 128>}, {pipeline_mode = #tpu.pipeline_mode<synchronous>, transform_indices = @transform_1, window_bounds = array<i64: 4, 128, 32>}, {pipeline_mode = #tpu.pipeline_mode<synchronous>, transform_indices = @transform_2, window_bounds = array<i64: 4, 32, 96>}, {pipeline_mode = #tpu.pipeline_mode<synchronous>, transform_indices = @transform_3, window_bounds = array<i64: 4, 32, 128>}, {pipeline_mode = #tpu.pipeline_mode<synchronous>, transform_indices = @transform_4, window_bounds = array<i64: 3, 64, 16>}, {pipeline_mode = #tpu.pipeline_mode<synchronous>, transform_indices = @transform_5, window_bounds = array<i64: 3, 16, 48>}, {pipeline_mode = #tpu.pipeline_mode<synchronous>, transform_indices = @transform_6, window_bounds = array<i64: 3, 16, 64>}, {pipeline_mode = #tpu.pipeline_mode<synchronous>, transform_indices = @transform_7, window_bounds = array<i64: 2, 32, 8>}, {pipeline_mode = #tpu.pipeline_mode<synchronous>, transform_indices = @transform_8, window_bounds = array<i64: 2, 8, 24>}, {pipeline_mode = #tpu.pipeline_mode<synchronous>, transform_indices = @transform_9, window_bounds = array<i64: 2, 8, 32>}, {pipeline_mode = #tpu.pipeline_mode<synchronous>, transform_indices = @transform_10, window_bounds = array<i64: 8, 16>}, {pipeline_mode = #tpu.pipeline_mode<synchronous>, transform_indices = @transform_11, window_bounds = array<i64: 3, 128, 64>}, {pipeline_mode = #tpu.pipeline_mode<synchronous>, transform_indices = @transform_12, window_bounds = array<i64: 4, 8>}, {pipeline_mode = #tpu.pipeline_mode<synchronous>, transform_indices = @transform_13, window_bounds = array<i64: 3, 64, 32>}, {pipeline_mode = #tpu.pipeline_mode<synchronous>, transform_indices = @transform_14, window_bounds = array<i64: 8, 4>}, {pipeline_mode = #tpu.pipeline_mode<synchronous>, transform_indices = @transform_15, window_bounds = array<i64: 32, 64>}, {pipeline_mode = #tpu.pipeline_mode<synchronous>, transform_indices = @transform_16, window_bounds = array<i64: 16, 8>}, {pipeline_mode = #tpu.pipeline_mode<synchronous>, transform_indices = @transform_17, window_bounds = array<i64: 64, 128>}, {pipeline_mode = #tpu.pipeline_mode<synchronous>, transform_indices = @transform_18, window_bounds = array<i64: 128, 128>}, {pipeline_mode = #tpu.pipeline_mode<synchronous>, transform_indices = @transform_19, window_bounds = array<i64: 128, 128>}, {transform_indices = @transform_20, window_bounds = array<i64: 1, 16, 128>}]} {
    %c0 = arith.constant 0 : index
    %c0_0 = arith.constant 0 : index
    %c0_1 = arith.constant 0 : index
    %0 = vector.load %arg1[%c0, %c0_0, %c0_1] : memref<1x16x128xf32, #tpu.memory_space<vmem>>, vector<1x16x128xf32>
    %1 = vector.shape_cast %0 : vector<1x16x128xf32> to vector<16x128xf32>
    %c0_2 = arith.constant 0 : index
    %c0_3 = arith.constant 0 : index
    %c0_4 = arith.constant 0 : index
    %2 = vector.load %arg2[%c0_2, %c0_3, %c0_4] : memref<4x128x32xbf16, #tpu.memory_space<vmem>>, vector<1x128x32xbf16>
    %3 = vector.shape_cast %2 : vector<1x128x32xbf16> to vector<128x32xbf16>
    %c0_5 = arith.constant 0 : index
    %c0_6 = arith.constant 0 : index
    %c0_7 = arith.constant 0 : index
    %4 = vector.load %arg3[%c0_5, %c0_6, %c0_7] : memref<4x32x96xbf16, #tpu.memory_space<vmem>>, vector<1x32x96xbf16>
    %5 = vector.shape_cast %4 : vector<1x32x96xbf16> to vector<32x96xbf16>
    %c0_8 = arith.constant 0 : index
    %c0_9 = arith.constant 0 : index
    %c0_10 = arith.constant 0 : index
    %6 = vector.load %arg4[%c0_8, %c0_9, %c0_10] : memref<4x32x128xbf16, #tpu.memory_space<vmem>>, vector<1x32x128xbf16>
    %7 = vector.shape_cast %6 : vector<1x32x128xbf16> to vector<32x128xbf16>
    %8 = vector.shape_cast %1 : vector<16x128xf32> to vector<1x16x128xf32>
    %cst = arith.constant dense<0.000000e+00> : vector<1xf32>
    %9 = vector.multi_reduction <add>, %8, %cst [1, 2] : vector<1x16x128xf32> to vector<1xf32>
    %10 = vector.shape_cast %9 : vector<1xf32> to vector<1x1x1xf32>
    %11 = vector.extract %10[0, 0, 0] : f32 from vector<1x1x1xf32>
    %12 = vector.broadcast %11 : f32 to vector<1x1xf32>
    %cst_11 = arith.constant 2.048000e+03 : f32
    %13 = vector.broadcast %cst_11 : f32 to vector<1x1xf32>
    %14 = arith.divf %12, %13 : vector<1x1xf32>
    %15 = arith.mulf %1, %1 : vector<16x128xf32>
    %16 = vector.shape_cast %15 : vector<16x128xf32> to vector<1x16x128xf32>
    %cst_12 = arith.constant dense<0.000000e+00> : vector<1xf32>
    %17 = vector.multi_reduction <add>, %16, %cst_12 [1, 2] : vector<1x16x128xf32> to vector<1xf32>
    %18 = vector.shape_cast %17 : vector<1xf32> to vector<1x1x1xf32>
    %19 = vector.extract %18[0, 0, 0] : f32 from vector<1x1x1xf32>
    %20 = vector.broadcast %19 : f32 to vector<1x1xf32>
    %cst_13 = arith.constant 2.048000e+03 : f32
    %21 = vector.broadcast %cst_13 : f32 to vector<1x1xf32>
    %22 = arith.divf %20, %21 : vector<1x1xf32>
    %23 = arith.mulf %14, %14 : vector<1x1xf32>
    %24 = arith.subf %22, %23 : vector<1x1xf32>
    %cst_14 = arith.constant 0.000000e+00 : f32
    %25 = vector.broadcast %cst_14 : f32 to vector<1x1xf32>
    %26 = arith.maximumf %24, %25 : vector<1x1xf32>
    %27 = vector.broadcast %14 : vector<1x1xf32> to vector<16x128xf32>
    %28 = arith.subf %1, %27 : vector<16x128xf32>
    %cst_15 = arith.constant 9.99999974E-6 : f32
    %29 = vector.broadcast %cst_15 : f32 to vector<1x1xf32>
    %30 = arith.addf %26, %29 : vector<1x1xf32>
    %31 = math.rsqrt %30 : vector<1x1xf32>
    %32 = vector.broadcast %31 : vector<1x1xf32> to vector<16x128xf32>
    %33 = arith.mulf %28, %32 : vector<16x128xf32>
    %cst_16 = arith.constant 2.000000e-01 : f32
    %34 = vector.broadcast %cst_16 : f32 to vector<16x128xf32>
    %35 = arith.mulf %34, %33 : vector<16x128xf32>
    %36 = arith.maximumf %33, %35 : vector<16x128xf32>
    %37 = arith.truncf %36 : vector<16x128xf32> to vector<16x128xbf16>
    %cst_17 = arith.constant dense<0.000000e+00> : vector<16x32xf32>
    %38 = tpu.matmul %37, %3, %cst_17 {dimension_numbers = #tpu.dot_dimension_numbers<[1], [0], [0], [1], [0, 0, 1, 1], [], []>} : vector<16x128xbf16>, vector<128x32xbf16>, vector<16x32xf32> -> vector<16x32xf32>
    %39 = vector.shape_cast %38 : vector<16x32xf32> to vector<1x16x32xf32>
    %cst_18 = arith.constant dense<0.000000e+00> : vector<1xf32>
    %40 = vector.multi_reduction <add>, %39, %cst_18 [1, 2] : vector<1x16x32xf32> to vector<1xf32>
    %41 = vector.shape_cast %40 : vector<1xf32> to vector<1x1x1xf32>
    %42 = vector.extract %41[0, 0, 0] : f32 from vector<1x1x1xf32>
    %43 = vector.broadcast %42 : f32 to vector<1x1xf32>
    %cst_19 = arith.constant 5.120000e+02 : f32
    %44 = vector.broadcast %cst_19 : f32 to vector<1x1xf32>
    %45 = arith.divf %43, %44 : vector<1x1xf32>
    %46 = arith.mulf %38, %38 : vector<16x32xf32>
    %47 = vector.shape_cast %46 : vector<16x32xf32> to vector<1x16x32xf32>
    %cst_20 = arith.constant dense<0.000000e+00> : vector<1xf32>
    %48 = vector.multi_reduction <add>, %47, %cst_20 [1, 2] : vector<1x16x32xf32> to vector<1xf32>
    %49 = vector.shape_cast %48 : vector<1xf32> to vector<1x1x1xf32>
    %50 = vector.extract %49[0, 0, 0] : f32 from vector<1x1x1xf32>
    %51 = vector.broadcast %50 : f32 to vector<1x1xf32>
    %cst_21 = arith.constant 5.120000e+02 : f32
    %52 = vector.broadcast %cst_21 : f32 to vector<1x1xf32>
    %53 = arith.divf %51, %52 : vector<1x1xf32>
    %54 = arith.mulf %45, %45 : vector<1x1xf32>
    %55 = arith.subf %53, %54 : vector<1x1xf32>
    %cst_22 = arith.constant 0.000000e+00 : f32
    %56 = vector.broadcast %cst_22 : f32 to vector<1x1xf32>
    %57 = arith.maximumf %55, %56 : vector<1x1xf32>
    %58 = vector.broadcast %45 : vector<1x1xf32> to vector<16x32xf32>
    %59 = arith.subf %38, %58 : vector<16x32xf32>
    %cst_23 = arith.constant 9.99999974E-6 : f32
    %60 = vector.broadcast %cst_23 : f32 to vector<1x1xf32>
    %61 = arith.addf %57, %60 : vector<1x1xf32>
    %62 = math.rsqrt %61 : vector<1x1xf32>
    %63 = vector.broadcast %62 : vector<1x1xf32> to vector<16x32xf32>
    %64 = arith.mulf %59, %63 : vector<16x32xf32>
    %cst_24 = arith.constant 2.000000e-01 : f32
    %65 = vector.broadcast %cst_24 : f32 to vector<16x32xf32>
    %66 = arith.mulf %65, %64 : vector<16x32xf32>
    %67 = arith.maximumf %64, %66 : vector<16x32xf32>
    %68 = arith.truncf %67 : vector<16x32xf32> to vector<16x32xbf16>
    %cst_25 = arith.constant dense<0.000000e+00> : vector<16x96xf32>
    %69 = tpu.matmul %68, %5, %cst_25 {dimension_numbers = #tpu.dot_dimension_numbers<[1], [0], [0], [1], [0, 0, 1, 1], [], []>} : vector<16x32xbf16>, vector<32x96xbf16>, vector<16x96xf32> -> vector<16x96xf32>
    %70 = vector.extract_strided_slice %69 {offsets = [0, 0], sizes = [16, 32], strides = [1, 1]} : vector<16x96xf32> to vector<16x32xf32>
    %71 = vector.extract_strided_slice %69 {offsets = [0, 32], sizes = [16, 32], strides = [1, 1]} : vector<16x96xf32> to vector<16x32xf32>
    %72 = vector.extract_strided_slice %69 {offsets = [0, 64], sizes = [16, 32], strides = [1, 1]} : vector<16x96xf32> to vector<16x32xf32>
    %73 = vector.extract_strided_slice %70 {offsets = [1, 0], sizes = [1, 32], strides = [1, 1]} : vector<16x32xf32> to vector<1x32xf32>
    %74 = vector.extract_strided_slice %70 {offsets = [0, 0], sizes = [15, 32], strides = [1, 1]} : vector<16x32xf32> to vector<15x32xf32>
    %75 = tpu.concatenate %73, %74 in 0 : vector<1x32xf32>, vector<15x32xf32> -> vector<16x32xf32>
    %76 = vector.extract_strided_slice %72 {offsets = [1, 0], sizes = [15, 32], strides = [1, 1]} : vector<16x32xf32> to vector<15x32xf32>
    %77 = vector.extract_strided_slice %72 {offsets = [14, 0], sizes = [1, 32], strides = [1, 1]} : vector<16x32xf32> to vector<1x32xf32>
    %78 = tpu.concatenate %76, %77 in 0 : vector<15x32xf32>, vector<1x32xf32> -> vector<16x32xf32>
    %79 = arith.addf %75, %71 : vector<16x32xf32>
    %80 = arith.addf %79, %78 : vector<16x32xf32>
    %81 = vector.shape_cast %80 : vector<16x32xf32> to vector<1x16x32xf32>
    %cst_26 = arith.constant dense<0.000000e+00> : vector<1xf32>
    %82 = vector.multi_reduction <add>, %81, %cst_26 [1, 2] : vector<1x16x32xf32> to vector<1xf32>
    %83 = vector.shape_cast %82 : vector<1xf32> to vector<1x1x1xf32>
    %84 = vector.extract %83[0, 0, 0] : f32 from vector<1x1x1xf32>
    %85 = vector.broadcast %84 : f32 to vector<1x1xf32>
    %cst_27 = arith.constant 5.120000e+02 : f32
    %86 = vector.broadcast %cst_27 : f32 to vector<1x1xf32>
    %87 = arith.divf %85, %86 : vector<1x1xf32>
    %88 = arith.mulf %80, %80 : vector<16x32xf32>
    %89 = vector.shape_cast %88 : vector<16x32xf32> to vector<1x16x32xf32>
    %cst_28 = arith.constant dense<0.000000e+00> : vector<1xf32>
    %90 = vector.multi_reduction <add>, %89, %cst_28 [1, 2] : vector<1x16x32xf32> to vector<1xf32>
    %91 = vector.shape_cast %90 : vector<1xf32> to vector<1x1x1xf32>
    %92 = vector.extract %91[0, 0, 0] : f32 from vector<1x1x1xf32>
    %93 = vector.broadcast %92 : f32 to vector<1x1xf32>
    %cst_29 = arith.constant 5.120000e+02 : f32
    %94 = vector.broadcast %cst_29 : f32 to vector<1x1xf32>
    %95 = arith.divf %93, %94 : vector<1x1xf32>
    %96 = arith.mulf %87, %87 : vector<1x1xf32>
    %97 = arith.subf %95, %96 : vector<1x1xf32>
    %cst_30 = arith.constant 0.000000e+00 : f32
    %98 = vector.broadcast %cst_30 : f32 to vector<1x1xf32>
    %99 = arith.maximumf %97, %98 : vector<1x1xf32>
    %100 = vector.broadcast %87 : vector<1x1xf32> to vector<16x32xf32>
    %101 = arith.subf %80, %100 : vector<16x32xf32>
    %cst_31 = arith.constant 9.99999974E-6 : f32
    %102 = vector.broadcast %cst_31 : f32 to vector<1x1xf32>
    %103 = arith.addf %99, %102 : vector<1x1xf32>
    %104 = math.rsqrt %103 : vector<1x1xf32>
    %105 = vector.broadcast %104 : vector<1x1xf32> to vector<16x32xf32>
    %106 = arith.mulf %101, %105 : vector<16x32xf32>
    %cst_32 = arith.constant 2.000000e-01 : f32
    %107 = vector.broadcast %cst_32 : f32 to vector<16x32xf32>
    %108 = arith.mulf %107, %106 : vector<16x32xf32>
    %109 = arith.maximumf %106, %108 : vector<16x32xf32>
    %110 = arith.truncf %109 : vector<16x32xf32> to vector<16x32xbf16>
    %cst_33 = arith.constant dense<0.000000e+00> : vector<16x128xf32>
    %111 = tpu.matmul %110, %7, %cst_33 {dimension_numbers = #tpu.dot_dimension_numbers<[1], [0], [0], [1], [0, 0, 1, 1], [], []>} : vector<16x32xbf16>, vector<32x128xbf16>, vector<16x128xf32> -> vector<16x128xf32>
    %112 = arith.addf %111, %1 : vector<16x128xf32>
    %c1 = arith.constant 1 : index
    %c0_34 = arith.constant 0 : index
    %c0_35 = arith.constant 0 : index
    %113 = vector.load %arg2[%c1, %c0_34, %c0_35] : memref<4x128x32xbf16, #tpu.memory_space<vmem>>, vector<1x128x32xbf16>
    %114 = vector.shape_cast %113 : vector<1x128x32xbf16> to vector<128x32xbf16>
    %c1_36 = arith.constant 1 : index
    %c0_37 = arith.constant 0 : index
    %c0_38 = arith.constant 0 : index
    %115 = vector.load %arg3[%c1_36, %c0_37, %c0_38] : memref<4x32x96xbf16, #tpu.memory_space<vmem>>, vector<1x32x96xbf16>
    %116 = vector.shape_cast %115 : vector<1x32x96xbf16> to vector<32x96xbf16>
    %c1_39 = arith.constant 1 : index
    %c0_40 = arith.constant 0 : index
    %c0_41 = arith.constant 0 : index
    %117 = vector.load %arg4[%c1_39, %c0_40, %c0_41] : memref<4x32x128xbf16, #tpu.memory_space<vmem>>, vector<1x32x128xbf16>
    %118 = vector.shape_cast %117 : vector<1x32x128xbf16> to vector<32x128xbf16>
    %119 = vector.shape_cast %112 : vector<16x128xf32> to vector<1x16x128xf32>
    %cst_42 = arith.constant dense<0.000000e+00> : vector<1xf32>
    %120 = vector.multi_reduction <add>, %119, %cst_42 [1, 2] : vector<1x16x128xf32> to vector<1xf32>
    %121 = vector.shape_cast %120 : vector<1xf32> to vector<1x1x1xf32>
    %122 = vector.extract %121[0, 0, 0] : f32 from vector<1x1x1xf32>
    %123 = vector.broadcast %122 : f32 to vector<1x1xf32>
    %cst_43 = arith.constant 2.048000e+03 : f32
    %124 = vector.broadcast %cst_43 : f32 to vector<1x1xf32>
    %125 = arith.divf %123, %124 : vector<1x1xf32>
    %126 = arith.mulf %112, %112 : vector<16x128xf32>
    %127 = vector.shape_cast %126 : vector<16x128xf32> to vector<1x16x128xf32>
    %cst_44 = arith.constant dense<0.000000e+00> : vector<1xf32>
    %128 = vector.multi_reduction <add>, %127, %cst_44 [1, 2] : vector<1x16x128xf32> to vector<1xf32>
    %129 = vector.shape_cast %128 : vector<1xf32> to vector<1x1x1xf32>
    %130 = vector.extract %129[0, 0, 0] : f32 from vector<1x1x1xf32>
    %131 = vector.broadcast %130 : f32 to vector<1x1xf32>
    %cst_45 = arith.constant 2.048000e+03 : f32
    %132 = vector.broadcast %cst_45 : f32 to vector<1x1xf32>
    %133 = arith.divf %131, %132 : vector<1x1xf32>
    %134 = arith.mulf %125, %125 : vector<1x1xf32>
    %135 = arith.subf %133, %134 : vector<1x1xf32>
    %cst_46 = arith.constant 0.000000e+00 : f32
    %136 = vector.broadcast %cst_46 : f32 to vector<1x1xf32>
    %137 = arith.maximumf %135, %136 : vector<1x1xf32>
    %138 = vector.broadcast %125 : vector<1x1xf32> to vector<16x128xf32>
    %139 = arith.subf %112, %138 : vector<16x128xf32>
    %cst_47 = arith.constant 9.99999974E-6 : f32
    %140 = vector.broadcast %cst_47 : f32 to vector<1x1xf32>
    %141 = arith.addf %137, %140 : vector<1x1xf32>
    %142 = math.rsqrt %141 : vector<1x1xf32>
    %143 = vector.broadcast %142 : vector<1x1xf32> to vector<16x128xf32>
    %144 = arith.mulf %139, %143 : vector<16x128xf32>
    %cst_48 = arith.constant 2.000000e-01 : f32
    %145 = vector.broadcast %cst_48 : f32 to vector<16x128xf32>
    %146 = arith.mulf %145, %144 : vector<16x128xf32>
    %147 = arith.maximumf %144, %146 : vector<16x128xf32>
    %148 = arith.truncf %147 : vector<16x128xf32> to vector<16x128xbf16>
    %cst_49 = arith.constant dense<0.000000e+00> : vector<16x32xf32>
    %149 = tpu.matmul %148, %114, %cst_49 {dimension_numbers = #tpu.dot_dimension_numbers<[1], [0], [0], [1], [0, 0, 1, 1], [], []>} : vector<16x128xbf16>, vector<128x32xbf16>, vector<16x32xf32> -> vector<16x32xf32>
    %150 = vector.shape_cast %149 : vector<16x32xf32> to vector<1x16x32xf32>
    %cst_50 = arith.constant dense<0.000000e+00> : vector<1xf32>
    %151 = vector.multi_reduction <add>, %150, %cst_50 [1, 2] : vector<1x16x32xf32> to vector<1xf32>
    %152 = vector.shape_cast %151 : vector<1xf32> to vector<1x1x1xf32>
    %153 = vector.extract %152[0, 0, 0] : f32 from vector<1x1x1xf32>
    %154 = vector.broadcast %153 : f32 to vector<1x1xf32>
    %cst_51 = arith.constant 5.120000e+02 : f32
    %155 = vector.broadcast %cst_51 : f32 to vector<1x1xf32>
    %156 = arith.divf %154, %155 : vector<1x1xf32>
    %157 = arith.mulf %149, %149 : vector<16x32xf32>
    %158 = vector.shape_cast %157 : vector<16x32xf32> to vector<1x16x32xf32>
    %cst_52 = arith.constant dense<0.000000e+00> : vector<1xf32>
    %159 = vector.multi_reduction <add>, %158, %cst_52 [1, 2] : vector<1x16x32xf32> to vector<1xf32>
    %160 = vector.shape_cast %159 : vector<1xf32> to vector<1x1x1xf32>
    %161 = vector.extract %160[0, 0, 0] : f32 from vector<1x1x1xf32>
    %162 = vector.broadcast %161 : f32 to vector<1x1xf32>
    %cst_53 = arith.constant 5.120000e+02 : f32
    %163 = vector.broadcast %cst_53 : f32 to vector<1x1xf32>
    %164 = arith.divf %162, %163 : vector<1x1xf32>
    %165 = arith.mulf %156, %156 : vector<1x1xf32>
    %166 = arith.subf %164, %165 : vector<1x1xf32>
    %cst_54 = arith.constant 0.000000e+00 : f32
    %167 = vector.broadcast %cst_54 : f32 to vector<1x1xf32>
    %168 = arith.maximumf %166, %167 : vector<1x1xf32>
    %169 = vector.broadcast %156 : vector<1x1xf32> to vector<16x32xf32>
    %170 = arith.subf %149, %169 : vector<16x32xf32>
    %cst_55 = arith.constant 9.99999974E-6 : f32
    %171 = vector.broadcast %cst_55 : f32 to vector<1x1xf32>
    %172 = arith.addf %168, %171 : vector<1x1xf32>
    %173 = math.rsqrt %172 : vector<1x1xf32>
    %174 = vector.broadcast %173 : vector<1x1xf32> to vector<16x32xf32>
    %175 = arith.mulf %170, %174 : vector<16x32xf32>
    %cst_56 = arith.constant 2.000000e-01 : f32
    %176 = vector.broadcast %cst_56 : f32 to vector<16x32xf32>
    %177 = arith.mulf %176, %175 : vector<16x32xf32>
    %178 = arith.maximumf %175, %177 : vector<16x32xf32>
    %179 = arith.truncf %178 : vector<16x32xf32> to vector<16x32xbf16>
    %cst_57 = arith.constant dense<0.000000e+00> : vector<16x96xf32>
    %180 = tpu.matmul %179, %116, %cst_57 {dimension_numbers = #tpu.dot_dimension_numbers<[1], [0], [0], [1], [0, 0, 1, 1], [], []>} : vector<16x32xbf16>, vector<32x96xbf16>, vector<16x96xf32> -> vector<16x96xf32>
    %181 = vector.extract_strided_slice %180 {offsets = [0, 0], sizes = [16, 32], strides = [1, 1]} : vector<16x96xf32> to vector<16x32xf32>
    %182 = vector.extract_strided_slice %180 {offsets = [0, 32], sizes = [16, 32], strides = [1, 1]} : vector<16x96xf32> to vector<16x32xf32>
    %183 = vector.extract_strided_slice %180 {offsets = [0, 64], sizes = [16, 32], strides = [1, 1]} : vector<16x96xf32> to vector<16x32xf32>
    %184 = vector.extract_strided_slice %181 {offsets = [1, 0], sizes = [1, 32], strides = [1, 1]} : vector<16x32xf32> to vector<1x32xf32>
    %185 = vector.extract_strided_slice %181 {offsets = [0, 0], sizes = [15, 32], strides = [1, 1]} : vector<16x32xf32> to vector<15x32xf32>
    %186 = tpu.concatenate %184, %185 in 0 : vector<1x32xf32>, vector<15x32xf32> -> vector<16x32xf32>
    %187 = vector.extract_strided_slice %183 {offsets = [1, 0], sizes = [15, 32], strides = [1, 1]} : vector<16x32xf32> to vector<15x32xf32>
    %188 = vector.extract_strided_slice %183 {offsets = [14, 0], sizes = [1, 32], strides = [1, 1]} : vector<16x32xf32> to vector<1x32xf32>
    %189 = tpu.concatenate %187, %188 in 0 : vector<15x32xf32>, vector<1x32xf32> -> vector<16x32xf32>
    %190 = arith.addf %186, %182 : vector<16x32xf32>
    %191 = arith.addf %190, %189 : vector<16x32xf32>
    %192 = vector.shape_cast %191 : vector<16x32xf32> to vector<1x16x32xf32>
    %cst_58 = arith.constant dense<0.000000e+00> : vector<1xf32>
    %193 = vector.multi_reduction <add>, %192, %cst_58 [1, 2] : vector<1x16x32xf32> to vector<1xf32>
    %194 = vector.shape_cast %193 : vector<1xf32> to vector<1x1x1xf32>
    %195 = vector.extract %194[0, 0, 0] : f32 from vector<1x1x1xf32>
    %196 = vector.broadcast %195 : f32 to vector<1x1xf32>
    %cst_59 = arith.constant 5.120000e+02 : f32
    %197 = vector.broadcast %cst_59 : f32 to vector<1x1xf32>
    %198 = arith.divf %196, %197 : vector<1x1xf32>
    %199 = arith.mulf %191, %191 : vector<16x32xf32>
    %200 = vector.shape_cast %199 : vector<16x32xf32> to vector<1x16x32xf32>
    %cst_60 = arith.constant dense<0.000000e+00> : vector<1xf32>
    %201 = vector.multi_reduction <add>, %200, %cst_60 [1, 2] : vector<1x16x32xf32> to vector<1xf32>
    %202 = vector.shape_cast %201 : vector<1xf32> to vector<1x1x1xf32>
    %203 = vector.extract %202[0, 0, 0] : f32 from vector<1x1x1xf32>
    %204 = vector.broadcast %203 : f32 to vector<1x1xf32>
    %cst_61 = arith.constant 5.120000e+02 : f32
    %205 = vector.broadcast %cst_61 : f32 to vector<1x1xf32>
    %206 = arith.divf %204, %205 : vector<1x1xf32>
    %207 = arith.mulf %198, %198 : vector<1x1xf32>
    %208 = arith.subf %206, %207 : vector<1x1xf32>
    %cst_62 = arith.constant 0.000000e+00 : f32
    %209 = vector.broadcast %cst_62 : f32 to vector<1x1xf32>
    %210 = arith.maximumf %208, %209 : vector<1x1xf32>
    %211 = vector.broadcast %198 : vector<1x1xf32> to vector<16x32xf32>
    %212 = arith.subf %191, %211 : vector<16x32xf32>
    %cst_63 = arith.constant 9.99999974E-6 : f32
    %213 = vector.broadcast %cst_63 : f32 to vector<1x1xf32>
    %214 = arith.addf %210, %213 : vector<1x1xf32>
    %215 = math.rsqrt %214 : vector<1x1xf32>
    %216 = vector.broadcast %215 : vector<1x1xf32> to vector<16x32xf32>
    %217 = arith.mulf %212, %216 : vector<16x32xf32>
    %cst_64 = arith.constant 2.000000e-01 : f32
    %218 = vector.broadcast %cst_64 : f32 to vector<16x32xf32>
    %219 = arith.mulf %218, %217 : vector<16x32xf32>
    %220 = arith.maximumf %217, %219 : vector<16x32xf32>
    %221 = arith.truncf %220 : vector<16x32xf32> to vector<16x32xbf16>
    %cst_65 = arith.constant dense<0.000000e+00> : vector<16x128xf32>
    %222 = tpu.matmul %221, %118, %cst_65 {dimension_numbers = #tpu.dot_dimension_numbers<[1], [0], [0], [1], [0, 0, 1, 1], [], []>} : vector<16x32xbf16>, vector<32x128xbf16>, vector<16x128xf32> -> vector<16x128xf32>
    %223 = arith.addf %222, %112 : vector<16x128xf32>
    %c2 = arith.constant 2 : index
    %c0_66 = arith.constant 0 : index
    %c0_67 = arith.constant 0 : index
    %224 = vector.load %arg2[%c2, %c0_66, %c0_67] : memref<4x128x32xbf16, #tpu.memory_space<vmem>>, vector<1x128x32xbf16>
    %225 = vector.shape_cast %224 : vector<1x128x32xbf16> to vector<128x32xbf16>
    %c2_68 = arith.constant 2 : index
    %c0_69 = arith.constant 0 : index
    %c0_70 = arith.constant 0 : index
    %226 = vector.load %arg3[%c2_68, %c0_69, %c0_70] : memref<4x32x96xbf16, #tpu.memory_space<vmem>>, vector<1x32x96xbf16>
    %227 = vector.shape_cast %226 : vector<1x32x96xbf16> to vector<32x96xbf16>
    %c2_71 = arith.constant 2 : index
    %c0_72 = arith.constant 0 : index
    %c0_73 = arith.constant 0 : index
    %228 = vector.load %arg4[%c2_71, %c0_72, %c0_73] : memref<4x32x128xbf16, #tpu.memory_space<vmem>>, vector<1x32x128xbf16>
    %229 = vector.shape_cast %228 : vector<1x32x128xbf16> to vector<32x128xbf16>
    %230 = vector.shape_cast %223 : vector<16x128xf32> to vector<1x16x128xf32>
    %cst_74 = arith.constant dense<0.000000e+00> : vector<1xf32>
    %231 = vector.multi_reduction <add>, %230, %cst_74 [1, 2] : vector<1x16x128xf32> to vector<1xf32>
    %232 = vector.shape_cast %231 : vector<1xf32> to vector<1x1x1xf32>
    %233 = vector.extract %232[0, 0, 0] : f32 from vector<1x1x1xf32>
    %234 = vector.broadcast %233 : f32 to vector<1x1xf32>
    %cst_75 = arith.constant 2.048000e+03 : f32
    %235 = vector.broadcast %cst_75 : f32 to vector<1x1xf32>
    %236 = arith.divf %234, %235 : vector<1x1xf32>
    %237 = arith.mulf %223, %223 : vector<16x128xf32>
    %238 = vector.shape_cast %237 : vector<16x128xf32> to vector<1x16x128xf32>
    %cst_76 = arith.constant dense<0.000000e+00> : vector<1xf32>
    %239 = vector.multi_reduction <add>, %238, %cst_76 [1, 2] : vector<1x16x128xf32> to vector<1xf32>
    %240 = vector.shape_cast %239 : vector<1xf32> to vector<1x1x1xf32>
    %241 = vector.extract %240[0, 0, 0] : f32 from vector<1x1x1xf32>
    %242 = vector.broadcast %241 : f32 to vector<1x1xf32>
    %cst_77 = arith.constant 2.048000e+03 : f32
    %243 = vector.broadcast %cst_77 : f32 to vector<1x1xf32>
    %244 = arith.divf %242, %243 : vector<1x1xf32>
    %245 = arith.mulf %236, %236 : vector<1x1xf32>
    %246 = arith.subf %244, %245 : vector<1x1xf32>
    %cst_78 = arith.constant 0.000000e+00 : f32
    %247 = vector.broadcast %cst_78 : f32 to vector<1x1xf32>
    %248 = arith.maximumf %246, %247 : vector<1x1xf32>
    %249 = vector.broadcast %236 : vector<1x1xf32> to vector<16x128xf32>
    %250 = arith.subf %223, %249 : vector<16x128xf32>
    %cst_79 = arith.constant 9.99999974E-6 : f32
    %251 = vector.broadcast %cst_79 : f32 to vector<1x1xf32>
    %252 = arith.addf %248, %251 : vector<1x1xf32>
    %253 = math.rsqrt %252 : vector<1x1xf32>
    %254 = vector.broadcast %253 : vector<1x1xf32> to vector<16x128xf32>
    %255 = arith.mulf %250, %254 : vector<16x128xf32>
    %cst_80 = arith.constant 2.000000e-01 : f32
    %256 = vector.broadcast %cst_80 : f32 to vector<16x128xf32>
    %257 = arith.mulf %256, %255 : vector<16x128xf32>
    %258 = arith.maximumf %255, %257 : vector<16x128xf32>
    %259 = arith.truncf %258 : vector<16x128xf32> to vector<16x128xbf16>
    %cst_81 = arith.constant dense<0.000000e+00> : vector<16x32xf32>
    %260 = tpu.matmul %259, %225, %cst_81 {dimension_numbers = #tpu.dot_dimension_numbers<[1], [0], [0], [1], [0, 0, 1, 1], [], []>} : vector<16x128xbf16>, vector<128x32xbf16>, vector<16x32xf32> -> vector<16x32xf32>
    %261 = vector.shape_cast %260 : vector<16x32xf32> to vector<1x16x32xf32>
    %cst_82 = arith.constant dense<0.000000e+00> : vector<1xf32>
    %262 = vector.multi_reduction <add>, %261, %cst_82 [1, 2] : vector<1x16x32xf32> to vector<1xf32>
    %263 = vector.shape_cast %262 : vector<1xf32> to vector<1x1x1xf32>
    %264 = vector.extract %263[0, 0, 0] : f32 from vector<1x1x1xf32>
    %265 = vector.broadcast %264 : f32 to vector<1x1xf32>
    %cst_83 = arith.constant 5.120000e+02 : f32
    %266 = vector.broadcast %cst_83 : f32 to vector<1x1xf32>
    %267 = arith.divf %265, %266 : vector<1x1xf32>
    %268 = arith.mulf %260, %260 : vector<16x32xf32>
    %269 = vector.shape_cast %268 : vector<16x32xf32> to vector<1x16x32xf32>
    %cst_84 = arith.constant dense<0.000000e+00> : vector<1xf32>
    %270 = vector.multi_reduction <add>, %269, %cst_84 [1, 2] : vector<1x16x32xf32> to vector<1xf32>
    %271 = vector.shape_cast %270 : vector<1xf32> to vector<1x1x1xf32>
    %272 = vector.extract %271[0, 0, 0] : f32 from vector<1x1x1xf32>
    %273 = vector.broadcast %272 : f32 to vector<1x1xf32>
    %cst_85 = arith.constant 5.120000e+02 : f32
    %274 = vector.broadcast %cst_85 : f32 to vector<1x1xf32>
    %275 = arith.divf %273, %274 : vector<1x1xf32>
    %276 = arith.mulf %267, %267 : vector<1x1xf32>
    %277 = arith.subf %275, %276 : vector<1x1xf32>
    %cst_86 = arith.constant 0.000000e+00 : f32
    %278 = vector.broadcast %cst_86 : f32 to vector<1x1xf32>
    %279 = arith.maximumf %277, %278 : vector<1x1xf32>
    %280 = vector.broadcast %267 : vector<1x1xf32> to vector<16x32xf32>
    %281 = arith.subf %260, %280 : vector<16x32xf32>
    %cst_87 = arith.constant 9.99999974E-6 : f32
    %282 = vector.broadcast %cst_87 : f32 to vector<1x1xf32>
    %283 = arith.addf %279, %282 : vector<1x1xf32>
    %284 = math.rsqrt %283 : vector<1x1xf32>
    %285 = vector.broadcast %284 : vector<1x1xf32> to vector<16x32xf32>
    %286 = arith.mulf %281, %285 : vector<16x32xf32>
    %cst_88 = arith.constant 2.000000e-01 : f32
    %287 = vector.broadcast %cst_88 : f32 to vector<16x32xf32>
    %288 = arith.mulf %287, %286 : vector<16x32xf32>
    %289 = arith.maximumf %286, %288 : vector<16x32xf32>
    %290 = arith.truncf %289 : vector<16x32xf32> to vector<16x32xbf16>
    %cst_89 = arith.constant dense<0.000000e+00> : vector<16x96xf32>
    %291 = tpu.matmul %290, %227, %cst_89 {dimension_numbers = #tpu.dot_dimension_numbers<[1], [0], [0], [1], [0, 0, 1, 1], [], []>} : vector<16x32xbf16>, vector<32x96xbf16>, vector<16x96xf32> -> vector<16x96xf32>
    %292 = vector.extract_strided_slice %291 {offsets = [0, 0], sizes = [16, 32], strides = [1, 1]} : vector<16x96xf32> to vector<16x32xf32>
    %293 = vector.extract_strided_slice %291 {offsets = [0, 32], sizes = [16, 32], strides = [1, 1]} : vector<16x96xf32> to vector<16x32xf32>
    %294 = vector.extract_strided_slice %291 {offsets = [0, 64], sizes = [16, 32], strides = [1, 1]} : vector<16x96xf32> to vector<16x32xf32>
    %295 = vector.extract_strided_slice %292 {offsets = [1, 0], sizes = [1, 32], strides = [1, 1]} : vector<16x32xf32> to vector<1x32xf32>
    %296 = vector.extract_strided_slice %292 {offsets = [0, 0], sizes = [15, 32], strides = [1, 1]} : vector<16x32xf32> to vector<15x32xf32>
    %297 = tpu.concatenate %295, %296 in 0 : vector<1x32xf32>, vector<15x32xf32> -> vector<16x32xf32>
    %298 = vector.extract_strided_slice %294 {offsets = [1, 0], sizes = [15, 32], strides = [1, 1]} : vector<16x32xf32> to vector<15x32xf32>
    %299 = vector.extract_strided_slice %294 {offsets = [14, 0], sizes = [1, 32], strides = [1, 1]} : vector<16x32xf32> to vector<1x32xf32>
    %300 = tpu.concatenate %298, %299 in 0 : vector<15x32xf32>, vector<1x32xf32> -> vector<16x32xf32>
    %301 = arith.addf %297, %293 : vector<16x32xf32>
    %302 = arith.addf %301, %300 : vector<16x32xf32>
    %303 = vector.shape_cast %302 : vector<16x32xf32> to vector<1x16x32xf32>
    %cst_90 = arith.constant dense<0.000000e+00> : vector<1xf32>
    %304 = vector.multi_reduction <add>, %303, %cst_90 [1, 2] : vector<1x16x32xf32> to vector<1xf32>
    %305 = vector.shape_cast %304 : vector<1xf32> to vector<1x1x1xf32>
    %306 = vector.extract %305[0, 0, 0] : f32 from vector<1x1x1xf32>
    %307 = vector.broadcast %306 : f32 to vector<1x1xf32>
    %cst_91 = arith.constant 5.120000e+02 : f32
    %308 = vector.broadcast %cst_91 : f32 to vector<1x1xf32>
    %309 = arith.divf %307, %308 : vector<1x1xf32>
    %310 = arith.mulf %302, %302 : vector<16x32xf32>
    %311 = vector.shape_cast %310 : vector<16x32xf32> to vector<1x16x32xf32>
    %cst_92 = arith.constant dense<0.000000e+00> : vector<1xf32>
    %312 = vector.multi_reduction <add>, %311, %cst_92 [1, 2] : vector<1x16x32xf32> to vector<1xf32>
    %313 = vector.shape_cast %312 : vector<1xf32> to vector<1x1x1xf32>
    %314 = vector.extract %313[0, 0, 0] : f32 from vector<1x1x1xf32>
    %315 = vector.broadcast %314 : f32 to vector<1x1xf32>
    %cst_93 = arith.constant 5.120000e+02 : f32
    %316 = vector.broadcast %cst_93 : f32 to vector<1x1xf32>
    %317 = arith.divf %315, %316 : vector<1x1xf32>
    %318 = arith.mulf %309, %309 : vector<1x1xf32>
    %319 = arith.subf %317, %318 : vector<1x1xf32>
    %cst_94 = arith.constant 0.000000e+00 : f32
    %320 = vector.broadcast %cst_94 : f32 to vector<1x1xf32>
    %321 = arith.maximumf %319, %320 : vector<1x1xf32>
    %322 = vector.broadcast %309 : vector<1x1xf32> to vector<16x32xf32>
    %323 = arith.subf %302, %322 : vector<16x32xf32>
    %cst_95 = arith.constant 9.99999974E-6 : f32
    %324 = vector.broadcast %cst_95 : f32 to vector<1x1xf32>
    %325 = arith.addf %321, %324 : vector<1x1xf32>
    %326 = math.rsqrt %325 : vector<1x1xf32>
    %327 = vector.broadcast %326 : vector<1x1xf32> to vector<16x32xf32>
    %328 = arith.mulf %323, %327 : vector<16x32xf32>
    %cst_96 = arith.constant 2.000000e-01 : f32
    %329 = vector.broadcast %cst_96 : f32 to vector<16x32xf32>
    %330 = arith.mulf %329, %328 : vector<16x32xf32>
    %331 = arith.maximumf %328, %330 : vector<16x32xf32>
    %332 = arith.truncf %331 : vector<16x32xf32> to vector<16x32xbf16>
    %cst_97 = arith.constant dense<0.000000e+00> : vector<16x128xf32>
    %333 = tpu.matmul %332, %229, %cst_97 {dimension_numbers = #tpu.dot_dimension_numbers<[1], [0], [0], [1], [0, 0, 1, 1], [], []>} : vector<16x32xbf16>, vector<32x128xbf16>, vector<16x128xf32> -> vector<16x128xf32>
    %334 = arith.addf %333, %223 : vector<16x128xf32>
    %335 = vector.extract_strided_slice %112 {offsets = [0, 0], sizes = [1, 128], strides = [1, 1]} : vector<16x128xf32> to vector<1x128xf32>
    %336 = vector.extract_strided_slice %112 {offsets = [0, 0], sizes = [15, 128], strides = [1, 1]} : vector<16x128xf32> to vector<15x128xf32>
    %337 = tpu.concatenate %335, %336 in 0 : vector<1x128xf32>, vector<15x128xf32> -> vector<16x128xf32>
    %338 = vector.extract_strided_slice %112 {offsets = [1, 0], sizes = [15, 128], strides = [1, 1]} : vector<16x128xf32> to vector<15x128xf32>
    %339 = vector.extract_strided_slice %112 {offsets = [15, 0], sizes = [1, 128], strides = [1, 1]} : vector<16x128xf32> to vector<1x128xf32>
    %340 = tpu.concatenate %338, %339 in 0 : vector<15x128xf32>, vector<1x128xf32> -> vector<16x128xf32>
    %341 = arith.maximumf %112, %337 : vector<16x128xf32>
    %342 = arith.maximumf %341, %340 : vector<16x128xf32>
    %c0_98 = arith.constant 0 : index
    %c0_99 = arith.constant 0 : index
    %343 = vector.load %arg11[%c0_98, %c0_99] : memref<8x16xbf16, #tpu.memory_space<vmem>>, vector<8x16xbf16>
    %344 = arith.truncf %342 : vector<16x128xf32> to vector<16x128xbf16>
    %cst_100 = arith.constant dense<0.000000e+00> : vector<8x128xf32>
    %345 = tpu.matmul %343, %344, %cst_100 {dimension_numbers = #tpu.dot_dimension_numbers<[1], [0], [0], [1], [0, 0, 1, 1], [], []>} : vector<8x16xbf16>, vector<16x128xbf16>, vector<8x128xf32> -> vector<8x128xf32>
    %c0_101 = arith.constant 0 : index
    %c0_102 = arith.constant 0 : index
    %c0_103 = arith.constant 0 : index
    %346 = vector.load %arg12[%c0_101, %c0_102, %c0_103] : memref<3x128x64xbf16, #tpu.memory_space<vmem>>, vector<1x128x64xbf16>
    %347 = vector.shape_cast %346 : vector<1x128x64xbf16> to vector<128x64xbf16>
    %348 = arith.truncf %345 : vector<8x128xf32> to vector<8x128xbf16>
    %cst_104 = arith.constant dense<0.000000e+00> : vector<8x64xf32>
    %349 = tpu.matmul %348, %347, %cst_104 {dimension_numbers = #tpu.dot_dimension_numbers<[1], [0], [0], [1], [0, 0, 1, 1], [], []>} : vector<8x128xbf16>, vector<128x64xbf16>, vector<8x64xf32> -> vector<8x64xf32>
    %c1_105 = arith.constant 1 : index
    %c0_106 = arith.constant 0 : index
    %c0_107 = arith.constant 0 : index
    %350 = vector.load %arg12[%c1_105, %c0_106, %c0_107] : memref<3x128x64xbf16, #tpu.memory_space<vmem>>, vector<1x128x64xbf16>
    %351 = vector.shape_cast %350 : vector<1x128x64xbf16> to vector<128x64xbf16>
    %352 = arith.truncf %345 : vector<8x128xf32> to vector<8x128xbf16>
    %cst_108 = arith.constant dense<0.000000e+00> : vector<8x64xf32>
    %353 = tpu.matmul %352, %351, %cst_108 {dimension_numbers = #tpu.dot_dimension_numbers<[1], [0], [0], [1], [0, 0, 1, 1], [], []>} : vector<8x128xbf16>, vector<128x64xbf16>, vector<8x64xf32> -> vector<8x64xf32>
    %354 = arith.maximumf %349, %353 : vector<8x64xf32>
    %c2_109 = arith.constant 2 : index
    %c0_110 = arith.constant 0 : index
    %c0_111 = arith.constant 0 : index
    %355 = vector.load %arg12[%c2_109, %c0_110, %c0_111] : memref<3x128x64xbf16, #tpu.memory_space<vmem>>, vector<1x128x64xbf16>
    %356 = vector.shape_cast %355 : vector<1x128x64xbf16> to vector<128x64xbf16>
    %357 = arith.truncf %345 : vector<8x128xf32> to vector<8x128xbf16>
    %cst_112 = arith.constant dense<0.000000e+00> : vector<8x64xf32>
    %358 = tpu.matmul %357, %356, %cst_112 {dimension_numbers = #tpu.dot_dimension_numbers<[1], [0], [0], [1], [0, 0, 1, 1], [], []>} : vector<8x128xbf16>, vector<128x64xbf16>, vector<8x64xf32> -> vector<8x64xf32>
    %359 = arith.maximumf %354, %358 : vector<8x64xf32>
    %c0_113 = arith.constant 0 : index
    %c0_114 = arith.constant 0 : index
    %c0_115 = arith.constant 0 : index
    %360 = vector.load %arg5[%c0_113, %c0_114, %c0_115] : memref<3x64x16xbf16, #tpu.memory_space<vmem>>, vector<1x64x16xbf16>
    %361 = vector.shape_cast %360 : vector<1x64x16xbf16> to vector<64x16xbf16>
    %c0_116 = arith.constant 0 : index
    %c0_117 = arith.constant 0 : index
    %c0_118 = arith.constant 0 : index
    %362 = vector.load %arg6[%c0_116, %c0_117, %c0_118] : memref<3x16x48xbf16, #tpu.memory_space<vmem>>, vector<1x16x48xbf16>
    %363 = vector.shape_cast %362 : vector<1x16x48xbf16> to vector<16x48xbf16>
    %c0_119 = arith.constant 0 : index
    %c0_120 = arith.constant 0 : index
    %c0_121 = arith.constant 0 : index
    %364 = vector.load %arg7[%c0_119, %c0_120, %c0_121] : memref<3x16x64xbf16, #tpu.memory_space<vmem>>, vector<1x16x64xbf16>
    %365 = vector.shape_cast %364 : vector<1x16x64xbf16> to vector<16x64xbf16>
    %366 = vector.shape_cast %359 : vector<8x64xf32> to vector<1x8x64xf32>
    %cst_122 = arith.constant dense<0.000000e+00> : vector<1xf32>
    %367 = vector.multi_reduction <add>, %366, %cst_122 [1, 2] : vector<1x8x64xf32> to vector<1xf32>
    %368 = vector.shape_cast %367 : vector<1xf32> to vector<1x1x1xf32>
    %369 = vector.extract %368[0, 0, 0] : f32 from vector<1x1x1xf32>
    %370 = vector.broadcast %369 : f32 to vector<1x1xf32>
    %cst_123 = arith.constant 5.120000e+02 : f32
    %371 = vector.broadcast %cst_123 : f32 to vector<1x1xf32>
    %372 = arith.divf %370, %371 : vector<1x1xf32>
    %373 = arith.mulf %359, %359 : vector<8x64xf32>
    %374 = vector.shape_cast %373 : vector<8x64xf32> to vector<1x8x64xf32>
    %cst_124 = arith.constant dense<0.000000e+00> : vector<1xf32>
    %375 = vector.multi_reduction <add>, %374, %cst_124 [1, 2] : vector<1x8x64xf32> to vector<1xf32>
    %376 = vector.shape_cast %375 : vector<1xf32> to vector<1x1x1xf32>
    %377 = vector.extract %376[0, 0, 0] : f32 from vector<1x1x1xf32>
    %378 = vector.broadcast %377 : f32 to vector<1x1xf32>
    %cst_125 = arith.constant 5.120000e+02 : f32
    %379 = vector.broadcast %cst_125 : f32 to vector<1x1xf32>
    %380 = arith.divf %378, %379 : vector<1x1xf32>
    %381 = arith.mulf %372, %372 : vector<1x1xf32>
    %382 = arith.subf %380, %381 : vector<1x1xf32>
    %cst_126 = arith.constant 0.000000e+00 : f32
    %383 = vector.broadcast %cst_126 : f32 to vector<1x1xf32>
    %384 = arith.maximumf %382, %383 : vector<1x1xf32>
    %385 = vector.broadcast %372 : vector<1x1xf32> to vector<8x64xf32>
    %386 = arith.subf %359, %385 : vector<8x64xf32>
    %cst_127 = arith.constant 9.99999974E-6 : f32
    %387 = vector.broadcast %cst_127 : f32 to vector<1x1xf32>
    %388 = arith.addf %384, %387 : vector<1x1xf32>
    %389 = math.rsqrt %388 : vector<1x1xf32>
    %390 = vector.broadcast %389 : vector<1x1xf32> to vector<8x64xf32>
    %391 = arith.mulf %386, %390 : vector<8x64xf32>
    %cst_128 = arith.constant 2.000000e-01 : f32
    %392 = vector.broadcast %cst_128 : f32 to vector<8x64xf32>
    %393 = arith.mulf %392, %391 : vector<8x64xf32>
    %394 = arith.maximumf %391, %393 : vector<8x64xf32>
    %395 = arith.truncf %394 : vector<8x64xf32> to vector<8x64xbf16>
    %cst_129 = arith.constant dense<0.000000e+00> : vector<8x16xf32>
    %396 = tpu.matmul %395, %361, %cst_129 {dimension_numbers = #tpu.dot_dimension_numbers<[1], [0], [0], [1], [0, 0, 1, 1], [], []>} : vector<8x64xbf16>, vector<64x16xbf16>, vector<8x16xf32> -> vector<8x16xf32>
    %397 = vector.shape_cast %396 : vector<8x16xf32> to vector<1x8x16xf32>
    %cst_130 = arith.constant dense<0.000000e+00> : vector<1xf32>
    %398 = vector.multi_reduction <add>, %397, %cst_130 [1, 2] : vector<1x8x16xf32> to vector<1xf32>
    %399 = vector.shape_cast %398 : vector<1xf32> to vector<1x1x1xf32>
    %400 = vector.extract %399[0, 0, 0] : f32 from vector<1x1x1xf32>
    %401 = vector.broadcast %400 : f32 to vector<1x1xf32>
    %cst_131 = arith.constant 1.280000e+02 : f32
    %402 = vector.broadcast %cst_131 : f32 to vector<1x1xf32>
    %403 = arith.divf %401, %402 : vector<1x1xf32>
    %404 = arith.mulf %396, %396 : vector<8x16xf32>
    %405 = vector.shape_cast %404 : vector<8x16xf32> to vector<1x8x16xf32>
    %cst_132 = arith.constant dense<0.000000e+00> : vector<1xf32>
    %406 = vector.multi_reduction <add>, %405, %cst_132 [1, 2] : vector<1x8x16xf32> to vector<1xf32>
    %407 = vector.shape_cast %406 : vector<1xf32> to vector<1x1x1xf32>
    %408 = vector.extract %407[0, 0, 0] : f32 from vector<1x1x1xf32>
    %409 = vector.broadcast %408 : f32 to vector<1x1xf32>
    %cst_133 = arith.constant 1.280000e+02 : f32
    %410 = vector.broadcast %cst_133 : f32 to vector<1x1xf32>
    %411 = arith.divf %409, %410 : vector<1x1xf32>
    %412 = arith.mulf %403, %403 : vector<1x1xf32>
    %413 = arith.subf %411, %412 : vector<1x1xf32>
    %cst_134 = arith.constant 0.000000e+00 : f32
    %414 = vector.broadcast %cst_134 : f32 to vector<1x1xf32>
    %415 = arith.maximumf %413, %414 : vector<1x1xf32>
    %416 = vector.broadcast %403 : vector<1x1xf32> to vector<8x16xf32>
    %417 = arith.subf %396, %416 : vector<8x16xf32>
    %cst_135 = arith.constant 9.99999974E-6 : f32
    %418 = vector.broadcast %cst_135 : f32 to vector<1x1xf32>
    %419 = arith.addf %415, %418 : vector<1x1xf32>
    %420 = math.rsqrt %419 : vector<1x1xf32>
    %421 = vector.broadcast %420 : vector<1x1xf32> to vector<8x16xf32>
    %422 = arith.mulf %417, %421 : vector<8x16xf32>
    %cst_136 = arith.constant 2.000000e-01 : f32
    %423 = vector.broadcast %cst_136 : f32 to vector<8x16xf32>
    %424 = arith.mulf %423, %422 : vector<8x16xf32>
    %425 = arith.maximumf %422, %424 : vector<8x16xf32>
    %426 = arith.truncf %425 : vector<8x16xf32> to vector<8x16xbf16>
    %cst_137 = arith.constant dense<0.000000e+00> : vector<8x48xf32>
    %427 = tpu.matmul %426, %363, %cst_137 {dimension_numbers = #tpu.dot_dimension_numbers<[1], [0], [0], [1], [0, 0, 1, 1], [], []>} : vector<8x16xbf16>, vector<16x48xbf16>, vector<8x48xf32> -> vector<8x48xf32>
    %428 = vector.extract_strided_slice %427 {offsets = [0, 0], sizes = [8, 16], strides = [1, 1]} : vector<8x48xf32> to vector<8x16xf32>
    %429 = vector.extract_strided_slice %427 {offsets = [0, 16], sizes = [8, 16], strides = [1, 1]} : vector<8x48xf32> to vector<8x16xf32>
    %430 = vector.extract_strided_slice %427 {offsets = [0, 32], sizes = [8, 16], strides = [1, 1]} : vector<8x48xf32> to vector<8x16xf32>
    %431 = vector.extract_strided_slice %428 {offsets = [1, 0], sizes = [1, 16], strides = [1, 1]} : vector<8x16xf32> to vector<1x16xf32>
    %432 = vector.extract_strided_slice %428 {offsets = [0, 0], sizes = [7, 16], strides = [1, 1]} : vector<8x16xf32> to vector<7x16xf32>
    %433 = tpu.concatenate %431, %432 in 0 : vector<1x16xf32>, vector<7x16xf32> -> vector<8x16xf32>
    %434 = vector.extract_strided_slice %430 {offsets = [1, 0], sizes = [7, 16], strides = [1, 1]} : vector<8x16xf32> to vector<7x16xf32>
    %435 = vector.extract_strided_slice %430 {offsets = [6, 0], sizes = [1, 16], strides = [1, 1]} : vector<8x16xf32> to vector<1x16xf32>
    %436 = tpu.concatenate %434, %435 in 0 : vector<7x16xf32>, vector<1x16xf32> -> vector<8x16xf32>
    %437 = arith.addf %433, %429 : vector<8x16xf32>
    %438 = arith.addf %437, %436 : vector<8x16xf32>
    %439 = vector.shape_cast %438 : vector<8x16xf32> to vector<1x8x16xf32>
    %cst_138 = arith.constant dense<0.000000e+00> : vector<1xf32>
    %440 = vector.multi_reduction <add>, %439, %cst_138 [1, 2] : vector<1x8x16xf32> to vector<1xf32>
    %441 = vector.shape_cast %440 : vector<1xf32> to vector<1x1x1xf32>
    %442 = vector.extract %441[0, 0, 0] : f32 from vector<1x1x1xf32>
    %443 = vector.broadcast %442 : f32 to vector<1x1xf32>
    %cst_139 = arith.constant 1.280000e+02 : f32
    %444 = vector.broadcast %cst_139 : f32 to vector<1x1xf32>
    %445 = arith.divf %443, %444 : vector<1x1xf32>
    %446 = arith.mulf %438, %438 : vector<8x16xf32>
    %447 = vector.shape_cast %446 : vector<8x16xf32> to vector<1x8x16xf32>
    %cst_140 = arith.constant dense<0.000000e+00> : vector<1xf32>
    %448 = vector.multi_reduction <add>, %447, %cst_140 [1, 2] : vector<1x8x16xf32> to vector<1xf32>
    %449 = vector.shape_cast %448 : vector<1xf32> to vector<1x1x1xf32>
    %450 = vector.extract %449[0, 0, 0] : f32 from vector<1x1x1xf32>
    %451 = vector.broadcast %450 : f32 to vector<1x1xf32>
    %cst_141 = arith.constant 1.280000e+02 : f32
    %452 = vector.broadcast %cst_141 : f32 to vector<1x1xf32>
    %453 = arith.divf %451, %452 : vector<1x1xf32>
    %454 = arith.mulf %445, %445 : vector<1x1xf32>
    %455 = arith.subf %453, %454 : vector<1x1xf32>
    %cst_142 = arith.constant 0.000000e+00 : f32
    %456 = vector.broadcast %cst_142 : f32 to vector<1x1xf32>
    %457 = arith.maximumf %455, %456 : vector<1x1xf32>
    %458 = vector.broadcast %445 : vector<1x1xf32> to vector<8x16xf32>
    %459 = arith.subf %438, %458 : vector<8x16xf32>
    %cst_143 = arith.constant 9.99999974E-6 : f32
    %460 = vector.broadcast %cst_143 : f32 to vector<1x1xf32>
    %461 = arith.addf %457, %460 : vector<1x1xf32>
    %462 = math.rsqrt %461 : vector<1x1xf32>
    %463 = vector.broadcast %462 : vector<1x1xf32> to vector<8x16xf32>
    %464 = arith.mulf %459, %463 : vector<8x16xf32>
    %cst_144 = arith.constant 2.000000e-01 : f32
    %465 = vector.broadcast %cst_144 : f32 to vector<8x16xf32>
    %466 = arith.mulf %465, %464 : vector<8x16xf32>
    %467 = arith.maximumf %464, %466 : vector<8x16xf32>
    %468 = arith.truncf %467 : vector<8x16xf32> to vector<8x16xbf16>
    %cst_145 = arith.constant dense<0.000000e+00> : vector<8x64xf32>
    %469 = tpu.matmul %468, %365, %cst_145 {dimension_numbers = #tpu.dot_dimension_numbers<[1], [0], [0], [1], [0, 0, 1, 1], [], []>} : vector<8x16xbf16>, vector<16x64xbf16>, vector<8x64xf32> -> vector<8x64xf32>
    %470 = arith.addf %469, %359 : vector<8x64xf32>
    %c1_146 = arith.constant 1 : index
    %c0_147 = arith.constant 0 : index
    %c0_148 = arith.constant 0 : index
    %471 = vector.load %arg5[%c1_146, %c0_147, %c0_148] : memref<3x64x16xbf16, #tpu.memory_space<vmem>>, vector<1x64x16xbf16>
    %472 = vector.shape_cast %471 : vector<1x64x16xbf16> to vector<64x16xbf16>
    %c1_149 = arith.constant 1 : index
    %c0_150 = arith.constant 0 : index
    %c0_151 = arith.constant 0 : index
    %473 = vector.load %arg6[%c1_149, %c0_150, %c0_151] : memref<3x16x48xbf16, #tpu.memory_space<vmem>>, vector<1x16x48xbf16>
    %474 = vector.shape_cast %473 : vector<1x16x48xbf16> to vector<16x48xbf16>
    %c1_152 = arith.constant 1 : index
    %c0_153 = arith.constant 0 : index
    %c0_154 = arith.constant 0 : index
    %475 = vector.load %arg7[%c1_152, %c0_153, %c0_154] : memref<3x16x64xbf16, #tpu.memory_space<vmem>>, vector<1x16x64xbf16>
    %476 = vector.shape_cast %475 : vector<1x16x64xbf16> to vector<16x64xbf16>
    %477 = vector.shape_cast %470 : vector<8x64xf32> to vector<1x8x64xf32>
    %cst_155 = arith.constant dense<0.000000e+00> : vector<1xf32>
    %478 = vector.multi_reduction <add>, %477, %cst_155 [1, 2] : vector<1x8x64xf32> to vector<1xf32>
    %479 = vector.shape_cast %478 : vector<1xf32> to vector<1x1x1xf32>
    %480 = vector.extract %479[0, 0, 0] : f32 from vector<1x1x1xf32>
    %481 = vector.broadcast %480 : f32 to vector<1x1xf32>
    %cst_156 = arith.constant 5.120000e+02 : f32
    %482 = vector.broadcast %cst_156 : f32 to vector<1x1xf32>
    %483 = arith.divf %481, %482 : vector<1x1xf32>
    %484 = arith.mulf %470, %470 : vector<8x64xf32>
    %485 = vector.shape_cast %484 : vector<8x64xf32> to vector<1x8x64xf32>
    %cst_157 = arith.constant dense<0.000000e+00> : vector<1xf32>
    %486 = vector.multi_reduction <add>, %485, %cst_157 [1, 2] : vector<1x8x64xf32> to vector<1xf32>
    %487 = vector.shape_cast %486 : vector<1xf32> to vector<1x1x1xf32>
    %488 = vector.extract %487[0, 0, 0] : f32 from vector<1x1x1xf32>
    %489 = vector.broadcast %488 : f32 to vector<1x1xf32>
    %cst_158 = arith.constant 5.120000e+02 : f32
    %490 = vector.broadcast %cst_158 : f32 to vector<1x1xf32>
    %491 = arith.divf %489, %490 : vector<1x1xf32>
    %492 = arith.mulf %483, %483 : vector<1x1xf32>
    %493 = arith.subf %491, %492 : vector<1x1xf32>
    %cst_159 = arith.constant 0.000000e+00 : f32
    %494 = vector.broadcast %cst_159 : f32 to vector<1x1xf32>
    %495 = arith.maximumf %493, %494 : vector<1x1xf32>
    %496 = vector.broadcast %483 : vector<1x1xf32> to vector<8x64xf32>
    %497 = arith.subf %470, %496 : vector<8x64xf32>
    %cst_160 = arith.constant 9.99999974E-6 : f32
    %498 = vector.broadcast %cst_160 : f32 to vector<1x1xf32>
    %499 = arith.addf %495, %498 : vector<1x1xf32>
    %500 = math.rsqrt %499 : vector<1x1xf32>
    %501 = vector.broadcast %500 : vector<1x1xf32> to vector<8x64xf32>
    %502 = arith.mulf %497, %501 : vector<8x64xf32>
    %cst_161 = arith.constant 2.000000e-01 : f32
    %503 = vector.broadcast %cst_161 : f32 to vector<8x64xf32>
    %504 = arith.mulf %503, %502 : vector<8x64xf32>
    %505 = arith.maximumf %502, %504 : vector<8x64xf32>
    %506 = arith.truncf %505 : vector<8x64xf32> to vector<8x64xbf16>
    %cst_162 = arith.constant dense<0.000000e+00> : vector<8x16xf32>
    %507 = tpu.matmul %506, %472, %cst_162 {dimension_numbers = #tpu.dot_dimension_numbers<[1], [0], [0], [1], [0, 0, 1, 1], [], []>} : vector<8x64xbf16>, vector<64x16xbf16>, vector<8x16xf32> -> vector<8x16xf32>
    %508 = vector.shape_cast %507 : vector<8x16xf32> to vector<1x8x16xf32>
    %cst_163 = arith.constant dense<0.000000e+00> : vector<1xf32>
    %509 = vector.multi_reduction <add>, %508, %cst_163 [1, 2] : vector<1x8x16xf32> to vector<1xf32>
    %510 = vector.shape_cast %509 : vector<1xf32> to vector<1x1x1xf32>
    %511 = vector.extract %510[0, 0, 0] : f32 from vector<1x1x1xf32>
    %512 = vector.broadcast %511 : f32 to vector<1x1xf32>
    %cst_164 = arith.constant 1.280000e+02 : f32
    %513 = vector.broadcast %cst_164 : f32 to vector<1x1xf32>
    %514 = arith.divf %512, %513 : vector<1x1xf32>
    %515 = arith.mulf %507, %507 : vector<8x16xf32>
    %516 = vector.shape_cast %515 : vector<8x16xf32> to vector<1x8x16xf32>
    %cst_165 = arith.constant dense<0.000000e+00> : vector<1xf32>
    %517 = vector.multi_reduction <add>, %516, %cst_165 [1, 2] : vector<1x8x16xf32> to vector<1xf32>
    %518 = vector.shape_cast %517 : vector<1xf32> to vector<1x1x1xf32>
    %519 = vector.extract %518[0, 0, 0] : f32 from vector<1x1x1xf32>
    %520 = vector.broadcast %519 : f32 to vector<1x1xf32>
    %cst_166 = arith.constant 1.280000e+02 : f32
    %521 = vector.broadcast %cst_166 : f32 to vector<1x1xf32>
    %522 = arith.divf %520, %521 : vector<1x1xf32>
    %523 = arith.mulf %514, %514 : vector<1x1xf32>
    %524 = arith.subf %522, %523 : vector<1x1xf32>
    %cst_167 = arith.constant 0.000000e+00 : f32
    %525 = vector.broadcast %cst_167 : f32 to vector<1x1xf32>
    %526 = arith.maximumf %524, %525 : vector<1x1xf32>
    %527 = vector.broadcast %514 : vector<1x1xf32> to vector<8x16xf32>
    %528 = arith.subf %507, %527 : vector<8x16xf32>
    %cst_168 = arith.constant 9.99999974E-6 : f32
    %529 = vector.broadcast %cst_168 : f32 to vector<1x1xf32>
    %530 = arith.addf %526, %529 : vector<1x1xf32>
    %531 = math.rsqrt %530 : vector<1x1xf32>
    %532 = vector.broadcast %531 : vector<1x1xf32> to vector<8x16xf32>
    %533 = arith.mulf %528, %532 : vector<8x16xf32>
    %cst_169 = arith.constant 2.000000e-01 : f32
    %534 = vector.broadcast %cst_169 : f32 to vector<8x16xf32>
    %535 = arith.mulf %534, %533 : vector<8x16xf32>
    %536 = arith.maximumf %533, %535 : vector<8x16xf32>
    %537 = arith.truncf %536 : vector<8x16xf32> to vector<8x16xbf16>
    %cst_170 = arith.constant dense<0.000000e+00> : vector<8x48xf32>
    %538 = tpu.matmul %537, %474, %cst_170 {dimension_numbers = #tpu.dot_dimension_numbers<[1], [0], [0], [1], [0, 0, 1, 1], [], []>} : vector<8x16xbf16>, vector<16x48xbf16>, vector<8x48xf32> -> vector<8x48xf32>
    %539 = vector.extract_strided_slice %538 {offsets = [0, 0], sizes = [8, 16], strides = [1, 1]} : vector<8x48xf32> to vector<8x16xf32>
    %540 = vector.extract_strided_slice %538 {offsets = [0, 16], sizes = [8, 16], strides = [1, 1]} : vector<8x48xf32> to vector<8x16xf32>
    %541 = vector.extract_strided_slice %538 {offsets = [0, 32], sizes = [8, 16], strides = [1, 1]} : vector<8x48xf32> to vector<8x16xf32>
    %542 = vector.extract_strided_slice %539 {offsets = [1, 0], sizes = [1, 16], strides = [1, 1]} : vector<8x16xf32> to vector<1x16xf32>
    %543 = vector.extract_strided_slice %539 {offsets = [0, 0], sizes = [7, 16], strides = [1, 1]} : vector<8x16xf32> to vector<7x16xf32>
    %544 = tpu.concatenate %542, %543 in 0 : vector<1x16xf32>, vector<7x16xf32> -> vector<8x16xf32>
    %545 = vector.extract_strided_slice %541 {offsets = [1, 0], sizes = [7, 16], strides = [1, 1]} : vector<8x16xf32> to vector<7x16xf32>
    %546 = vector.extract_strided_slice %541 {offsets = [6, 0], sizes = [1, 16], strides = [1, 1]} : vector<8x16xf32> to vector<1x16xf32>
    %547 = tpu.concatenate %545, %546 in 0 : vector<7x16xf32>, vector<1x16xf32> -> vector<8x16xf32>
    %548 = arith.addf %544, %540 : vector<8x16xf32>
    %549 = arith.addf %548, %547 : vector<8x16xf32>
    %550 = vector.shape_cast %549 : vector<8x16xf32> to vector<1x8x16xf32>
    %cst_171 = arith.constant dense<0.000000e+00> : vector<1xf32>
    %551 = vector.multi_reduction <add>, %550, %cst_171 [1, 2] : vector<1x8x16xf32> to vector<1xf32>
    %552 = vector.shape_cast %551 : vector<1xf32> to vector<1x1x1xf32>
    %553 = vector.extract %552[0, 0, 0] : f32 from vector<1x1x1xf32>
    %554 = vector.broadcast %553 : f32 to vector<1x1xf32>
    %cst_172 = arith.constant 1.280000e+02 : f32
    %555 = vector.broadcast %cst_172 : f32 to vector<1x1xf32>
    %556 = arith.divf %554, %555 : vector<1x1xf32>
    %557 = arith.mulf %549, %549 : vector<8x16xf32>
    %558 = vector.shape_cast %557 : vector<8x16xf32> to vector<1x8x16xf32>
    %cst_173 = arith.constant dense<0.000000e+00> : vector<1xf32>
    %559 = vector.multi_reduction <add>, %558, %cst_173 [1, 2] : vector<1x8x16xf32> to vector<1xf32>
    %560 = vector.shape_cast %559 : vector<1xf32> to vector<1x1x1xf32>
    %561 = vector.extract %560[0, 0, 0] : f32 from vector<1x1x1xf32>
    %562 = vector.broadcast %561 : f32 to vector<1x1xf32>
    %cst_174 = arith.constant 1.280000e+02 : f32
    %563 = vector.broadcast %cst_174 : f32 to vector<1x1xf32>
    %564 = arith.divf %562, %563 : vector<1x1xf32>
    %565 = arith.mulf %556, %556 : vector<1x1xf32>
    %566 = arith.subf %564, %565 : vector<1x1xf32>
    %cst_175 = arith.constant 0.000000e+00 : f32
    %567 = vector.broadcast %cst_175 : f32 to vector<1x1xf32>
    %568 = arith.maximumf %566, %567 : vector<1x1xf32>
    %569 = vector.broadcast %556 : vector<1x1xf32> to vector<8x16xf32>
    %570 = arith.subf %549, %569 : vector<8x16xf32>
    %cst_176 = arith.constant 9.99999974E-6 : f32
    %571 = vector.broadcast %cst_176 : f32 to vector<1x1xf32>
    %572 = arith.addf %568, %571 : vector<1x1xf32>
    %573 = math.rsqrt %572 : vector<1x1xf32>
    %574 = vector.broadcast %573 : vector<1x1xf32> to vector<8x16xf32>
    %575 = arith.mulf %570, %574 : vector<8x16xf32>
    %cst_177 = arith.constant 2.000000e-01 : f32
    %576 = vector.broadcast %cst_177 : f32 to vector<8x16xf32>
    %577 = arith.mulf %576, %575 : vector<8x16xf32>
    %578 = arith.maximumf %575, %577 : vector<8x16xf32>
    %579 = arith.truncf %578 : vector<8x16xf32> to vector<8x16xbf16>
    %cst_178 = arith.constant dense<0.000000e+00> : vector<8x64xf32>
    %580 = tpu.matmul %579, %476, %cst_178 {dimension_numbers = #tpu.dot_dimension_numbers<[1], [0], [0], [1], [0, 0, 1, 1], [], []>} : vector<8x16xbf16>, vector<16x64xbf16>, vector<8x64xf32> -> vector<8x64xf32>
    %581 = arith.addf %580, %470 : vector<8x64xf32>
    %582 = vector.extract_strided_slice %470 {offsets = [0, 0], sizes = [1, 64], strides = [1, 1]} : vector<8x64xf32> to vector<1x64xf32>
    %583 = vector.extract_strided_slice %470 {offsets = [0, 0], sizes = [7, 64], strides = [1, 1]} : vector<8x64xf32> to vector<7x64xf32>
    %584 = tpu.concatenate %582, %583 in 0 : vector<1x64xf32>, vector<7x64xf32> -> vector<8x64xf32>
    %585 = vector.extract_strided_slice %470 {offsets = [1, 0], sizes = [7, 64], strides = [1, 1]} : vector<8x64xf32> to vector<7x64xf32>
    %586 = vector.extract_strided_slice %470 {offsets = [7, 0], sizes = [1, 64], strides = [1, 1]} : vector<8x64xf32> to vector<1x64xf32>
    %587 = tpu.concatenate %585, %586 in 0 : vector<7x64xf32>, vector<1x64xf32> -> vector<8x64xf32>
    %588 = arith.maximumf %470, %584 : vector<8x64xf32>
    %589 = arith.maximumf %588, %587 : vector<8x64xf32>
    %c0_179 = arith.constant 0 : index
    %c0_180 = arith.constant 0 : index
    %590 = vector.load %arg13[%c0_179, %c0_180] : memref<4x8xbf16, #tpu.memory_space<vmem>>, vector<4x8xbf16>
    %591 = arith.truncf %589 : vector<8x64xf32> to vector<8x64xbf16>
    %cst_181 = arith.constant dense<0.000000e+00> : vector<4x64xf32>
    %592 = tpu.matmul %590, %591, %cst_181 {dimension_numbers = #tpu.dot_dimension_numbers<[1], [0], [0], [1], [0, 0, 1, 1], [], []>} : vector<4x8xbf16>, vector<8x64xbf16>, vector<4x64xf32> -> vector<4x64xf32>
    %c0_182 = arith.constant 0 : index
    %c0_183 = arith.constant 0 : index
    %c0_184 = arith.constant 0 : index
    %593 = vector.load %arg14[%c0_182, %c0_183, %c0_184] : memref<3x64x32xbf16, #tpu.memory_space<vmem>>, vector<1x64x32xbf16>
    %594 = vector.shape_cast %593 : vector<1x64x32xbf16> to vector<64x32xbf16>
    %595 = arith.truncf %592 : vector<4x64xf32> to vector<4x64xbf16>
    %cst_185 = arith.constant dense<0.000000e+00> : vector<4x32xf32>
    %596 = tpu.matmul %595, %594, %cst_185 {dimension_numbers = #tpu.dot_dimension_numbers<[1], [0], [0], [1], [0, 0, 1, 1], [], []>} : vector<4x64xbf16>, vector<64x32xbf16>, vector<4x32xf32> -> vector<4x32xf32>
    %c1_186 = arith.constant 1 : index
    %c0_187 = arith.constant 0 : index
    %c0_188 = arith.constant 0 : index
    %597 = vector.load %arg14[%c1_186, %c0_187, %c0_188] : memref<3x64x32xbf16, #tpu.memory_space<vmem>>, vector<1x64x32xbf16>
    %598 = vector.shape_cast %597 : vector<1x64x32xbf16> to vector<64x32xbf16>
    %599 = arith.truncf %592 : vector<4x64xf32> to vector<4x64xbf16>
    %cst_189 = arith.constant dense<0.000000e+00> : vector<4x32xf32>
    %600 = tpu.matmul %599, %598, %cst_189 {dimension_numbers = #tpu.dot_dimension_numbers<[1], [0], [0], [1], [0, 0, 1, 1], [], []>} : vector<4x64xbf16>, vector<64x32xbf16>, vector<4x32xf32> -> vector<4x32xf32>
    %601 = arith.maximumf %596, %600 : vector<4x32xf32>
    %c2_190 = arith.constant 2 : index
    %c0_191 = arith.constant 0 : index
    %c0_192 = arith.constant 0 : index
    %602 = vector.load %arg14[%c2_190, %c0_191, %c0_192] : memref<3x64x32xbf16, #tpu.memory_space<vmem>>, vector<1x64x32xbf16>
    %603 = vector.shape_cast %602 : vector<1x64x32xbf16> to vector<64x32xbf16>
    %604 = arith.truncf %592 : vector<4x64xf32> to vector<4x64xbf16>
    %cst_193 = arith.constant dense<0.000000e+00> : vector<4x32xf32>
    %605 = tpu.matmul %604, %603, %cst_193 {dimension_numbers = #tpu.dot_dimension_numbers<[1], [0], [0], [1], [0, 0, 1, 1], [], []>} : vector<4x64xbf16>, vector<64x32xbf16>, vector<4x32xf32> -> vector<4x32xf32>
    %606 = arith.maximumf %601, %605 : vector<4x32xf32>
    %c0_194 = arith.constant 0 : index
    %c0_195 = arith.constant 0 : index
    %c0_196 = arith.constant 0 : index
    %607 = vector.load %arg8[%c0_194, %c0_195, %c0_196] : memref<2x32x8xbf16, #tpu.memory_space<vmem>>, vector<1x32x8xbf16>
    %608 = vector.shape_cast %607 : vector<1x32x8xbf16> to vector<32x8xbf16>
    %c0_197 = arith.constant 0 : index
    %c0_198 = arith.constant 0 : index
    %c0_199 = arith.constant 0 : index
    %609 = vector.load %arg9[%c0_197, %c0_198, %c0_199] : memref<2x8x24xbf16, #tpu.memory_space<vmem>>, vector<1x8x24xbf16>
    %610 = vector.shape_cast %609 : vector<1x8x24xbf16> to vector<8x24xbf16>
    %c0_200 = arith.constant 0 : index
    %c0_201 = arith.constant 0 : index
    %c0_202 = arith.constant 0 : index
    %611 = vector.load %arg10[%c0_200, %c0_201, %c0_202] : memref<2x8x32xbf16, #tpu.memory_space<vmem>>, vector<1x8x32xbf16>
    %612 = vector.shape_cast %611 : vector<1x8x32xbf16> to vector<8x32xbf16>
    %613 = vector.shape_cast %606 : vector<4x32xf32> to vector<1x4x32xf32>
    %cst_203 = arith.constant dense<0.000000e+00> : vector<1xf32>
    %614 = vector.multi_reduction <add>, %613, %cst_203 [1, 2] : vector<1x4x32xf32> to vector<1xf32>
    %615 = vector.shape_cast %614 : vector<1xf32> to vector<1x1x1xf32>
    %616 = vector.extract %615[0, 0, 0] : f32 from vector<1x1x1xf32>
    %617 = vector.broadcast %616 : f32 to vector<1x1xf32>
    %cst_204 = arith.constant 1.280000e+02 : f32
    %618 = vector.broadcast %cst_204 : f32 to vector<1x1xf32>
    %619 = arith.divf %617, %618 : vector<1x1xf32>
    %620 = arith.mulf %606, %606 : vector<4x32xf32>
    %621 = vector.shape_cast %620 : vector<4x32xf32> to vector<1x4x32xf32>
    %cst_205 = arith.constant dense<0.000000e+00> : vector<1xf32>
    %622 = vector.multi_reduction <add>, %621, %cst_205 [1, 2] : vector<1x4x32xf32> to vector<1xf32>
    %623 = vector.shape_cast %622 : vector<1xf32> to vector<1x1x1xf32>
    %624 = vector.extract %623[0, 0, 0] : f32 from vector<1x1x1xf32>
    %625 = vector.broadcast %624 : f32 to vector<1x1xf32>
    %cst_206 = arith.constant 1.280000e+02 : f32
    %626 = vector.broadcast %cst_206 : f32 to vector<1x1xf32>
    %627 = arith.divf %625, %626 : vector<1x1xf32>
    %628 = arith.mulf %619, %619 : vector<1x1xf32>
    %629 = arith.subf %627, %628 : vector<1x1xf32>
    %cst_207 = arith.constant 0.000000e+00 : f32
    %630 = vector.broadcast %cst_207 : f32 to vector<1x1xf32>
    %631 = arith.maximumf %629, %630 : vector<1x1xf32>
    %632 = vector.broadcast %619 : vector<1x1xf32> to vector<4x32xf32>
    %633 = arith.subf %606, %632 : vector<4x32xf32>
    %cst_208 = arith.constant 9.99999974E-6 : f32
    %634 = vector.broadcast %cst_208 : f32 to vector<1x1xf32>
    %635 = arith.addf %631, %634 : vector<1x1xf32>
    %636 = math.rsqrt %635 : vector<1x1xf32>
    %637 = vector.broadcast %636 : vector<1x1xf32> to vector<4x32xf32>
    %638 = arith.mulf %633, %637 : vector<4x32xf32>
    %cst_209 = arith.constant 2.000000e-01 : f32
    %639 = vector.broadcast %cst_209 : f32 to vector<4x32xf32>
    %640 = arith.mulf %639, %638 : vector<4x32xf32>
    %641 = arith.maximumf %638, %640 : vector<4x32xf32>
    %642 = arith.truncf %641 : vector<4x32xf32> to vector<4x32xbf16>
    %cst_210 = arith.constant dense<0.000000e+00> : vector<4x8xf32>
    %643 = tpu.matmul %642, %608, %cst_210 {dimension_numbers = #tpu.dot_dimension_numbers<[1], [0], [0], [1], [0, 0, 1, 1], [], []>} : vector<4x32xbf16>, vector<32x8xbf16>, vector<4x8xf32> -> vector<4x8xf32>
    %644 = vector.shape_cast %643 : vector<4x8xf32> to vector<1x4x8xf32>
    %cst_211 = arith.constant dense<0.000000e+00> : vector<1xf32>
    %645 = vector.multi_reduction <add>, %644, %cst_211 [1, 2] : vector<1x4x8xf32> to vector<1xf32>
    %646 = vector.shape_cast %645 : vector<1xf32> to vector<1x1x1xf32>
    %647 = vector.extract %646[0, 0, 0] : f32 from vector<1x1x1xf32>
    %648 = vector.broadcast %647 : f32 to vector<1x1xf32>
    %cst_212 = arith.constant 3.200000e+01 : f32
    %649 = vector.broadcast %cst_212 : f32 to vector<1x1xf32>
    %650 = arith.divf %648, %649 : vector<1x1xf32>
    %651 = arith.mulf %643, %643 : vector<4x8xf32>
    %652 = vector.shape_cast %651 : vector<4x8xf32> to vector<1x4x8xf32>
    %cst_213 = arith.constant dense<0.000000e+00> : vector<1xf32>
    %653 = vector.multi_reduction <add>, %652, %cst_213 [1, 2] : vector<1x4x8xf32> to vector<1xf32>
    %654 = vector.shape_cast %653 : vector<1xf32> to vector<1x1x1xf32>
    %655 = vector.extract %654[0, 0, 0] : f32 from vector<1x1x1xf32>
    %656 = vector.broadcast %655 : f32 to vector<1x1xf32>
    %cst_214 = arith.constant 3.200000e+01 : f32
    %657 = vector.broadcast %cst_214 : f32 to vector<1x1xf32>
    %658 = arith.divf %656, %657 : vector<1x1xf32>
    %659 = arith.mulf %650, %650 : vector<1x1xf32>
    %660 = arith.subf %658, %659 : vector<1x1xf32>
    %cst_215 = arith.constant 0.000000e+00 : f32
    %661 = vector.broadcast %cst_215 : f32 to vector<1x1xf32>
    %662 = arith.maximumf %660, %661 : vector<1x1xf32>
    %663 = vector.broadcast %650 : vector<1x1xf32> to vector<4x8xf32>
    %664 = arith.subf %643, %663 : vector<4x8xf32>
    %cst_216 = arith.constant 9.99999974E-6 : f32
    %665 = vector.broadcast %cst_216 : f32 to vector<1x1xf32>
    %666 = arith.addf %662, %665 : vector<1x1xf32>
    %667 = math.rsqrt %666 : vector<1x1xf32>
    %668 = vector.broadcast %667 : vector<1x1xf32> to vector<4x8xf32>
    %669 = arith.mulf %664, %668 : vector<4x8xf32>
    %cst_217 = arith.constant 2.000000e-01 : f32
    %670 = vector.broadcast %cst_217 : f32 to vector<4x8xf32>
    %671 = arith.mulf %670, %669 : vector<4x8xf32>
    %672 = arith.maximumf %669, %671 : vector<4x8xf32>
    %673 = arith.truncf %672 : vector<4x8xf32> to vector<4x8xbf16>
    %cst_218 = arith.constant dense<0.000000e+00> : vector<4x24xf32>
    %674 = tpu.matmul %673, %610, %cst_218 {dimension_numbers = #tpu.dot_dimension_numbers<[1], [0], [0], [1], [0, 0, 1, 1], [], []>} : vector<4x8xbf16>, vector<8x24xbf16>, vector<4x24xf32> -> vector<4x24xf32>
    %675 = vector.extract_strided_slice %674 {offsets = [0, 0], sizes = [4, 8], strides = [1, 1]} : vector<4x24xf32> to vector<4x8xf32>
    %676 = vector.extract_strided_slice %674 {offsets = [0, 8], sizes = [4, 8], strides = [1, 1]} : vector<4x24xf32> to vector<4x8xf32>
    %677 = vector.extract_strided_slice %674 {offsets = [0, 16], sizes = [4, 8], strides = [1, 1]} : vector<4x24xf32> to vector<4x8xf32>
    %678 = vector.extract_strided_slice %675 {offsets = [1, 0], sizes = [1, 8], strides = [1, 1]} : vector<4x8xf32> to vector<1x8xf32>
    %679 = vector.extract_strided_slice %675 {offsets = [0, 0], sizes = [3, 8], strides = [1, 1]} : vector<4x8xf32> to vector<3x8xf32>
    %680 = tpu.concatenate %678, %679 in 0 : vector<1x8xf32>, vector<3x8xf32> -> vector<4x8xf32>
    %681 = vector.extract_strided_slice %677 {offsets = [1, 0], sizes = [3, 8], strides = [1, 1]} : vector<4x8xf32> to vector<3x8xf32>
    %682 = vector.extract_strided_slice %677 {offsets = [2, 0], sizes = [1, 8], strides = [1, 1]} : vector<4x8xf32> to vector<1x8xf32>
    %683 = tpu.concatenate %681, %682 in 0 : vector<3x8xf32>, vector<1x8xf32> -> vector<4x8xf32>
    %684 = arith.addf %680, %676 : vector<4x8xf32>
    %685 = arith.addf %684, %683 : vector<4x8xf32>
    %686 = vector.shape_cast %685 : vector<4x8xf32> to vector<1x4x8xf32>
    %cst_219 = arith.constant dense<0.000000e+00> : vector<1xf32>
    %687 = vector.multi_reduction <add>, %686, %cst_219 [1, 2] : vector<1x4x8xf32> to vector<1xf32>
    %688 = vector.shape_cast %687 : vector<1xf32> to vector<1x1x1xf32>
    %689 = vector.extract %688[0, 0, 0] : f32 from vector<1x1x1xf32>
    %690 = vector.broadcast %689 : f32 to vector<1x1xf32>
    %cst_220 = arith.constant 3.200000e+01 : f32
    %691 = vector.broadcast %cst_220 : f32 to vector<1x1xf32>
    %692 = arith.divf %690, %691 : vector<1x1xf32>
    %693 = arith.mulf %685, %685 : vector<4x8xf32>
    %694 = vector.shape_cast %693 : vector<4x8xf32> to vector<1x4x8xf32>
    %cst_221 = arith.constant dense<0.000000e+00> : vector<1xf32>
    %695 = vector.multi_reduction <add>, %694, %cst_221 [1, 2] : vector<1x4x8xf32> to vector<1xf32>
    %696 = vector.shape_cast %695 : vector<1xf32> to vector<1x1x1xf32>
    %697 = vector.extract %696[0, 0, 0] : f32 from vector<1x1x1xf32>
    %698 = vector.broadcast %697 : f32 to vector<1x1xf32>
    %cst_222 = arith.constant 3.200000e+01 : f32
    %699 = vector.broadcast %cst_222 : f32 to vector<1x1xf32>
    %700 = arith.divf %698, %699 : vector<1x1xf32>
    %701 = arith.mulf %692, %692 : vector<1x1xf32>
    %702 = arith.subf %700, %701 : vector<1x1xf32>
    %cst_223 = arith.constant 0.000000e+00 : f32
    %703 = vector.broadcast %cst_223 : f32 to vector<1x1xf32>
    %704 = arith.maximumf %702, %703 : vector<1x1xf32>
    %705 = vector.broadcast %692 : vector<1x1xf32> to vector<4x8xf32>
    %706 = arith.subf %685, %705 : vector<4x8xf32>
    %cst_224 = arith.constant 9.99999974E-6 : f32
    %707 = vector.broadcast %cst_224 : f32 to vector<1x1xf32>
    %708 = arith.addf %704, %707 : vector<1x1xf32>
    %709 = math.rsqrt %708 : vector<1x1xf32>
    %710 = vector.broadcast %709 : vector<1x1xf32> to vector<4x8xf32>
    %711 = arith.mulf %706, %710 : vector<4x8xf32>
    %cst_225 = arith.constant 2.000000e-01 : f32
    %712 = vector.broadcast %cst_225 : f32 to vector<4x8xf32>
    %713 = arith.mulf %712, %711 : vector<4x8xf32>
    %714 = arith.maximumf %711, %713 : vector<4x8xf32>
    %715 = arith.truncf %714 : vector<4x8xf32> to vector<4x8xbf16>
    %cst_226 = arith.constant dense<0.000000e+00> : vector<4x32xf32>
    %716 = tpu.matmul %715, %612, %cst_226 {dimension_numbers = #tpu.dot_dimension_numbers<[1], [0], [0], [1], [0, 0, 1, 1], [], []>} : vector<4x8xbf16>, vector<8x32xbf16>, vector<4x32xf32> -> vector<4x32xf32>
    %717 = arith.addf %716, %606 : vector<4x32xf32>
    %c1_227 = arith.constant 1 : index
    %c0_228 = arith.constant 0 : index
    %c0_229 = arith.constant 0 : index
    %718 = vector.load %arg8[%c1_227, %c0_228, %c0_229] : memref<2x32x8xbf16, #tpu.memory_space<vmem>>, vector<1x32x8xbf16>
    %719 = vector.shape_cast %718 : vector<1x32x8xbf16> to vector<32x8xbf16>
    %c1_230 = arith.constant 1 : index
    %c0_231 = arith.constant 0 : index
    %c0_232 = arith.constant 0 : index
    %720 = vector.load %arg9[%c1_230, %c0_231, %c0_232] : memref<2x8x24xbf16, #tpu.memory_space<vmem>>, vector<1x8x24xbf16>
    %721 = vector.shape_cast %720 : vector<1x8x24xbf16> to vector<8x24xbf16>
    %c1_233 = arith.constant 1 : index
    %c0_234 = arith.constant 0 : index
    %c0_235 = arith.constant 0 : index
    %722 = vector.load %arg10[%c1_233, %c0_234, %c0_235] : memref<2x8x32xbf16, #tpu.memory_space<vmem>>, vector<1x8x32xbf16>
    %723 = vector.shape_cast %722 : vector<1x8x32xbf16> to vector<8x32xbf16>
    %724 = vector.shape_cast %717 : vector<4x32xf32> to vector<1x4x32xf32>
    %cst_236 = arith.constant dense<0.000000e+00> : vector<1xf32>
    %725 = vector.multi_reduction <add>, %724, %cst_236 [1, 2] : vector<1x4x32xf32> to vector<1xf32>
    %726 = vector.shape_cast %725 : vector<1xf32> to vector<1x1x1xf32>
    %727 = vector.extract %726[0, 0, 0] : f32 from vector<1x1x1xf32>
    %728 = vector.broadcast %727 : f32 to vector<1x1xf32>
    %cst_237 = arith.constant 1.280000e+02 : f32
    %729 = vector.broadcast %cst_237 : f32 to vector<1x1xf32>
    %730 = arith.divf %728, %729 : vector<1x1xf32>
    %731 = arith.mulf %717, %717 : vector<4x32xf32>
    %732 = vector.shape_cast %731 : vector<4x32xf32> to vector<1x4x32xf32>
    %cst_238 = arith.constant dense<0.000000e+00> : vector<1xf32>
    %733 = vector.multi_reduction <add>, %732, %cst_238 [1, 2] : vector<1x4x32xf32> to vector<1xf32>
    %734 = vector.shape_cast %733 : vector<1xf32> to vector<1x1x1xf32>
    %735 = vector.extract %734[0, 0, 0] : f32 from vector<1x1x1xf32>
    %736 = vector.broadcast %735 : f32 to vector<1x1xf32>
    %cst_239 = arith.constant 1.280000e+02 : f32
    %737 = vector.broadcast %cst_239 : f32 to vector<1x1xf32>
    %738 = arith.divf %736, %737 : vector<1x1xf32>
    %739 = arith.mulf %730, %730 : vector<1x1xf32>
    %740 = arith.subf %738, %739 : vector<1x1xf32>
    %cst_240 = arith.constant 0.000000e+00 : f32
    %741 = vector.broadcast %cst_240 : f32 to vector<1x1xf32>
    %742 = arith.maximumf %740, %741 : vector<1x1xf32>
    %743 = vector.broadcast %730 : vector<1x1xf32> to vector<4x32xf32>
    %744 = arith.subf %717, %743 : vector<4x32xf32>
    %cst_241 = arith.constant 9.99999974E-6 : f32
    %745 = vector.broadcast %cst_241 : f32 to vector<1x1xf32>
    %746 = arith.addf %742, %745 : vector<1x1xf32>
    %747 = math.rsqrt %746 : vector<1x1xf32>
    %748 = vector.broadcast %747 : vector<1x1xf32> to vector<4x32xf32>
    %749 = arith.mulf %744, %748 : vector<4x32xf32>
    %cst_242 = arith.constant 2.000000e-01 : f32
    %750 = vector.broadcast %cst_242 : f32 to vector<4x32xf32>
    %751 = arith.mulf %750, %749 : vector<4x32xf32>
    %752 = arith.maximumf %749, %751 : vector<4x32xf32>
    %753 = arith.truncf %752 : vector<4x32xf32> to vector<4x32xbf16>
    %cst_243 = arith.constant dense<0.000000e+00> : vector<4x8xf32>
    %754 = tpu.matmul %753, %719, %cst_243 {dimension_numbers = #tpu.dot_dimension_numbers<[1], [0], [0], [1], [0, 0, 1, 1], [], []>} : vector<4x32xbf16>, vector<32x8xbf16>, vector<4x8xf32> -> vector<4x8xf32>
    %755 = vector.shape_cast %754 : vector<4x8xf32> to vector<1x4x8xf32>
    %cst_244 = arith.constant dense<0.000000e+00> : vector<1xf32>
    %756 = vector.multi_reduction <add>, %755, %cst_244 [1, 2] : vector<1x4x8xf32> to vector<1xf32>
    %757 = vector.shape_cast %756 : vector<1xf32> to vector<1x1x1xf32>
    %758 = vector.extract %757[0, 0, 0] : f32 from vector<1x1x1xf32>
    %759 = vector.broadcast %758 : f32 to vector<1x1xf32>
    %cst_245 = arith.constant 3.200000e+01 : f32
    %760 = vector.broadcast %cst_245 : f32 to vector<1x1xf32>
    %761 = arith.divf %759, %760 : vector<1x1xf32>
    %762 = arith.mulf %754, %754 : vector<4x8xf32>
    %763 = vector.shape_cast %762 : vector<4x8xf32> to vector<1x4x8xf32>
    %cst_246 = arith.constant dense<0.000000e+00> : vector<1xf32>
    %764 = vector.multi_reduction <add>, %763, %cst_246 [1, 2] : vector<1x4x8xf32> to vector<1xf32>
    %765 = vector.shape_cast %764 : vector<1xf32> to vector<1x1x1xf32>
    %766 = vector.extract %765[0, 0, 0] : f32 from vector<1x1x1xf32>
    %767 = vector.broadcast %766 : f32 to vector<1x1xf32>
    %cst_247 = arith.constant 3.200000e+01 : f32
    %768 = vector.broadcast %cst_247 : f32 to vector<1x1xf32>
    %769 = arith.divf %767, %768 : vector<1x1xf32>
    %770 = arith.mulf %761, %761 : vector<1x1xf32>
    %771 = arith.subf %769, %770 : vector<1x1xf32>
    %cst_248 = arith.constant 0.000000e+00 : f32
    %772 = vector.broadcast %cst_248 : f32 to vector<1x1xf32>
    %773 = arith.maximumf %771, %772 : vector<1x1xf32>
    %774 = vector.broadcast %761 : vector<1x1xf32> to vector<4x8xf32>
    %775 = arith.subf %754, %774 : vector<4x8xf32>
    %cst_249 = arith.constant 9.99999974E-6 : f32
    %776 = vector.broadcast %cst_249 : f32 to vector<1x1xf32>
    %777 = arith.addf %773, %776 : vector<1x1xf32>
    %778 = math.rsqrt %777 : vector<1x1xf32>
    %779 = vector.broadcast %778 : vector<1x1xf32> to vector<4x8xf32>
    %780 = arith.mulf %775, %779 : vector<4x8xf32>
    %cst_250 = arith.constant 2.000000e-01 : f32
    %781 = vector.broadcast %cst_250 : f32 to vector<4x8xf32>
    %782 = arith.mulf %781, %780 : vector<4x8xf32>
    %783 = arith.maximumf %780, %782 : vector<4x8xf32>
    %784 = arith.truncf %783 : vector<4x8xf32> to vector<4x8xbf16>
    %cst_251 = arith.constant dense<0.000000e+00> : vector<4x24xf32>
    %785 = tpu.matmul %784, %721, %cst_251 {dimension_numbers = #tpu.dot_dimension_numbers<[1], [0], [0], [1], [0, 0, 1, 1], [], []>} : vector<4x8xbf16>, vector<8x24xbf16>, vector<4x24xf32> -> vector<4x24xf32>
    %786 = vector.extract_strided_slice %785 {offsets = [0, 0], sizes = [4, 8], strides = [1, 1]} : vector<4x24xf32> to vector<4x8xf32>
    %787 = vector.extract_strided_slice %785 {offsets = [0, 8], sizes = [4, 8], strides = [1, 1]} : vector<4x24xf32> to vector<4x8xf32>
    %788 = vector.extract_strided_slice %785 {offsets = [0, 16], sizes = [4, 8], strides = [1, 1]} : vector<4x24xf32> to vector<4x8xf32>
    %789 = vector.extract_strided_slice %786 {offsets = [1, 0], sizes = [1, 8], strides = [1, 1]} : vector<4x8xf32> to vector<1x8xf32>
    %790 = vector.extract_strided_slice %786 {offsets = [0, 0], sizes = [3, 8], strides = [1, 1]} : vector<4x8xf32> to vector<3x8xf32>
    %791 = tpu.concatenate %789, %790 in 0 : vector<1x8xf32>, vector<3x8xf32> -> vector<4x8xf32>
    %792 = vector.extract_strided_slice %788 {offsets = [1, 0], sizes = [3, 8], strides = [1, 1]} : vector<4x8xf32> to vector<3x8xf32>
    %793 = vector.extract_strided_slice %788 {offsets = [2, 0], sizes = [1, 8], strides = [1, 1]} : vector<4x8xf32> to vector<1x8xf32>
    %794 = tpu.concatenate %792, %793 in 0 : vector<3x8xf32>, vector<1x8xf32> -> vector<4x8xf32>
    %795 = arith.addf %791, %787 : vector<4x8xf32>
    %796 = arith.addf %795, %794 : vector<4x8xf32>
    %797 = vector.shape_cast %796 : vector<4x8xf32> to vector<1x4x8xf32>
    %cst_252 = arith.constant dense<0.000000e+00> : vector<1xf32>
    %798 = vector.multi_reduction <add>, %797, %cst_252 [1, 2] : vector<1x4x8xf32> to vector<1xf32>
    %799 = vector.shape_cast %798 : vector<1xf32> to vector<1x1x1xf32>
    %800 = vector.extract %799[0, 0, 0] : f32 from vector<1x1x1xf32>
    %801 = vector.broadcast %800 : f32 to vector<1x1xf32>
    %cst_253 = arith.constant 3.200000e+01 : f32
    %802 = vector.broadcast %cst_253 : f32 to vector<1x1xf32>
    %803 = arith.divf %801, %802 : vector<1x1xf32>
    %804 = arith.mulf %796, %796 : vector<4x8xf32>
    %805 = vector.shape_cast %804 : vector<4x8xf32> to vector<1x4x8xf32>
    %cst_254 = arith.constant dense<0.000000e+00> : vector<1xf32>
    %806 = vector.multi_reduction <add>, %805, %cst_254 [1, 2] : vector<1x4x8xf32> to vector<1xf32>
    %807 = vector.shape_cast %806 : vector<1xf32> to vector<1x1x1xf32>
    %808 = vector.extract %807[0, 0, 0] : f32 from vector<1x1x1xf32>
    %809 = vector.broadcast %808 : f32 to vector<1x1xf32>
    %cst_255 = arith.constant 3.200000e+01 : f32
    %810 = vector.broadcast %cst_255 : f32 to vector<1x1xf32>
    %811 = arith.divf %809, %810 : vector<1x1xf32>
    %812 = arith.mulf %803, %803 : vector<1x1xf32>
    %813 = arith.subf %811, %812 : vector<1x1xf32>
    %cst_256 = arith.constant 0.000000e+00 : f32
    %814 = vector.broadcast %cst_256 : f32 to vector<1x1xf32>
    %815 = arith.maximumf %813, %814 : vector<1x1xf32>
    %816 = vector.broadcast %803 : vector<1x1xf32> to vector<4x8xf32>
    %817 = arith.subf %796, %816 : vector<4x8xf32>
    %cst_257 = arith.constant 9.99999974E-6 : f32
    %818 = vector.broadcast %cst_257 : f32 to vector<1x1xf32>
    %819 = arith.addf %815, %818 : vector<1x1xf32>
    %820 = math.rsqrt %819 : vector<1x1xf32>
    %821 = vector.broadcast %820 : vector<1x1xf32> to vector<4x8xf32>
    %822 = arith.mulf %817, %821 : vector<4x8xf32>
    %cst_258 = arith.constant 2.000000e-01 : f32
    %823 = vector.broadcast %cst_258 : f32 to vector<4x8xf32>
    %824 = arith.mulf %823, %822 : vector<4x8xf32>
    %825 = arith.maximumf %822, %824 : vector<4x8xf32>
    %826 = arith.truncf %825 : vector<4x8xf32> to vector<4x8xbf16>
    %cst_259 = arith.constant dense<0.000000e+00> : vector<4x32xf32>
    %827 = tpu.matmul %826, %723, %cst_259 {dimension_numbers = #tpu.dot_dimension_numbers<[1], [0], [0], [1], [0, 0, 1, 1], [], []>} : vector<4x8xbf16>, vector<8x32xbf16>, vector<4x32xf32> -> vector<4x32xf32>
    %828 = arith.addf %827, %717 : vector<4x32xf32>
    %c0_260 = arith.constant 0 : index
    %c0_261 = arith.constant 0 : index
    %829 = vector.load %arg15[%c0_260, %c0_261] : memref<8x4xbf16, #tpu.memory_space<vmem>>, vector<8x4xbf16>
    %c0_262 = arith.constant 0 : index
    %c0_263 = arith.constant 0 : index
    %830 = vector.load %arg16[%c0_262, %c0_263] : memref<32x64xbf16, #tpu.memory_space<vmem>>, vector<32x64xbf16>
    %831 = arith.truncf %828 : vector<4x32xf32> to vector<4x32xbf16>
    %cst_264 = arith.constant dense<0.000000e+00> : vector<4x64xf32>
    %832 = tpu.matmul %831, %830, %cst_264 {dimension_numbers = #tpu.dot_dimension_numbers<[1], [0], [0], [1], [0, 0, 1, 1], [], []>} : vector<4x32xbf16>, vector<32x64xbf16>, vector<4x64xf32> -> vector<4x64xf32>
    %833 = arith.truncf %832 : vector<4x64xf32> to vector<4x64xbf16>
    %cst_265 = arith.constant dense<0.000000e+00> : vector<8x64xf32>
    %834 = tpu.matmul %829, %833, %cst_265 {dimension_numbers = #tpu.dot_dimension_numbers<[1], [0], [0], [1], [0, 0, 1, 1], [], []>} : vector<8x4xbf16>, vector<4x64xbf16>, vector<8x64xf32> -> vector<8x64xf32>
    %835 = arith.addf %834, %470 : vector<8x64xf32>
    %836 = arith.addf %835, %581 : vector<8x64xf32>
    %c2_266 = arith.constant 2 : index
    %c0_267 = arith.constant 0 : index
    %c0_268 = arith.constant 0 : index
    %837 = vector.load %arg5[%c2_266, %c0_267, %c0_268] : memref<3x64x16xbf16, #tpu.memory_space<vmem>>, vector<1x64x16xbf16>
    %838 = vector.shape_cast %837 : vector<1x64x16xbf16> to vector<64x16xbf16>
    %c2_269 = arith.constant 2 : index
    %c0_270 = arith.constant 0 : index
    %c0_271 = arith.constant 0 : index
    %839 = vector.load %arg6[%c2_269, %c0_270, %c0_271] : memref<3x16x48xbf16, #tpu.memory_space<vmem>>, vector<1x16x48xbf16>
    %840 = vector.shape_cast %839 : vector<1x16x48xbf16> to vector<16x48xbf16>
    %c2_272 = arith.constant 2 : index
    %c0_273 = arith.constant 0 : index
    %c0_274 = arith.constant 0 : index
    %841 = vector.load %arg7[%c2_272, %c0_273, %c0_274] : memref<3x16x64xbf16, #tpu.memory_space<vmem>>, vector<1x16x64xbf16>
    %842 = vector.shape_cast %841 : vector<1x16x64xbf16> to vector<16x64xbf16>
    %843 = vector.shape_cast %836 : vector<8x64xf32> to vector<1x8x64xf32>
    %cst_275 = arith.constant dense<0.000000e+00> : vector<1xf32>
    %844 = vector.multi_reduction <add>, %843, %cst_275 [1, 2] : vector<1x8x64xf32> to vector<1xf32>
    %845 = vector.shape_cast %844 : vector<1xf32> to vector<1x1x1xf32>
    %846 = vector.extract %845[0, 0, 0] : f32 from vector<1x1x1xf32>
    %847 = vector.broadcast %846 : f32 to vector<1x1xf32>
    %cst_276 = arith.constant 5.120000e+02 : f32
    %848 = vector.broadcast %cst_276 : f32 to vector<1x1xf32>
    %849 = arith.divf %847, %848 : vector<1x1xf32>
    %850 = arith.mulf %836, %836 : vector<8x64xf32>
    %851 = vector.shape_cast %850 : vector<8x64xf32> to vector<1x8x64xf32>
    %cst_277 = arith.constant dense<0.000000e+00> : vector<1xf32>
    %852 = vector.multi_reduction <add>, %851, %cst_277 [1, 2] : vector<1x8x64xf32> to vector<1xf32>
    %853 = vector.shape_cast %852 : vector<1xf32> to vector<1x1x1xf32>
    %854 = vector.extract %853[0, 0, 0] : f32 from vector<1x1x1xf32>
    %855 = vector.broadcast %854 : f32 to vector<1x1xf32>
    %cst_278 = arith.constant 5.120000e+02 : f32
    %856 = vector.broadcast %cst_278 : f32 to vector<1x1xf32>
    %857 = arith.divf %855, %856 : vector<1x1xf32>
    %858 = arith.mulf %849, %849 : vector<1x1xf32>
    %859 = arith.subf %857, %858 : vector<1x1xf32>
    %cst_279 = arith.constant 0.000000e+00 : f32
    %860 = vector.broadcast %cst_279 : f32 to vector<1x1xf32>
    %861 = arith.maximumf %859, %860 : vector<1x1xf32>
    %862 = vector.broadcast %849 : vector<1x1xf32> to vector<8x64xf32>
    %863 = arith.subf %836, %862 : vector<8x64xf32>
    %cst_280 = arith.constant 9.99999974E-6 : f32
    %864 = vector.broadcast %cst_280 : f32 to vector<1x1xf32>
    %865 = arith.addf %861, %864 : vector<1x1xf32>
    %866 = math.rsqrt %865 : vector<1x1xf32>
    %867 = vector.broadcast %866 : vector<1x1xf32> to vector<8x64xf32>
    %868 = arith.mulf %863, %867 : vector<8x64xf32>
    %cst_281 = arith.constant 2.000000e-01 : f32
    %869 = vector.broadcast %cst_281 : f32 to vector<8x64xf32>
    %870 = arith.mulf %869, %868 : vector<8x64xf32>
    %871 = arith.maximumf %868, %870 : vector<8x64xf32>
    %872 = arith.truncf %871 : vector<8x64xf32> to vector<8x64xbf16>
    %cst_282 = arith.constant dense<0.000000e+00> : vector<8x16xf32>
    %873 = tpu.matmul %872, %838, %cst_282 {dimension_numbers = #tpu.dot_dimension_numbers<[1], [0], [0], [1], [0, 0, 1, 1], [], []>} : vector<8x64xbf16>, vector<64x16xbf16>, vector<8x16xf32> -> vector<8x16xf32>
    %874 = vector.shape_cast %873 : vector<8x16xf32> to vector<1x8x16xf32>
    %cst_283 = arith.constant dense<0.000000e+00> : vector<1xf32>
    %875 = vector.multi_reduction <add>, %874, %cst_283 [1, 2] : vector<1x8x16xf32> to vector<1xf32>
    %876 = vector.shape_cast %875 : vector<1xf32> to vector<1x1x1xf32>
    %877 = vector.extract %876[0, 0, 0] : f32 from vector<1x1x1xf32>
    %878 = vector.broadcast %877 : f32 to vector<1x1xf32>
    %cst_284 = arith.constant 1.280000e+02 : f32
    %879 = vector.broadcast %cst_284 : f32 to vector<1x1xf32>
    %880 = arith.divf %878, %879 : vector<1x1xf32>
    %881 = arith.mulf %873, %873 : vector<8x16xf32>
    %882 = vector.shape_cast %881 : vector<8x16xf32> to vector<1x8x16xf32>
    %cst_285 = arith.constant dense<0.000000e+00> : vector<1xf32>
    %883 = vector.multi_reduction <add>, %882, %cst_285 [1, 2] : vector<1x8x16xf32> to vector<1xf32>
    %884 = vector.shape_cast %883 : vector<1xf32> to vector<1x1x1xf32>
    %885 = vector.extract %884[0, 0, 0] : f32 from vector<1x1x1xf32>
    %886 = vector.broadcast %885 : f32 to vector<1x1xf32>
    %cst_286 = arith.constant 1.280000e+02 : f32
    %887 = vector.broadcast %cst_286 : f32 to vector<1x1xf32>
    %888 = arith.divf %886, %887 : vector<1x1xf32>
    %889 = arith.mulf %880, %880 : vector<1x1xf32>
    %890 = arith.subf %888, %889 : vector<1x1xf32>
    %cst_287 = arith.constant 0.000000e+00 : f32
    %891 = vector.broadcast %cst_287 : f32 to vector<1x1xf32>
    %892 = arith.maximumf %890, %891 : vector<1x1xf32>
    %893 = vector.broadcast %880 : vector<1x1xf32> to vector<8x16xf32>
    %894 = arith.subf %873, %893 : vector<8x16xf32>
    %cst_288 = arith.constant 9.99999974E-6 : f32
    %895 = vector.broadcast %cst_288 : f32 to vector<1x1xf32>
    %896 = arith.addf %892, %895 : vector<1x1xf32>
    %897 = math.rsqrt %896 : vector<1x1xf32>
    %898 = vector.broadcast %897 : vector<1x1xf32> to vector<8x16xf32>
    %899 = arith.mulf %894, %898 : vector<8x16xf32>
    %cst_289 = arith.constant 2.000000e-01 : f32
    %900 = vector.broadcast %cst_289 : f32 to vector<8x16xf32>
    %901 = arith.mulf %900, %899 : vector<8x16xf32>
    %902 = arith.maximumf %899, %901 : vector<8x16xf32>
    %903 = arith.truncf %902 : vector<8x16xf32> to vector<8x16xbf16>
    %cst_290 = arith.constant dense<0.000000e+00> : vector<8x48xf32>
    %904 = tpu.matmul %903, %840, %cst_290 {dimension_numbers = #tpu.dot_dimension_numbers<[1], [0], [0], [1], [0, 0, 1, 1], [], []>} : vector<8x16xbf16>, vector<16x48xbf16>, vector<8x48xf32> -> vector<8x48xf32>
    %905 = vector.extract_strided_slice %904 {offsets = [0, 0], sizes = [8, 16], strides = [1, 1]} : vector<8x48xf32> to vector<8x16xf32>
    %906 = vector.extract_strided_slice %904 {offsets = [0, 16], sizes = [8, 16], strides = [1, 1]} : vector<8x48xf32> to vector<8x16xf32>
    %907 = vector.extract_strided_slice %904 {offsets = [0, 32], sizes = [8, 16], strides = [1, 1]} : vector<8x48xf32> to vector<8x16xf32>
    %908 = vector.extract_strided_slice %905 {offsets = [1, 0], sizes = [1, 16], strides = [1, 1]} : vector<8x16xf32> to vector<1x16xf32>
    %909 = vector.extract_strided_slice %905 {offsets = [0, 0], sizes = [7, 16], strides = [1, 1]} : vector<8x16xf32> to vector<7x16xf32>
    %910 = tpu.concatenate %908, %909 in 0 : vector<1x16xf32>, vector<7x16xf32> -> vector<8x16xf32>
    %911 = vector.extract_strided_slice %907 {offsets = [1, 0], sizes = [7, 16], strides = [1, 1]} : vector<8x16xf32> to vector<7x16xf32>
    %912 = vector.extract_strided_slice %907 {offsets = [6, 0], sizes = [1, 16], strides = [1, 1]} : vector<8x16xf32> to vector<1x16xf32>
    %913 = tpu.concatenate %911, %912 in 0 : vector<7x16xf32>, vector<1x16xf32> -> vector<8x16xf32>
    %914 = arith.addf %910, %906 : vector<8x16xf32>
    %915 = arith.addf %914, %913 : vector<8x16xf32>
    %916 = vector.shape_cast %915 : vector<8x16xf32> to vector<1x8x16xf32>
    %cst_291 = arith.constant dense<0.000000e+00> : vector<1xf32>
    %917 = vector.multi_reduction <add>, %916, %cst_291 [1, 2] : vector<1x8x16xf32> to vector<1xf32>
    %918 = vector.shape_cast %917 : vector<1xf32> to vector<1x1x1xf32>
    %919 = vector.extract %918[0, 0, 0] : f32 from vector<1x1x1xf32>
    %920 = vector.broadcast %919 : f32 to vector<1x1xf32>
    %cst_292 = arith.constant 1.280000e+02 : f32
    %921 = vector.broadcast %cst_292 : f32 to vector<1x1xf32>
    %922 = arith.divf %920, %921 : vector<1x1xf32>
    %923 = arith.mulf %915, %915 : vector<8x16xf32>
    %924 = vector.shape_cast %923 : vector<8x16xf32> to vector<1x8x16xf32>
    %cst_293 = arith.constant dense<0.000000e+00> : vector<1xf32>
    %925 = vector.multi_reduction <add>, %924, %cst_293 [1, 2] : vector<1x8x16xf32> to vector<1xf32>
    %926 = vector.shape_cast %925 : vector<1xf32> to vector<1x1x1xf32>
    %927 = vector.extract %926[0, 0, 0] : f32 from vector<1x1x1xf32>
    %928 = vector.broadcast %927 : f32 to vector<1x1xf32>
    %cst_294 = arith.constant 1.280000e+02 : f32
    %929 = vector.broadcast %cst_294 : f32 to vector<1x1xf32>
    %930 = arith.divf %928, %929 : vector<1x1xf32>
    %931 = arith.mulf %922, %922 : vector<1x1xf32>
    %932 = arith.subf %930, %931 : vector<1x1xf32>
    %cst_295 = arith.constant 0.000000e+00 : f32
    %933 = vector.broadcast %cst_295 : f32 to vector<1x1xf32>
    %934 = arith.maximumf %932, %933 : vector<1x1xf32>
    %935 = vector.broadcast %922 : vector<1x1xf32> to vector<8x16xf32>
    %936 = arith.subf %915, %935 : vector<8x16xf32>
    %cst_296 = arith.constant 9.99999974E-6 : f32
    %937 = vector.broadcast %cst_296 : f32 to vector<1x1xf32>
    %938 = arith.addf %934, %937 : vector<1x1xf32>
    %939 = math.rsqrt %938 : vector<1x1xf32>
    %940 = vector.broadcast %939 : vector<1x1xf32> to vector<8x16xf32>
    %941 = arith.mulf %936, %940 : vector<8x16xf32>
    %cst_297 = arith.constant 2.000000e-01 : f32
    %942 = vector.broadcast %cst_297 : f32 to vector<8x16xf32>
    %943 = arith.mulf %942, %941 : vector<8x16xf32>
    %944 = arith.maximumf %941, %943 : vector<8x16xf32>
    %945 = arith.truncf %944 : vector<8x16xf32> to vector<8x16xbf16>
    %cst_298 = arith.constant dense<0.000000e+00> : vector<8x64xf32>
    %946 = tpu.matmul %945, %842, %cst_298 {dimension_numbers = #tpu.dot_dimension_numbers<[1], [0], [0], [1], [0, 0, 1, 1], [], []>} : vector<8x16xbf16>, vector<16x64xbf16>, vector<8x64xf32> -> vector<8x64xf32>
    %947 = arith.addf %946, %836 : vector<8x64xf32>
    %c0_299 = arith.constant 0 : index
    %c0_300 = arith.constant 0 : index
    %948 = vector.load %arg17[%c0_299, %c0_300] : memref<16x8xbf16, #tpu.memory_space<vmem>>, vector<16x8xbf16>
    %c0_301 = arith.constant 0 : index
    %c0_302 = arith.constant 0 : index
    %949 = vector.load %arg18[%c0_301, %c0_302] : memref<64x128xbf16, #tpu.memory_space<vmem>>, vector<64x128xbf16>
    %950 = arith.truncf %947 : vector<8x64xf32> to vector<8x64xbf16>
    %cst_303 = arith.constant dense<0.000000e+00> : vector<8x128xf32>
    %951 = tpu.matmul %950, %949, %cst_303 {dimension_numbers = #tpu.dot_dimension_numbers<[1], [0], [0], [1], [0, 0, 1, 1], [], []>} : vector<8x64xbf16>, vector<64x128xbf16>, vector<8x128xf32> -> vector<8x128xf32>
    %952 = arith.truncf %951 : vector<8x128xf32> to vector<8x128xbf16>
    %cst_304 = arith.constant dense<0.000000e+00> : vector<16x128xf32>
    %953 = tpu.matmul %948, %952, %cst_304 {dimension_numbers = #tpu.dot_dimension_numbers<[1], [0], [0], [1], [0, 0, 1, 1], [], []>} : vector<16x8xbf16>, vector<8x128xbf16>, vector<16x128xf32> -> vector<16x128xf32>
    %954 = arith.addf %953, %334 : vector<16x128xf32>
    %955 = vector.shape_cast %954 : vector<16x128xf32> to vector<1x16x128xf32>
    %cst_305 = arith.constant dense<0.000000e+00> : vector<1xf32>
    %956 = vector.multi_reduction <add>, %955, %cst_305 [1, 2] : vector<1x16x128xf32> to vector<1xf32>
    %957 = vector.shape_cast %956 : vector<1xf32> to vector<1x1x1xf32>
    %958 = vector.extract %957[0, 0, 0] : f32 from vector<1x1x1xf32>
    %959 = vector.broadcast %958 : f32 to vector<1x1xf32>
    %cst_306 = arith.constant 2.048000e+03 : f32
    %960 = vector.broadcast %cst_306 : f32 to vector<1x1xf32>
    %961 = arith.divf %959, %960 : vector<1x1xf32>
    %962 = arith.mulf %954, %954 : vector<16x128xf32>
    %963 = vector.shape_cast %962 : vector<16x128xf32> to vector<1x16x128xf32>
    %cst_307 = arith.constant dense<0.000000e+00> : vector<1xf32>
    %964 = vector.multi_reduction <add>, %963, %cst_307 [1, 2] : vector<1x16x128xf32> to vector<1xf32>
    %965 = vector.shape_cast %964 : vector<1xf32> to vector<1x1x1xf32>
    %966 = vector.extract %965[0, 0, 0] : f32 from vector<1x1x1xf32>
    %967 = vector.broadcast %966 : f32 to vector<1x1xf32>
    %cst_308 = arith.constant 2.048000e+03 : f32
    %968 = vector.broadcast %cst_308 : f32 to vector<1x1xf32>
    %969 = arith.divf %967, %968 : vector<1x1xf32>
    %970 = arith.mulf %961, %961 : vector<1x1xf32>
    %971 = arith.subf %969, %970 : vector<1x1xf32>
    %cst_309 = arith.constant 0.000000e+00 : f32
    %972 = vector.broadcast %cst_309 : f32 to vector<1x1xf32>
    %973 = arith.maximumf %971, %972 : vector<1x1xf32>
    %974 = vector.broadcast %961 : vector<1x1xf32> to vector<16x128xf32>
    %975 = arith.subf %954, %974 : vector<16x128xf32>
    %cst_310 = arith.constant 9.99999974E-6 : f32
    %976 = vector.broadcast %cst_310 : f32 to vector<1x1xf32>
    %977 = arith.addf %973, %976 : vector<1x1xf32>
    %978 = math.rsqrt %977 : vector<1x1xf32>
    %979 = vector.broadcast %978 : vector<1x1xf32> to vector<16x128xf32>
    %980 = arith.mulf %975, %979 : vector<16x128xf32>
    %cst_311 = arith.constant 2.000000e-01 : f32
    %981 = vector.broadcast %cst_311 : f32 to vector<16x128xf32>
    %982 = arith.mulf %981, %980 : vector<16x128xf32>
    %983 = arith.maximumf %980, %982 : vector<16x128xf32>
    %c0_312 = arith.constant 0 : index
    %c0_313 = arith.constant 0 : index
    %984 = vector.load %arg19[%c0_312, %c0_313] : memref<128x128xbf16, #tpu.memory_space<vmem>>, vector<128x128xbf16>
    %985 = arith.truncf %983 : vector<16x128xf32> to vector<16x128xbf16>
    %cst_314 = arith.constant dense<0.000000e+00> : vector<16x128xf32>
    %986 = tpu.matmul %985, %984, %cst_314 {dimension_numbers = #tpu.dot_dimension_numbers<[1], [0], [0], [1], [0, 0, 1, 1], [], []>} : vector<16x128xbf16>, vector<128x128xbf16>, vector<16x128xf32> -> vector<16x128xf32>
    %987 = vector.shape_cast %986 : vector<16x128xf32> to vector<1x16x128xf32>
    %cst_315 = arith.constant dense<0.000000e+00> : vector<1xf32>
    %988 = vector.multi_reduction <add>, %987, %cst_315 [1, 2] : vector<1x16x128xf32> to vector<1xf32>
    %989 = vector.shape_cast %988 : vector<1xf32> to vector<1x1x1xf32>
    %990 = vector.extract %989[0, 0, 0] : f32 from vector<1x1x1xf32>
    %991 = vector.broadcast %990 : f32 to vector<1x1xf32>
    %cst_316 = arith.constant 2.048000e+03 : f32
    %992 = vector.broadcast %cst_316 : f32 to vector<1x1xf32>
    %993 = arith.divf %991, %992 : vector<1x1xf32>
    %994 = arith.mulf %986, %986 : vector<16x128xf32>
    %995 = vector.shape_cast %994 : vector<16x128xf32> to vector<1x16x128xf32>
    %cst_317 = arith.constant dense<0.000000e+00> : vector<1xf32>
    %996 = vector.multi_reduction <add>, %995, %cst_317 [1, 2] : vector<1x16x128xf32> to vector<1xf32>
    %997 = vector.shape_cast %996 : vector<1xf32> to vector<1x1x1xf32>
    %998 = vector.extract %997[0, 0, 0] : f32 from vector<1x1x1xf32>
    %999 = vector.broadcast %998 : f32 to vector<1x1xf32>
    %cst_318 = arith.constant 2.048000e+03 : f32
    %1000 = vector.broadcast %cst_318 : f32 to vector<1x1xf32>
    %1001 = arith.divf %999, %1000 : vector<1x1xf32>
    %1002 = arith.mulf %993, %993 : vector<1x1xf32>
    %1003 = arith.subf %1001, %1002 : vector<1x1xf32>
    %cst_319 = arith.constant 0.000000e+00 : f32
    %1004 = vector.broadcast %cst_319 : f32 to vector<1x1xf32>
    %1005 = arith.maximumf %1003, %1004 : vector<1x1xf32>
    %1006 = vector.broadcast %993 : vector<1x1xf32> to vector<16x128xf32>
    %1007 = arith.subf %986, %1006 : vector<16x128xf32>
    %cst_320 = arith.constant 9.99999974E-6 : f32
    %1008 = vector.broadcast %cst_320 : f32 to vector<1x1xf32>
    %1009 = arith.addf %1005, %1008 : vector<1x1xf32>
    %1010 = math.rsqrt %1009 : vector<1x1xf32>
    %1011 = vector.broadcast %1010 : vector<1x1xf32> to vector<16x128xf32>
    %1012 = arith.mulf %1007, %1011 : vector<16x128xf32>
    %cst_321 = arith.constant 2.000000e-01 : f32
    %1013 = vector.broadcast %cst_321 : f32 to vector<16x128xf32>
    %1014 = arith.mulf %1013, %1012 : vector<16x128xf32>
    %1015 = arith.maximumf %1012, %1014 : vector<16x128xf32>
    %c0_322 = arith.constant 0 : index
    %c0_323 = arith.constant 0 : index
    %1016 = vector.load %arg20[%c0_322, %c0_323] : memref<128x128xbf16, #tpu.memory_space<vmem>>, vector<128x128xbf16>
    %1017 = arith.truncf %1015 : vector<16x128xf32> to vector<16x128xbf16>
    %cst_324 = arith.constant dense<0.000000e+00> : vector<16x128xf32>
    %1018 = tpu.matmul %1017, %1016, %cst_324 {dimension_numbers = #tpu.dot_dimension_numbers<[1], [0], [0], [1], [0, 0, 1, 1], [], []>} : vector<16x128xbf16>, vector<128x128xbf16>, vector<16x128xf32> -> vector<16x128xf32>
    %cst_325 = arith.constant 0.000000e+00 : f32
    %1019 = vector.broadcast %cst_325 : f32 to vector<16x128xf32>
    %1020 = arith.subf %1019, %1018 : vector<16x128xf32>
    %1021 = math.exp %1020 : vector<16x128xf32>
    %cst_326 = arith.constant 1.000000e+00 : f32
    %1022 = vector.broadcast %cst_326 : f32 to vector<16x128xf32>
    %1023 = arith.addf %1022, %1021 : vector<16x128xf32>
    %cst_327 = arith.constant 1.000000e+00 : f32
    %1024 = vector.broadcast %cst_327 : f32 to vector<16x128xf32>
    %1025 = arith.divf %1024, %1023 : vector<16x128xf32>
    %1026 = arith.mulf %334, %1025 : vector<16x128xf32>
    %1027 = arith.addf %334, %1026 : vector<16x128xf32>
    %c3 = arith.constant 3 : index
    %c0_328 = arith.constant 0 : index
    %c0_329 = arith.constant 0 : index
    %1028 = vector.load %arg2[%c3, %c0_328, %c0_329] : memref<4x128x32xbf16, #tpu.memory_space<vmem>>, vector<1x128x32xbf16>
    %1029 = vector.shape_cast %1028 : vector<1x128x32xbf16> to vector<128x32xbf16>
    %c3_330 = arith.constant 3 : index
    %c0_331 = arith.constant 0 : index
    %c0_332 = arith.constant 0 : index
    %1030 = vector.load %arg3[%c3_330, %c0_331, %c0_332] : memref<4x32x96xbf16, #tpu.memory_space<vmem>>, vector<1x32x96xbf16>
    %1031 = vector.shape_cast %1030 : vector<1x32x96xbf16> to vector<32x96xbf16>
    %c3_333 = arith.constant 3 : index
    %c0_334 = arith.constant 0 : index
    %c0_335 = arith.constant 0 : index
    %1032 = vector.load %arg4[%c3_333, %c0_334, %c0_335] : memref<4x32x128xbf16, #tpu.memory_space<vmem>>, vector<1x32x128xbf16>
    %1033 = vector.shape_cast %1032 : vector<1x32x128xbf16> to vector<32x128xbf16>
    %1034 = vector.shape_cast %1027 : vector<16x128xf32> to vector<1x16x128xf32>
    %cst_336 = arith.constant dense<0.000000e+00> : vector<1xf32>
    %1035 = vector.multi_reduction <add>, %1034, %cst_336 [1, 2] : vector<1x16x128xf32> to vector<1xf32>
    %1036 = vector.shape_cast %1035 : vector<1xf32> to vector<1x1x1xf32>
    %1037 = vector.extract %1036[0, 0, 0] : f32 from vector<1x1x1xf32>
    %1038 = vector.broadcast %1037 : f32 to vector<1x1xf32>
    %cst_337 = arith.constant 2.048000e+03 : f32
    %1039 = vector.broadcast %cst_337 : f32 to vector<1x1xf32>
    %1040 = arith.divf %1038, %1039 : vector<1x1xf32>
    %1041 = arith.mulf %1027, %1027 : vector<16x128xf32>
    %1042 = vector.shape_cast %1041 : vector<16x128xf32> to vector<1x16x128xf32>
    %cst_338 = arith.constant dense<0.000000e+00> : vector<1xf32>
    %1043 = vector.multi_reduction <add>, %1042, %cst_338 [1, 2] : vector<1x16x128xf32> to vector<1xf32>
    %1044 = vector.shape_cast %1043 : vector<1xf32> to vector<1x1x1xf32>
    %1045 = vector.extract %1044[0, 0, 0] : f32 from vector<1x1x1xf32>
    %1046 = vector.broadcast %1045 : f32 to vector<1x1xf32>
    %cst_339 = arith.constant 2.048000e+03 : f32
    %1047 = vector.broadcast %cst_339 : f32 to vector<1x1xf32>
    %1048 = arith.divf %1046, %1047 : vector<1x1xf32>
    %1049 = arith.mulf %1040, %1040 : vector<1x1xf32>
    %1050 = arith.subf %1048, %1049 : vector<1x1xf32>
    %cst_340 = arith.constant 0.000000e+00 : f32
    %1051 = vector.broadcast %cst_340 : f32 to vector<1x1xf32>
    %1052 = arith.maximumf %1050, %1051 : vector<1x1xf32>
    %1053 = vector.broadcast %1040 : vector<1x1xf32> to vector<16x128xf32>
    %1054 = arith.subf %1027, %1053 : vector<16x128xf32>
    %cst_341 = arith.constant 9.99999974E-6 : f32
    %1055 = vector.broadcast %cst_341 : f32 to vector<1x1xf32>
    %1056 = arith.addf %1052, %1055 : vector<1x1xf32>
    %1057 = math.rsqrt %1056 : vector<1x1xf32>
    %1058 = vector.broadcast %1057 : vector<1x1xf32> to vector<16x128xf32>
    %1059 = arith.mulf %1054, %1058 : vector<16x128xf32>
    %cst_342 = arith.constant 2.000000e-01 : f32
    %1060 = vector.broadcast %cst_342 : f32 to vector<16x128xf32>
    %1061 = arith.mulf %1060, %1059 : vector<16x128xf32>
    %1062 = arith.maximumf %1059, %1061 : vector<16x128xf32>
    %1063 = arith.truncf %1062 : vector<16x128xf32> to vector<16x128xbf16>
    %cst_343 = arith.constant dense<0.000000e+00> : vector<16x32xf32>
    %1064 = tpu.matmul %1063, %1029, %cst_343 {dimension_numbers = #tpu.dot_dimension_numbers<[1], [0], [0], [1], [0, 0, 1, 1], [], []>} : vector<16x128xbf16>, vector<128x32xbf16>, vector<16x32xf32> -> vector<16x32xf32>
    %1065 = vector.shape_cast %1064 : vector<16x32xf32> to vector<1x16x32xf32>
    %cst_344 = arith.constant dense<0.000000e+00> : vector<1xf32>
    %1066 = vector.multi_reduction <add>, %1065, %cst_344 [1, 2] : vector<1x16x32xf32> to vector<1xf32>
    %1067 = vector.shape_cast %1066 : vector<1xf32> to vector<1x1x1xf32>
    %1068 = vector.extract %1067[0, 0, 0] : f32 from vector<1x1x1xf32>
    %1069 = vector.broadcast %1068 : f32 to vector<1x1xf32>
    %cst_345 = arith.constant 5.120000e+02 : f32
    %1070 = vector.broadcast %cst_345 : f32 to vector<1x1xf32>
    %1071 = arith.divf %1069, %1070 : vector<1x1xf32>
    %1072 = arith.mulf %1064, %1064 : vector<16x32xf32>
    %1073 = vector.shape_cast %1072 : vector<16x32xf32> to vector<1x16x32xf32>
    %cst_346 = arith.constant dense<0.000000e+00> : vector<1xf32>
    %1074 = vector.multi_reduction <add>, %1073, %cst_346 [1, 2] : vector<1x16x32xf32> to vector<1xf32>
    %1075 = vector.shape_cast %1074 : vector<1xf32> to vector<1x1x1xf32>
    %1076 = vector.extract %1075[0, 0, 0] : f32 from vector<1x1x1xf32>
    %1077 = vector.broadcast %1076 : f32 to vector<1x1xf32>
    %cst_347 = arith.constant 5.120000e+02 : f32
    %1078 = vector.broadcast %cst_347 : f32 to vector<1x1xf32>
    %1079 = arith.divf %1077, %1078 : vector<1x1xf32>
    %1080 = arith.mulf %1071, %1071 : vector<1x1xf32>
    %1081 = arith.subf %1079, %1080 : vector<1x1xf32>
    %cst_348 = arith.constant 0.000000e+00 : f32
    %1082 = vector.broadcast %cst_348 : f32 to vector<1x1xf32>
    %1083 = arith.maximumf %1081, %1082 : vector<1x1xf32>
    %1084 = vector.broadcast %1071 : vector<1x1xf32> to vector<16x32xf32>
    %1085 = arith.subf %1064, %1084 : vector<16x32xf32>
    %cst_349 = arith.constant 9.99999974E-6 : f32
    %1086 = vector.broadcast %cst_349 : f32 to vector<1x1xf32>
    %1087 = arith.addf %1083, %1086 : vector<1x1xf32>
    %1088 = math.rsqrt %1087 : vector<1x1xf32>
    %1089 = vector.broadcast %1088 : vector<1x1xf32> to vector<16x32xf32>
    %1090 = arith.mulf %1085, %1089 : vector<16x32xf32>
    %cst_350 = arith.constant 2.000000e-01 : f32
    %1091 = vector.broadcast %cst_350 : f32 to vector<16x32xf32>
    %1092 = arith.mulf %1091, %1090 : vector<16x32xf32>
    %1093 = arith.maximumf %1090, %1092 : vector<16x32xf32>
    %1094 = arith.truncf %1093 : vector<16x32xf32> to vector<16x32xbf16>
    %cst_351 = arith.constant dense<0.000000e+00> : vector<16x96xf32>
    %1095 = tpu.matmul %1094, %1031, %cst_351 {dimension_numbers = #tpu.dot_dimension_numbers<[1], [0], [0], [1], [0, 0, 1, 1], [], []>} : vector<16x32xbf16>, vector<32x96xbf16>, vector<16x96xf32> -> vector<16x96xf32>
    %1096 = vector.extract_strided_slice %1095 {offsets = [0, 0], sizes = [16, 32], strides = [1, 1]} : vector<16x96xf32> to vector<16x32xf32>
    %1097 = vector.extract_strided_slice %1095 {offsets = [0, 32], sizes = [16, 32], strides = [1, 1]} : vector<16x96xf32> to vector<16x32xf32>
    %1098 = vector.extract_strided_slice %1095 {offsets = [0, 64], sizes = [16, 32], strides = [1, 1]} : vector<16x96xf32> to vector<16x32xf32>
    %1099 = vector.extract_strided_slice %1096 {offsets = [1, 0], sizes = [1, 32], strides = [1, 1]} : vector<16x32xf32> to vector<1x32xf32>
    %1100 = vector.extract_strided_slice %1096 {offsets = [0, 0], sizes = [15, 32], strides = [1, 1]} : vector<16x32xf32> to vector<15x32xf32>
    %1101 = tpu.concatenate %1099, %1100 in 0 : vector<1x32xf32>, vector<15x32xf32> -> vector<16x32xf32>
    %1102 = vector.extract_strided_slice %1098 {offsets = [1, 0], sizes = [15, 32], strides = [1, 1]} : vector<16x32xf32> to vector<15x32xf32>
    %1103 = vector.extract_strided_slice %1098 {offsets = [14, 0], sizes = [1, 32], strides = [1, 1]} : vector<16x32xf32> to vector<1x32xf32>
    %1104 = tpu.concatenate %1102, %1103 in 0 : vector<15x32xf32>, vector<1x32xf32> -> vector<16x32xf32>
    %1105 = arith.addf %1101, %1097 : vector<16x32xf32>
    %1106 = arith.addf %1105, %1104 : vector<16x32xf32>
    %1107 = vector.shape_cast %1106 : vector<16x32xf32> to vector<1x16x32xf32>
    %cst_352 = arith.constant dense<0.000000e+00> : vector<1xf32>
    %1108 = vector.multi_reduction <add>, %1107, %cst_352 [1, 2] : vector<1x16x32xf32> to vector<1xf32>
    %1109 = vector.shape_cast %1108 : vector<1xf32> to vector<1x1x1xf32>
    %1110 = vector.extract %1109[0, 0, 0] : f32 from vector<1x1x1xf32>
    %1111 = vector.broadcast %1110 : f32 to vector<1x1xf32>
    %cst_353 = arith.constant 5.120000e+02 : f32
    %1112 = vector.broadcast %cst_353 : f32 to vector<1x1xf32>
    %1113 = arith.divf %1111, %1112 : vector<1x1xf32>
    %1114 = arith.mulf %1106, %1106 : vector<16x32xf32>
    %1115 = vector.shape_cast %1114 : vector<16x32xf32> to vector<1x16x32xf32>
    %cst_354 = arith.constant dense<0.000000e+00> : vector<1xf32>
    %1116 = vector.multi_reduction <add>, %1115, %cst_354 [1, 2] : vector<1x16x32xf32> to vector<1xf32>
    %1117 = vector.shape_cast %1116 : vector<1xf32> to vector<1x1x1xf32>
    %1118 = vector.extract %1117[0, 0, 0] : f32 from vector<1x1x1xf32>
    %1119 = vector.broadcast %1118 : f32 to vector<1x1xf32>
    %cst_355 = arith.constant 5.120000e+02 : f32
    %1120 = vector.broadcast %cst_355 : f32 to vector<1x1xf32>
    %1121 = arith.divf %1119, %1120 : vector<1x1xf32>
    %1122 = arith.mulf %1113, %1113 : vector<1x1xf32>
    %1123 = arith.subf %1121, %1122 : vector<1x1xf32>
    %cst_356 = arith.constant 0.000000e+00 : f32
    %1124 = vector.broadcast %cst_356 : f32 to vector<1x1xf32>
    %1125 = arith.maximumf %1123, %1124 : vector<1x1xf32>
    %1126 = vector.broadcast %1113 : vector<1x1xf32> to vector<16x32xf32>
    %1127 = arith.subf %1106, %1126 : vector<16x32xf32>
    %cst_357 = arith.constant 9.99999974E-6 : f32
    %1128 = vector.broadcast %cst_357 : f32 to vector<1x1xf32>
    %1129 = arith.addf %1125, %1128 : vector<1x1xf32>
    %1130 = math.rsqrt %1129 : vector<1x1xf32>
    %1131 = vector.broadcast %1130 : vector<1x1xf32> to vector<16x32xf32>
    %1132 = arith.mulf %1127, %1131 : vector<16x32xf32>
    %cst_358 = arith.constant 2.000000e-01 : f32
    %1133 = vector.broadcast %cst_358 : f32 to vector<16x32xf32>
    %1134 = arith.mulf %1133, %1132 : vector<16x32xf32>
    %1135 = arith.maximumf %1132, %1134 : vector<16x32xf32>
    %1136 = arith.truncf %1135 : vector<16x32xf32> to vector<16x32xbf16>
    %cst_359 = arith.constant dense<0.000000e+00> : vector<16x128xf32>
    %1137 = tpu.matmul %1136, %1033, %cst_359 {dimension_numbers = #tpu.dot_dimension_numbers<[1], [0], [0], [1], [0, 0, 1, 1], [], []>} : vector<16x32xbf16>, vector<32x128xbf16>, vector<16x128xf32> -> vector<16x128xf32>
    %1138 = arith.addf %1137, %1027 : vector<16x128xf32>
    %c0_360 = arith.constant 0 : index
    %c0_361 = arith.constant 0 : index
    %c0_362 = arith.constant 0 : index
    %1139 = vector.load %arg21[%c0_360, %c0_361, %c0_362] : memref<1x16x128xf32, #tpu.memory_space<vmem>>, vector<1x16x128xf32>
    %1140 = vector.shape_cast %1139 : vector<1x16x128xf32> to vector<16x128xf32>
    %1141 = vector.shape_cast %1138 : vector<16x128xf32> to vector<1x16x128xf32>
    tpu.vector_store %arg21[%c0_360, %c0_361, %c0_362], %1141 {strides = array<i32>} : memref<1x16x128xf32, #tpu.memory_space<vmem>>, vector<1x16x128xf32>,
    return
  }
  func.func @transform_0(%arg0: i32) -> (i32, i32, i32) {
    %c0_i32 = arith.constant 0 : i32
    %c0_i32_0 = arith.constant 0 : i32
    %c0_i32_1 = arith.constant 0 : i32
    return %arg0, %c0_i32, %c0_i32_0 : i32, i32, i32
  }
  func.func @transform_1(%arg0: i32) -> (i32, i32, i32) {
    %c0_i32 = arith.constant 0 : i32
    %c0_i32_0 = arith.constant 0 : i32
    %c0_i32_1 = arith.constant 0 : i32
    %c0_i32_2 = arith.constant 0 : i32
    return %c0_i32, %c0_i32_0, %c0_i32_1 : i32, i32, i32
  }
  func.func @transform_2(%arg0: i32) -> (i32, i32, i32) {
    %c0_i32 = arith.constant 0 : i32
    %c0_i32_0 = arith.constant 0 : i32
    %c0_i32_1 = arith.constant 0 : i32
    %c0_i32_2 = arith.constant 0 : i32
    return %c0_i32, %c0_i32_0, %c0_i32_1 : i32, i32, i32
  }
  func.func @transform_3(%arg0: i32) -> (i32, i32, i32) {
    %c0_i32 = arith.constant 0 : i32
    %c0_i32_0 = arith.constant 0 : i32
    %c0_i32_1 = arith.constant 0 : i32
    %c0_i32_2 = arith.constant 0 : i32
    return %c0_i32, %c0_i32_0, %c0_i32_1 : i32, i32, i32
  }
  func.func @transform_4(%arg0: i32) -> (i32, i32, i32) {
    %c0_i32 = arith.constant 0 : i32
    %c0_i32_0 = arith.constant 0 : i32
    %c0_i32_1 = arith.constant 0 : i32
    %c0_i32_2 = arith.constant 0 : i32
    return %c0_i32, %c0_i32_0, %c0_i32_1 : i32, i32, i32
  }
  func.func @transform_5(%arg0: i32) -> (i32, i32, i32) {
    %c0_i32 = arith.constant 0 : i32
    %c0_i32_0 = arith.constant 0 : i32
    %c0_i32_1 = arith.constant 0 : i32
    %c0_i32_2 = arith.constant 0 : i32
    return %c0_i32, %c0_i32_0, %c0_i32_1 : i32, i32, i32
  }
  func.func @transform_6(%arg0: i32) -> (i32, i32, i32) {
    %c0_i32 = arith.constant 0 : i32
    %c0_i32_0 = arith.constant 0 : i32
    %c0_i32_1 = arith.constant 0 : i32
    %c0_i32_2 = arith.constant 0 : i32
    return %c0_i32, %c0_i32_0, %c0_i32_1 : i32, i32, i32
  }
  func.func @transform_7(%arg0: i32) -> (i32, i32, i32) {
    %c0_i32 = arith.constant 0 : i32
    %c0_i32_0 = arith.constant 0 : i32
    %c0_i32_1 = arith.constant 0 : i32
    %c0_i32_2 = arith.constant 0 : i32
    return %c0_i32, %c0_i32_0, %c0_i32_1 : i32, i32, i32
  }
  func.func @transform_8(%arg0: i32) -> (i32, i32, i32) {
    %c0_i32 = arith.constant 0 : i32
    %c0_i32_0 = arith.constant 0 : i32
    %c0_i32_1 = arith.constant 0 : i32
    %c0_i32_2 = arith.constant 0 : i32
    return %c0_i32, %c0_i32_0, %c0_i32_1 : i32, i32, i32
  }
  func.func @transform_9(%arg0: i32) -> (i32, i32, i32) {
    %c0_i32 = arith.constant 0 : i32
    %c0_i32_0 = arith.constant 0 : i32
    %c0_i32_1 = arith.constant 0 : i32
    %c0_i32_2 = arith.constant 0 : i32
    return %c0_i32, %c0_i32_0, %c0_i32_1 : i32, i32, i32
  }
  func.func @transform_10(%arg0: i32) -> (i32, i32) {
    %c0_i32 = arith.constant 0 : i32
    %c0_i32_0 = arith.constant 0 : i32
    %c0_i32_1 = arith.constant 0 : i32
    return %c0_i32, %c0_i32_0 : i32, i32
  }
  func.func @transform_11(%arg0: i32) -> (i32, i32, i32) {
    %c0_i32 = arith.constant 0 : i32
    %c0_i32_0 = arith.constant 0 : i32
    %c0_i32_1 = arith.constant 0 : i32
    %c0_i32_2 = arith.constant 0 : i32
    return %c0_i32, %c0_i32_0, %c0_i32_1 : i32, i32, i32
  }
  func.func @transform_12(%arg0: i32) -> (i32, i32) {
    %c0_i32 = arith.constant 0 : i32
    %c0_i32_0 = arith.constant 0 : i32
    %c0_i32_1 = arith.constant 0 : i32
    return %c0_i32, %c0_i32_0 : i32, i32
  }
  func.func @transform_13(%arg0: i32) -> (i32, i32, i32) {
    %c0_i32 = arith.constant 0 : i32
    %c0_i32_0 = arith.constant 0 : i32
    %c0_i32_1 = arith.constant 0 : i32
    %c0_i32_2 = arith.constant 0 : i32
    return %c0_i32, %c0_i32_0, %c0_i32_1 : i32, i32, i32
  }
  func.func @transform_14(%arg0: i32) -> (i32, i32) {
    %c0_i32 = arith.constant 0 : i32
    %c0_i32_0 = arith.constant 0 : i32
    %c0_i32_1 = arith.constant 0 : i32
    return %c0_i32, %c0_i32_0 : i32, i32
  }
  func.func @transform_15(%arg0: i32) -> (i32, i32) {
    %c0_i32 = arith.constant 0 : i32
    %c0_i32_0 = arith.constant 0 : i32
    %c0_i32_1 = arith.constant 0 : i32
    return %c0_i32, %c0_i32_0 : i32, i32
  }
  func.func @transform_16(%arg0: i32) -> (i32, i32) {
    %c0_i32 = arith.constant 0 : i32
    %c0_i32_0 = arith.constant 0 : i32
    %c0_i32_1 = arith.constant 0 : i32
    return %c0_i32, %c0_i32_0 : i32, i32
  }
  func.func @transform_17(%arg0: i32) -> (i32, i32) {
    %c0_i32 = arith.constant 0 : i32
    %c0_i32_0 = arith.constant 0 : i32
    %c0_i32_1 = arith.constant 0 : i32
    return %c0_i32, %c0_i32_0 : i32, i32
  }
  func.func @transform_18(%arg0: i32) -> (i32, i32) {
    %c0_i32 = arith.constant 0 : i32
    %c0_i32_0 = arith.constant 0 : i32
    %c0_i32_1 = arith.constant 0 : i32
    return %c0_i32, %c0_i32_0 : i32, i32
  }
  func.func @transform_19(%arg0: i32) -> (i32, i32) {
    %c0_i32 = arith.constant 0 : i32
    %c0_i32_0 = arith.constant 0 : i32
    %c0_i32_1 = arith.constant 0 : i32
    return %c0_i32, %c0_i32_0 : i32, i32
  }
  func.func @transform_20(%arg0: i32) -> (i32, i32, i32) {
    %c0_i32 = arith.constant 0 : i32
    %c0_i32_0 = arith.constant 0 : i32
    %c0_i32_1 = arith.constant 0 : i32
    return %arg0, %c0_i32, %c0_i32_0 : i32, i32, i32
  }
}

</mosaic_0001>

<llo_original>
// kernel: attention_module_stage2.1
$region0: #{attention_module_stage2.1}
  #allocation0 [shape = 'u32[]', space=smem, size = 0x4, offset = 0x4, fixed_abs, tag = 'smem constant byte address 0x4 - core index']
  #allocation1 [shape = 'u32[72,128]{1,0:T(1,128)}', space=vmem, size = 0x9000, scoped, tag = 'internal scratch']
  %s0 = inlined_call_operand.vmem [shape: f32[2,16,128], index: 0, kind: input, shape index: {}]
  %s1 = inlined_call_operand.vmem [shape: bf16[4,128,32], index: 1, kind: input, shape index: {}]
  %s2 = inlined_call_operand.vmem [shape: bf16[4,32,96], index: 2, kind: input, shape index: {}]
  %s3 = inlined_call_operand.vmem [shape: bf16[4,32,128], index: 3, kind: input, shape index: {}]
  %s4 = inlined_call_operand.vmem [shape: bf16[3,64,16], index: 4, kind: input, shape index: {}]
  %s5 = inlined_call_operand.vmem [shape: bf16[3,16,48], index: 5, kind: input, shape index: {}]
  %s6 = inlined_call_operand.vmem [shape: bf16[3,16,64], index: 6, kind: input, shape index: {}]
  %s7 = inlined_call_operand.vmem [shape: bf16[2,32,8], index: 7, kind: input, shape index: {}]
  %s8 = inlined_call_operand.vmem [shape: bf16[2,8,24], index: 8, kind: input, shape index: {}]
  %s9 = inlined_call_operand.vmem [shape: bf16[2,8,32], index: 9, kind: input, shape index: {}]
  %s10 = inlined_call_operand.vmem [shape: bf16[8,16], index: 10, kind: input, shape index: {}]
  %s11 = inlined_call_operand.vmem [shape: bf16[3,128,64], index: 11, kind: input, shape index: {}]
  %s12 = inlined_call_operand.vmem [shape: bf16[4,8], index: 12, kind: input, shape index: {}]
  %s13 = inlined_call_operand.vmem [shape: bf16[3,64,32], index: 13, kind: input, shape index: {}]
  %s14 = inlined_call_operand.vmem [shape: bf16[8,4], index: 14, kind: input, shape index: {}]
  %s15 = inlined_call_operand.vmem [shape: bf16[32,64], index: 15, kind: input, shape index: {}]
  %s16 = inlined_call_operand.vmem [shape: bf16[16,8], index: 16, kind: input, shape index: {}]
  %s17 = inlined_call_operand.vmem [shape: bf16[64,128], index: 17, kind: input, shape index: {}]
  %s18 = inlined_call_operand.vmem [shape: bf16[128,128], index: 18, kind: input, shape index: {}]
  %s19 = inlined_call_operand.vmem [shape: bf16[128,128], index: 19, kind: input, shape index: {}]
  %s20 = inlined_call_operand.vmem [shape: f32[2,16,128], index: 20, kind: output, shape index: {}]
  %s21 = sld [smem:[#allocation0]]
  $region113: #{attention_module_stage2.1} parent=0
    _
  %s23 = ssub.s32 1, %s21
  %s24 = scalar_select 0, %s23, %s21
  loop: start=0, step=1, limit=4
  $region2: #{attention_module_stage2.1} parent=0 // loop_pre_header
    _
  $region3: #{attention_module_stage2.1} parent=0 // loop_header
    %s26 = sphi 0, %s30
    %p27 = scmp.ge.s32.totalorder %s26, 4
    %s36 = sphi 0, %s38
    %s39 = sphi 0, %s36
    %s40 = sphi 0, %s39
    %s56 = sphi 0, %s40
    %s60 = sphi 0, %s60
    %s62 = sphi 0, %s60
    %s63 = sphi 0, %s62
    %s77 = sphi 0, %s63
    %s81 = sphi 0, %s81
    %s83 = sphi 0, %s81
    %s84 = sphi 0, %s83
    %s98 = sphi 0, %s84
    %s102 = sphi 0, %s102
    %s104 = sphi 0, %s102
    %s105 = sphi 0, %s104
    %s119 = sphi 0, %s105
    %s123 = sphi 0, %s123
    %s125 = sphi 0, %s123
    %s126 = sphi 0, %s125
    %s140 = sphi 0, %s126
    %s144 = sphi 0, %s144
    %s146 = sphi 0, %s144
    %s147 = sphi 0, %s146
    %s161 = sphi 0, %s147
    %s165 = sphi 0, %s165
    %s167 = sphi 0, %s165
    %s168 = sphi 0, %s167
    %s182 = sphi 0, %s168
    %s186 = sphi 0, %s186
    %s188 = sphi 0, %s186
    %s189 = sphi 0, %s188
    %s203 = sphi 0, %s189
    %s207 = sphi 0, %s207
    %s209 = sphi 0, %s207
    %s210 = sphi 0, %s209
    %s224 = sphi 0, %s210
    %s228 = sphi 0, %s228
    %s230 = sphi 0, %s228
    %s231 = sphi 0, %s230
    %s245 = sphi 0, %s231
    %s249 = sphi 0, %s249
    %s251 = sphi 0, %s249
    %s252 = sphi 0, %s251
    %s266 = sphi 0, %s252
    %s270 = sphi 0, %s270
    %s272 = sphi 0, %s270
    %s273 = sphi 0, %s272
    %s287 = sphi 0, %s273
    %s291 = sphi 0, %s291
    %s293 = sphi 0, %s291
    %s294 = sphi 0, %s293
    %s308 = sphi 0, %s294
    %s312 = sphi 0, %s312
    %s314 = sphi 0, %s312
    %s315 = sphi 0, %s314
    %s329 = sphi 0, %s315
    %s333 = sphi 0, %s333
    %s335 = sphi 0, %s333
    %s336 = sphi 0, %s335
    %s350 = sphi 0, %s336
    %s354 = sphi 0, %s354
    %s356 = sphi 0, %s354
    %s357 = sphi 0, %s356
    %s371 = sphi 0, %s357
    %s375 = sphi 0, %s375
    %s377 = sphi 0, %s375
    %s378 = sphi 0, %s377
    %s392 = sphi 0, %s378
    %s396 = sphi 0, %s396
    %s398 = sphi 0, %s396
    %s399 = sphi 0, %s398
    %s413 = sphi 0, %s399
    %s417 = sphi 0, %s417
    %s419 = sphi 0, %s417
    %s420 = sphi 0, %s419
    %s434 = sphi 0, %s420
    %s438 = sphi 0, %s438
    %s440 = sphi 0, %s438
    %s441 = sphi 0, %s440
    %s455 = sphi 0, %s441
    %s461 = sphi 0, %s463
    %s464 = sphi 0, %s461
    %s465 = sphi 0, %s464
    %s481 = sphi 0, %s465
  $region4: #{attention_module_stage2.1} parent=0 // loop_header_branch
    %29 = sbr.rel (%p27) target = $region8
  $region5: #{attention_module_stage2.1} parent=0 // loop_body
    %s31 = ssub.s32 %s26, 1
    %s32 = ssub.s32 %s26, 2
    %s33 = sadd.s32 %s26, 1
    %s34 = ssub.s32 %s26, %s33
    %p35 = scmp.eq.s32.totalorder %s34, 0
    %s37 = sadd.s32 %s36, 1
    %s38 = scalar_select %p35, %s36, %s37
    %p41 = pneg %p35
    %p42 = scmp.eq.s32.totalorder %s26, 1
    %p43 = por %p41, %p42
    %p44 = scmp.ne.s32.totalorder %s36, %s39
    %p45 = scmp.eq.s32.totalorder %s26, 0
    %p46 = por %p44, %p45
    %p47 = scmp.ne.s32.totalorder %s36, %s39
    %p48 = scmp.eq.s32.totalorder %s31, 1
    %p49 = por %p47, %p48
    %p50 = scmp.ne.s32.totalorder %s39, %s40
    %p51 = scmp.eq.s32.totalorder %s31, 0
    %p52 = por %p50, %p51
    %p53 = scmp.ne.s32.totalorder %s39, %s40
    %p54 = scmp.eq.s32.totalorder %s32, 1
    %p55 = por %p53, %p54
    %p57 = scmp.ne.s32.totalorder %s40, %s56
    %p58 = scmp.eq.s32.totalorder %s32, 0
    %p59 = por %p57, %p58
    %s61 = sadd.s32 %s60, 1
    %p64 = scmp.eq.s32.totalorder %s26, 1
    %p65 = scmp.ne.s32.totalorder %s60, %s62
    %p66 = scmp.eq.s32.totalorder %s26, 0
    %p67 = por %p65, %p66
    %p68 = scmp.ne.s32.totalorder %s60, %s62
    %p69 = scmp.eq.s32.totalorder %s31, 1
    %p70 = por %p68, %p69
    %p71 = scmp.ne.s32.totalorder %s62, %s63
    %p72 = scmp.eq.s32.totalorder %s31, 0
    %p73 = por %p71, %p72
    %p74 = scmp.ne.s32.totalorder %s62, %s63
    %p75 = scmp.eq.s32.totalorder %s32, 1
    %p76 = por %p74, %p75
    %p78 = scmp.ne.s32.totalorder %s63, %s77
    %p79 = scmp.eq.s32.totalorder %s32, 0
    %p80 = por %p78, %p79
    %s82 = sadd.s32 %s81, 1
    %p85 = scmp.eq.s32.totalorder %s26, 1
    %p86 = scmp.ne.s32.totalorder %s81, %s83
    %p87 = scmp.eq.s32.totalorder %s26, 0
    %p88 = por %p86, %p87
    %p89 = scmp.ne.s32.totalorder %s81, %s83
    %p90 = scmp.eq.s32.totalorder %s31, 1
    %p91 = por %p89, %p90
    %p92 = scmp.ne.s32.totalorder %s83, %s84
    %p93 = scmp.eq.s32.totalorder %s31, 0
    %p94 = por %p92, %p93
    %p95 = scmp.ne.s32.totalorder %s83, %s84
    %p96 = scmp.eq.s32.totalorder %s32, 1
    %p97 = por %p95, %p96
    %p99 = scmp.ne.s32.totalorder %s84, %s98
    %p100 = scmp.eq.s32.totalorder %s32, 0
    %p101 = por %p99, %p100
    %s103 = sadd.s32 %s102, 1
    %p106 = scmp.eq.s32.totalorder %s26, 1
    %p107 = scmp.ne.s32.totalorder %s102, %s104
    %p108 = scmp.eq.s32.totalorder %s26, 0
    %p109 = por %p107, %p108
    %p110 = scmp.ne.s32.totalorder %s102, %s104
    %p111 = scmp.eq.s32.totalorder %s31, 1
    %p112 = por %p110, %p111
    %p113 = scmp.ne.s32.totalorder %s104, %s105
    %p114 = scmp.eq.s32.totalorder %s31, 0
    %p115 = por %p113, %p114
    %p116 = scmp.ne.s32.totalorder %s104, %s105
    %p117 = scmp.eq.s32.totalorder %s32, 1
    %p118 = por %p116, %p117
    %p120 = scmp.ne.s32.totalorder %s105, %s119
    %p121 = scmp.eq.s32.totalorder %s32, 0
    %p122 = por %p120, %p121
    %s124 = sadd.s32 %s123, 1
    %p127 = scmp.eq.s32.totalorder %s26, 1
    %p128 = scmp.ne.s32.totalorder %s123, %s125
    %p129 = scmp.eq.s32.totalorder %s26, 0
    %p130 = por %p128, %p129
    %p131 = scmp.ne.s32.totalorder %s123, %s125
    %p132 = scmp.eq.s32.totalorder %s31, 1
    %p133 = por %p131, %p132
    %p134 = scmp.ne.s32.totalorder %s125, %s126
    %p135 = scmp.eq.s32.totalorder %s31, 0
    %p136 = por %p134, %p135
    %p137 = scmp.ne.s32.totalorder %s125, %s126
    %p138 = scmp.eq.s32.totalorder %s32, 1
    %p139 = por %p137, %p138
    %p141 = scmp.ne.s32.totalorder %s126, %s140
    %p142 = scmp.eq.s32.totalorder %s32, 0
    %p143 = por %p141, %p142
    %s145 = sadd.s32 %s144, 1
    %p148 = scmp.eq.s32.totalorder %s26, 1
    %p149 = scmp.ne.s32.totalorder %s144, %s146
    %p150 = scmp.eq.s32.totalorder %s26, 0
    %p151 = por %p149, %p150
    %p152 = scmp.ne.s32.totalorder %s144, %s146
    %p153 = scmp.eq.s32.totalorder %s31, 1
    %p154 = por %p152, %p153
    %p155 = scmp.ne.s32.totalorder %s146, %s147
    %p156 = scmp.eq.s32.totalorder %s31, 0
    %p157 = por %p155, %p156
    %p158 = scmp.ne.s32.totalorder %s146, %s147
    %p159 = scmp.eq.s32.totalorder %s32, 1
    %p160 = por %p158, %p159
    %p162 = scmp.ne.s32.totalorder %s147, %s161
    %p163 = scmp.eq.s32.totalorder %s32, 0
    %p164 = por %p162, %p163
    %s166 = sadd.s32 %s165, 1
    %p169 = scmp.eq.s32.totalorder %s26, 1
    %p170 = scmp.ne.s32.totalorder %s165, %s167
    %p171 = scmp.eq.s32.totalorder %s26, 0
    %p172 = por %p170, %p171
    %p173 = scmp.ne.s32.totalorder %s165, %s167
    %p174 = scmp.eq.s32.totalorder %s31, 1
    %p175 = por %p173, %p174
    %p176 = scmp.ne.s32.totalorder %s167, %s168
    %p177 = scmp.eq.s32.totalorder %s31, 0
    %p178 = por %p176, %p177
    %p179 = scmp.ne.s32.totalorder %s167, %s168
    %p180 = scmp.eq.s32.totalorder %s32, 1
    %p181 = por %p179, %p180
    %p183 = scmp.ne.s32.totalorder %s168, %s182
    %p184 = scmp.eq.s32.totalorder %s32, 0
    %p185 = por %p183, %p184
    %s187 = sadd.s32 %s186, 1
    %p190 = scmp.eq.s32.totalorder %s26, 1
    %p191 = scmp.ne.s32.totalorder %s186, %s188
    %p192 = scmp.eq.s32.totalorder %s26, 0
    %p193 = por %p191, %p192
    %p194 = scmp.ne.s32.totalorder %s186, %s188
    %p195 = scmp.eq.s32.totalorder %s31, 1
    %p196 = por %p194, %p195
    %p197 = scmp.ne.s32.totalorder %s188, %s189
    %p198 = scmp.eq.s32.totalorder %s31, 0
    %p199 = por %p197, %p198
    %p200 = scmp.ne.s32.totalorder %s188, %s189
    %p201 = scmp.eq.s32.totalorder %s32, 1
    %p202 = por %p200, %p201
    %p204 = scmp.ne.s32.totalorder %s189, %s203
    %p205 = scmp.eq.s32.totalorder %s32, 0
    %p206 = por %p204, %p205
    %s208 = sadd.s32 %s207, 1
    %p211 = scmp.eq.s32.totalorder %s26, 1
    %p212 = scmp.ne.s32.totalorder %s207, %s209
    %p213 = scmp.eq.s32.totalorder %s26, 0
    %p214 = por %p212, %p213
    %p215 = scmp.ne.s32.totalorder %s207, %s209
    %p216 = scmp.eq.s32.totalorder %s31, 1
    %p217 = por %p215, %p216
    %p218 = scmp.ne.s32.totalorder %s209, %s210
    %p219 = scmp.eq.s32.totalorder %s31, 0
    %p220 = por %p218, %p219
    %p221 = scmp.ne.s32.totalorder %s209, %s210
    %p222 = scmp.eq.s32.totalorder %s32, 1
    %p223 = por %p221, %p222
    %p225 = scmp.ne.s32.totalorder %s210, %s224
    %p226 = scmp.eq.s32.totalorder %s32, 0
    %p227 = por %p225, %p226
    %s229 = sadd.s32 %s228, 1
    %p232 = scmp.eq.s32.totalorder %s26, 1
    %p233 = scmp.ne.s32.totalorder %s228, %s230
    %p234 = scmp.eq.s32.totalorder %s26, 0
    %p235 = por %p233, %p234
    %p236 = scmp.ne.s32.totalorder %s228, %s230
    %p237 = scmp.eq.s32.totalorder %s31, 1
    %p238 = por %p236, %p237
    %p239 = scmp.ne.s32.totalorder %s230, %s231
    %p240 = scmp.eq.s32.totalorder %s31, 0
    %p241 = por %p239, %p240
    %p242 = scmp.ne.s32.totalorder %s230, %s231
    %p243 = scmp.eq.s32.totalorder %s32, 1
    %p244 = por %p242, %p243
    %p246 = scmp.ne.s32.totalorder %s231, %s245
    %p247 = scmp.eq.s32.totalorder %s32, 0
    %p248 = por %p246, %p247
    %s250 = sadd.s32 %s249, 1
    %p253 = scmp.eq.s32.totalorder %s26, 1
    %p254 = scmp.ne.s32.totalorder %s249, %s251
    %p255 = scmp.eq.s32.totalorder %s26, 0
    %p256 = por %p254, %p255
    %p257 = scmp.ne.s32.totalorder %s249, %s251
    %p258 = scmp.eq.s32.totalorder %s31, 1
    %p259 = por %p257, %p258
    %p260 = scmp.ne.s32.totalorder %s251, %s252
    %p261 = scmp.eq.s32.totalorder %s31, 0
    %p262 = por %p260, %p261
    %p263 = scmp.ne.s32.totalorder %s251, %s252
    %p264 = scmp.eq.s32.totalorder %s32, 1
    %p265 = por %p263, %p264
    %p267 = scmp.ne.s32.totalorder %s252, %s266
    %p268 = scmp.eq.s32.totalorder %s32, 0
    %p269 = por %p267, %p268
    %s271 = sadd.s32 %s270, 1
    %p274 = scmp.eq.s32.totalorder %s26, 1
    %p275 = scmp.ne.s32.totalorder %s270, %s272
    %p276 = scmp.eq.s32.totalorder %s26, 0
    %p277 = por %p275, %p276
    %p278 = scmp.ne.s32.totalorder %s270, %s272
    %p279 = scmp.eq.s32.totalorder %s31, 1
    %p280 = por %p278, %p279
    %p281 = scmp.ne.s32.totalorder %s272, %s273
    %p282 = scmp.eq.s32.totalorder %s31, 0
    %p283 = por %p281, %p282
    %p284 = scmp.ne.s32.totalorder %s272, %s273
    %p285 = scmp.eq.s32.totalorder %s32, 1
    %p286 = por %p284, %p285
    %p288 = scmp.ne.s32.totalorder %s273, %s287
    %p289 = scmp.eq.s32.totalorder %s32, 0
    %p290 = por %p288, %p289
    %s292 = sadd.s32 %s291, 1
    %p295 = scmp.eq.s32.totalorder %s26, 1
    %p296 = scmp.ne.s32.totalorder %s291, %s293
    %p297 = scmp.eq.s32.totalorder %s26, 0
    %p298 = por %p296, %p297
    %p299 = scmp.ne.s32.totalorder %s291, %s293
    %p300 = scmp.eq.s32.totalorder %s31, 1
    %p301 = por %p299, %p300
    %p302 = scmp.ne.s32.totalorder %s293, %s294
    %p303 = scmp.eq.s32.totalorder %s31, 0
    %p304 = por %p302, %p303
    %p305 = scmp.ne.s32.totalorder %s293, %s294
    %p306 = scmp.eq.s32.totalorder %s32, 1
    %p307 = por %p305, %p306
    %p309 = scmp.ne.s32.totalorder %s294, %s308
    %p310 = scmp.eq.s32.totalorder %s32, 0
    %p311 = por %p309, %p310
    %s313 = sadd.s32 %s312, 1
    %p316 = scmp.eq.s32.totalorder %s26, 1
    %p317 = scmp.ne.s32.totalorder %s312, %s314
    %p318 = scmp.eq.s32.totalorder %s26, 0
    %p319 = por %p317, %p318
    %p320 = scmp.ne.s32.totalorder %s312, %s314
    %p321 = scmp.eq.s32.totalorder %s31, 1
    %p322 = por %p320, %p321
    %p323 = scmp.ne.s32.totalorder %s314, %s315
    %p324 = scmp.eq.s32.totalorder %s31, 0
    %p325 = por %p323, %p324
    %p326 = scmp.ne.s32.totalorder %s314, %s315
    %p327 = scmp.eq.s32.totalorder %s32, 1
    %p328 = por %p326, %p327
    %p330 = scmp.ne.s32.totalorder %s315, %s329
    %p331 = scmp.eq.s32.totalorder %s32, 0
    %p332 = por %p330, %p331
    %s334 = sadd.s32 %s333, 1
    %p337 = scmp.eq.s32.totalorder %s26, 1
    %p338 = scmp.ne.s32.totalorder %s333, %s335
    %p339 = scmp.eq.s32.totalorder %s26, 0
    %p340 = por %p338, %p339
    %p341 = scmp.ne.s32.totalorder %s333, %s335
    %p342 = scmp.eq.s32.totalorder %s31, 1
    %p343 = por %p341, %p342
    %p344 = scmp.ne.s32.totalorder %s335, %s336
    %p345 = scmp.eq.s32.totalorder %s31, 0
    %p346 = por %p344, %p345
    %p347 = scmp.ne.s32.totalorder %s335, %s336
    %p348 = scmp.eq.s32.totalorder %s32, 1
    %p349 = por %p347, %p348
    %p351 = scmp.ne.s32.totalorder %s336, %s350
    %p352 = scmp.eq.s32.totalorder %s32, 0
    %p353 = por %p351, %p352
    %s355 = sadd.s32 %s354, 1
    %p358 = scmp.eq.s32.totalorder %s26, 1
    %p359 = scmp.ne.s32.totalorder %s354, %s356
    %p360 = scmp.eq.s32.totalorder %s26, 0
    %p361 = por %p359, %p360
    %p362 = scmp.ne.s32.totalorder %s354, %s356
    %p363 = scmp.eq.s32.totalorder %s31, 1
    %p364 = por %p362, %p363
    %p365 = scmp.ne.s32.totalorder %s356, %s357
    %p366 = scmp.eq.s32.totalorder %s31, 0
    %p367 = por %p365, %p366
    %p368 = scmp.ne.s32.totalorder %s356, %s357
    %p369 = scmp.eq.s32.totalorder %s32, 1
    %p370 = por %p368, %p369
    %p372 = scmp.ne.s32.totalorder %s357, %s371
    %p373 = scmp.eq.s32.totalorder %s32, 0
    %p374 = por %p372, %p373
    %s376 = sadd.s32 %s375, 1
    %p379 = scmp.eq.s32.totalorder %s26, 1
    %p380 = scmp.ne.s32.totalorder %s375, %s377
    %p381 = scmp.eq.s32.totalorder %s26, 0
    %p382 = por %p380, %p381
    %p383 = scmp.ne.s32.totalorder %s375, %s377
    %p384 = scmp.eq.s32.totalorder %s31, 1
    %p385 = por %p383, %p384
    %p386 = scmp.ne.s32.totalorder %s377, %s378
    %p387 = scmp.eq.s32.totalorder %s31, 0
    %p388 = por %p386, %p387
    %p389 = scmp.ne.s32.totalorder %s377, %s378
    %p390 = scmp.eq.s32.totalorder %s32, 1
    %p391 = por %p389, %p390
    %p393 = scmp.ne.s32.totalorder %s378, %s392
    %p394 = scmp.eq.s32.totalorder %s32, 0
    %p395 = por %p393, %p394
    %s397 = sadd.s32 %s396, 1
    %p400 = scmp.eq.s32.totalorder %s26, 1
    %p401 = scmp.ne.s32.totalorder %s396, %s398
    %p402 = scmp.eq.s32.totalorder %s26, 0
    %p403 = por %p401, %p402
    %p404 = scmp.ne.s32.totalorder %s396, %s398
    %p405 = scmp.eq.s32.totalorder %s31, 1
    %p406 = por %p404, %p405
    %p407 = scmp.ne.s32.totalorder %s398, %s399
    %p408 = scmp.eq.s32.totalorder %s31, 0
    %p409 = por %p407, %p408
    %p410 = scmp.ne.s32.totalorder %s398, %s399
    %p411 = scmp.eq.s32.totalorder %s32, 1
    %p412 = por %p410, %p411
    %p414 = scmp.ne.s32.totalorder %s399, %s413
    %p415 = scmp.eq.s32.totalorder %s32, 0
    %p416 = por %p414, %p415
    %s418 = sadd.s32 %s417, 1
    %p421 = scmp.eq.s32.totalorder %s26, 1
    %p422 = scmp.ne.s32.totalorder %s417, %s419
    %p423 = scmp.eq.s32.totalorder %s26, 0
    %p424 = por %p422, %p423
    %p425 = scmp.ne.s32.totalorder %s417, %s419
    %p426 = scmp.eq.s32.totalorder %s31, 1
    %p427 = por %p425, %p426
    %p428 = scmp.ne.s32.totalorder %s419, %s420
    %p429 = scmp.eq.s32.totalorder %s31, 0
    %p430 = por %p428, %p429
    %p431 = scmp.ne.s32.totalorder %s419, %s420
    %p432 = scmp.eq.s32.totalorder %s32, 1
    %p433 = por %p431, %p432
    %p435 = scmp.ne.s32.totalorder %s420, %s434
    %p436 = scmp.eq.s32.totalorder %s32, 0
    %p437 = por %p435, %p436
    %s439 = sadd.s32 %s438, 1
    %p442 = scmp.eq.s32.totalorder %s26, 1
    %p443 = scmp.ne.s32.totalorder %s438, %s440
    %p444 = scmp.eq.s32.totalorder %s26, 0
    %p445 = por %p443, %p444
    %p446 = scmp.ne.s32.totalorder %s438, %s440
    %p447 = scmp.eq.s32.totalorder %s31, 1
    %p448 = por %p446, %p447
    %p449 = scmp.ne.s32.totalorder %s440, %s441
    %p450 = scmp.eq.s32.totalorder %s31, 0
    %p451 = por %p449, %p450
    %p452 = scmp.ne.s32.totalorder %s440, %s441
    %p453 = scmp.eq.s32.totalorder %s32, 1
    %p454 = por %p452, %p453
    %p456 = scmp.ne.s32.totalorder %s441, %s455
    %p457 = scmp.eq.s32.totalorder %s32, 0
    %p458 = por %p456, %p457
    %s459 = ssub.s32 %s26, %s33
    %p460 = scmp.eq.s32.totalorder %s459, 0
    %s462 = sadd.s32 %s461, 1
    %s463 = scalar_select %p460, %s461, %s462
    %p466 = pneg %p460
    %p467 = scmp.eq.s32.totalorder %s26, 1
    %p468 = por %p466, %p467
    %p469 = scmp.ne.s32.totalorder %s461, %s464
    %p470 = scmp.eq.s32.totalorder %s26, 0
    %p471 = por %p469, %p470
    %p472 = scmp.ne.s32.totalorder %s461, %s464
    %p473 = scmp.eq.s32.totalorder %s31, 1
    %p474 = por %p472, %p473
    %p475 = scmp.ne.s32.totalorder %s464, %s465
    %p476 = scmp.eq.s32.totalorder %s31, 0
    %p477 = por %p475, %p476
    %p478 = scmp.ne.s32.totalorder %s464, %s465
    %p479 = scmp.eq.s32.totalorder %s32, 1
    %p480 = por %p478, %p479
    %p482 = scmp.ne.s32.totalorder %s465, %s481
    %p483 = scmp.eq.s32.totalorder %s32, 0
    %p484 = por %p482, %p483
    %p485 = scmp.le.s32.totalorder 1, %s26
    %p486 = scmp.lt.s32.totalorder %s26, 3
    %p487 = pnand %p485, %p486
    %p488 = pneg %p487
    // Predicated region
    $region9: #{attention_module_stage2.1} parent=5 // pred_check
      _
    $region10: #{attention_module_stage2.1} parent=5 // pred_check_branch
      %490 = sbr.rel (%p487) target = $region12
    $region11: #{attention_module_stage2.1} parent=5 // pred_region
      %s491 = ssub.s32 %s26, 1
      // Predicated region
      $region13: #{attention_module_stage2.1} parent=11 // pred_check
        %p492 = pneg %p73
      $region14: #{attention_module_stage2.1} parent=11 // pred_check_branch
        %494 = sbr.rel (%p492) target = $region16
      $region15: #{attention_module_stage2.1} parent=11 // pred_region
        _
      $region16: #{attention_module_stage2.1} parent=11 // pred_fallthru
        _
      // Predicated region
      $region17: #{attention_module_stage2.1} parent=11 // pred_check
        %p495 = pneg %p94
      $region18: #{attention_module_stage2.1} parent=11 // pred_check_branch
        %497 = sbr.rel (%p495) target = $region20
      $region19: #{attention_module_stage2.1} parent=11 // pred_region
        _
      $region20: #{attention_module_stage2.1} parent=11 // pred_fallthru
        _
      // Predicated region
      $region21: #{attention_module_stage2.1} parent=11 // pred_check
        %p498 = pneg %p115
      $region22: #{attention_module_stage2.1} parent=11 // pred_check_branch
        %500 = sbr.rel (%p498) target = $region24
      $region23: #{attention_module_stage2.1} parent=11 // pred_region
        _
      $region24: #{attention_module_stage2.1} parent=11 // pred_fallthru
        _
      // Predicated region
      $region25: #{attention_module_stage2.1} parent=11 // pred_check
        %p501 = pneg %p136
      $region26: #{attention_module_stage2.1} parent=11 // pred_check_branch
        %503 = sbr.rel (%p501) target = $region28
      $region27: #{attention_module_stage2.1} parent=11 // pred_region
        _
      $region28: #{attention_module_stage2.1} parent=11 // pred_fallthru
        _
      // Predicated region
      $region29: #{attention_module_stage2.1} parent=11 // pred_check
        %p504 = pneg %p157
      $region30: #{attention_module_stage2.1} parent=11 // pred_check_branch
        %506 = sbr.rel (%p504) target = $region32
      $region31: #{attention_module_stage2.1} parent=11 // pred_region
        _
      $region32: #{attention_module_stage2.1} parent=11 // pred_fallthru
        _
      // Predicated region
      $region33: #{attention_module_stage2.1} parent=11 // pred_check
        %p507 = pneg %p178
      $region34: #{attention_module_stage2.1} parent=11 // pred_check_branch
        %509 = sbr.rel (%p507) target = $region36
      $region35: #{attention_module_stage2.1} parent=11 // pred_region
        _
      $region36: #{attention_module_stage2.1} parent=11 // pred_fallthru
        _
      // Predicated region
      $region37: #{attention_module_stage2.1} parent=11 // pred_check
        %p510 = pneg %p199
      $region38: #{attention_module_stage2.1} parent=11 // pred_check_branch
        %512 = sbr.rel (%p510) target = $region40
      $region39: #{attention_module_stage2.1} parent=11 // pred_region
        _
      $region40: #{attention_module_stage2.1} parent=11 // pred_fallthru
        _
      // Predicated region
      $region41: #{attention_module_stage2.1} parent=11 // pred_check
        %p513 = pneg %p220
      $region42: #{attention_module_stage2.1} parent=11 // pred_check_branch
        %515 = sbr.rel (%p513) target = $region44
      $region43: #{attention_module_stage2.1} parent=11 // pred_region
        _
      $region44: #{attention_module_stage2.1} parent=11 // pred_fallthru
        _
      // Predicated region
      $region45: #{attention_module_stage2.1} parent=11 // pred_check
        %p516 = pneg %p241
      $region46: #{attention_module_stage2.1} parent=11 // pred_check_branch
        %518 = sbr.rel (%p516) target = $region48
      $region47: #{attention_module_stage2.1} parent=11 // pred_region
        _
      $region48: #{attention_module_stage2.1} parent=11 // pred_fallthru
        _
      // Predicated region
      $region49: #{attention_module_stage2.1} parent=11 // pred_check
        %p519 = pneg %p262
      $region50: #{attention_module_stage2.1} parent=11 // pred_check_branch
        %521 = sbr.rel (%p519) target = $region52
      $region51: #{attention_module_stage2.1} parent=11 // pred_region
        _
      $region52: #{attention_module_stage2.1} parent=11 // pred_fallthru
        _
      // Predicated region
      $region53: #{attention_module_stage2.1} parent=11 // pred_check
        %p522 = pneg %p283
      $region54: #{attention_module_stage2.1} parent=11 // pred_check_branch
        %524 = sbr.rel (%p522) target = $region56
      $region55: #{attention_module_stage2.1} parent=11 // pred_region
        _
      $region56: #{attention_module_stage2.1} parent=11 // pred_fallthru
        _
      // Predicated region
      $region57: #{attention_module_stage2.1} parent=11 // pred_check
        %p525 = pneg %p304
      $region58: #{attention_module_stage2.1} parent=11 // pred_check_branch
        %527 = sbr.rel (%p525) target = $region60
      $region59: #{attention_module_stage2.1} parent=11 // pred_region
        _
      $region60: #{attention_module_stage2.1} parent=11 // pred_fallthru
        _
      // Predicated region
      $region61: #{attention_module_stage2.1} parent=11 // pred_check
        %p528 = pneg %p325
      $region62: #{attention_module_stage2.1} parent=11 // pred_check_branch
        %530 = sbr.rel (%p528) target = $region64
      $region63: #{attention_module_stage2.1} parent=11 // pred_region
        _
      $region64: #{attention_module_stage2.1} parent=11 // pred_fallthru
        _
      // Predicated region
      $region65: #{attention_module_stage2.1} parent=11 // pred_check
        %p531 = pneg %p346
      $region66: #{attention_module_stage2.1} parent=11 // pred_check_branch
        %533 = sbr.rel (%p531) target = $region68
      $region67: #{attention_module_stage2.1} parent=11 // pred_region
        _
      $region68: #{attention_module_stage2.1} parent=11 // pred_fallthru
        _
      // Predicated region
      $region69: #{attention_module_stage2.1} parent=11 // pred_check
        %p534 = pneg %p367
      $region70: #{attention_module_stage2.1} parent=11 // pred_check_branch
        %536 = sbr.rel (%p534) target = $region72
      $region71: #{attention_module_stage2.1} parent=11 // pred_region
        _
      $region72: #{attention_module_stage2.1} parent=11 // pred_fallthru
        _
      // Predicated region
      $region73: #{attention_module_stage2.1} parent=11 // pred_check
        %p537 = pneg %p388
      $region74: #{attention_module_stage2.1} parent=11 // pred_check_branch
        %539 = sbr.rel (%p537) target = $region76
      $region75: #{attention_module_stage2.1} parent=11 // pred_region
        _
      $region76: #{attention_module_stage2.1} parent=11 // pred_fallthru
        _
      // Predicated region
      $region77: #{attention_module_stage2.1} parent=11 // pred_check
        %p540 = pneg %p409
      $region78: #{attention_module_stage2.1} parent=11 // pred_check_branch
        %542 = sbr.rel (%p540) target = $region80
      $region79: #{attention_module_stage2.1} parent=11 // pred_region
        _
      $region80: #{attention_module_stage2.1} parent=11 // pred_fallthru
        _
      // Predicated region
      $region81: #{attention_module_stage2.1} parent=11 // pred_check
        %p543 = pneg %p430
      $region82: #{attention_module_stage2.1} parent=11 // pred_check_branch
        %545 = sbr.rel (%p543) target = $region84
      $region83: #{attention_module_stage2.1} parent=11 // pred_region
        _
      $region84: #{attention_module_stage2.1} parent=11 // pred_fallthru
        _
      // Predicated region
      $region85: #{attention_module_stage2.1} parent=11 // pred_check
        %p546 = pneg %p451
      $region86: #{attention_module_stage2.1} parent=11 // pred_check_branch
        %548 = sbr.rel (%p546) target = $region88
      $region87: #{attention_module_stage2.1} parent=11 // pred_region
        _
      $region88: #{attention_module_stage2.1} parent=11 // pred_fallthru
        _
    $region12: #{attention_module_stage2.1} parent=5 // pred_fallthru
      _
    %p549 = scmp.lt.s32.totalorder %s26, 2
    // Predicated region
    $region89: #{attention_module_stage2.1} parent=5 // pred_check
      %p550 = pneg %p549
    $region90: #{attention_module_stage2.1} parent=5 // pred_check_branch
      %552 = sbr.rel (%p550) target = $region92
    $region91: #{attention_module_stage2.1} parent=5 // pred_region
      // Predicated region
      $region93: #{attention_module_stage2.1} parent=91 // pred_check
        %p553 = pneg %p46
      $region94: #{attention_module_stage2.1} parent=91 // pred_check_branch
        %555 = sbr.rel (%p553) target = $region96
      $region95: #{attention_module_stage2.1} parent=91 // pred_region
        %p556 = scmp.lt.s32.totalorder %s26, 1
        %s557 = scalar_select %p556, %s26, 1
        %s558 = smul.addr %s557, 2
        %s559 = smul.addr %s558, 8
        %s560 = scalar_lea.vmem %s0, %s559
      $region96: #{attention_module_stage2.1} parent=91 // pred_fallthru
        _
    $region92: #{attention_module_stage2.1} parent=5 // pred_fallthru
      _
    %p561 = scmp.le.s32.totalorder 1, %s26
    %p562 = scmp.lt.s32.totalorder %s26, 3
    %p563 = pnand %p561, %p562
    %p564 = pneg %p563
    // Predicated region
    $region97: #{attention_module_stage2.1} parent=5 // pred_check
      _
    $region98: #{attention_module_stage2.1} parent=5 // pred_check_branch
      %566 = sbr.rel (%p563) target = $region100
    $region99: #{attention_module_stage2.1} parent=5 // pred_region
      %s567 = ssub.s32 %s26, 1
      %p568 = scmp.lt.s32.totalorder %s31, 1
      %s569 = scalar_select %p568, %s31, 1
      %s570 = smul.addr %s569, 2
      %s571 = smul.addr %s570, 8
      %s572 = scalar_lea.vmem %s0, %s571
      %p573 = pneg %p52
      %p574 = pneg %p49
      %p575 = pneg %p73
      %p576 = pneg %p70
      %p577 = pneg %p94
      %p578 = pneg %p91
      %p579 = pneg %p115
      %p580 = pneg %p112
      %p581 = pneg %p136
      %p582 = pneg %p133
      %p583 = pneg %p157
      %p584 = pneg %p154
      %p585 = pneg %p178
      %p586 = pneg %p175
      %p587 = pneg %p199
      %p588 = pneg %p196
      %p589 = pneg %p220
      %p590 = pneg %p217
      %p591 = pneg %p241
      %p592 = pneg %p238
      %p593 = pneg %p262
      %p594 = pneg %p259
      %p595 = pneg %p283
      %p596 = pneg %p280
      %p597 = pneg %p304
      %p598 = pneg %p301
      %p599 = pneg %p325
      %p600 = pneg %p322
      %p601 = pneg %p346
      %p602 = pneg %p343
      %p603 = pneg %p367
      %p604 = pneg %p364
      %p605 = pneg %p388
      %p606 = pneg %p385
      %p607 = pneg %p409
      %p608 = pneg %p406
      %p609 = pneg %p430
      %p610 = pneg %p427
      %p611 = pneg %p451
      %p612 = pneg %p448
      %p613 = pneg %p477
      %p614 = pneg %p474
      %p615 = scmp.lt.s32.totalorder %s31, 1
      %s616 = scalar_select %p615, %s31, 1
      %s617 = smul.addr %s616, 2
      %s618 = smul.addr %s617, 8
      %s619 = scalar_lea.vmem %s20, %s618
      %p620 = scmp.lt.s32.totalorder %s31, 1
      %s621 = scalar_select %p620, %s31, 1
      %s622 = smul.addr %s621, 2
      %s623 = smul.addr %s622, 8
      %s624 = scalar_lea.vmem %s0, %s623
      %p625 = scmp.lt.s32.totalorder %s31, 1
      %s626 = scalar_select %p625, %s31, 1
      %s627 = smul.addr %s626, 2
      %s628 = smul.addr %s627, 8
      %s629 = scalar_lea.vmem %s20, %s628
      %v631 = vld [vmem:[%s624] sm:$0xff]
      %v632 = vld [vmem:[%s624 + $0x8] sm:$0xff]
      %v633 = vld [vmem:[%s1] sm:$0xf]
      %v634 = vld [vmem:[%s1 + $0x4] sm:$0xf]
      %v635 = vld [vmem:[%s1 + $0x8] sm:$0xf]
      %v636 = vld [vmem:[%s1 + $0xc] sm:$0xf]
      %v637 = vld [vmem:[%s1 + $0x10] sm:$0xf]
      %v638 = vld [vmem:[%s1 + $0x14] sm:$0xf]
      %v639 = vld [vmem:[%s1 + $0x18] sm:$0xf]
      %v640 = vld [vmem:[%s1 + $0x1c] sm:$0xf]
      %v641 = vld [vmem:[%s1 + $0x20] sm:$0xf]
      %v642 = vld [vmem:[%s1 + $0x24] sm:$0xf]
      %v643 = vld [vmem:[%s1 + $0x28] sm:$0xf]
      %v644 = vld [vmem:[%s1 + $0x2c] sm:$0xf]
      %v645 = vld [vmem:[%s1 + $0x30] sm:$0xf]
      %v646 = vld [vmem:[%s1 + $0x34] sm:$0xf]
      %v647 = vld [vmem:[%s1 + $0x38] sm:$0xf]
      %v648 = vld [vmem:[%s1 + $0x3c] sm:$0xf]
      %v649 = vld [vmem:[%s2] sm:$0xf]
      %v650 = vld [vmem:[%s2 + $0x4] sm:$0xf]
      %v651 = vld [vmem:[%s2 + $0x8] sm:$0xf]
      %v652 = vld [vmem:[%s2 + $0xc] sm:$0xf]
      %v653 = vld [vmem:[%s3] sm:$0xf]
      %v654 = vld [vmem:[%s3 + $0x4] sm:$0xf]
      %v655 = vld [vmem:[%s3 + $0x8] sm:$0xf]
      %v656 = vld [vmem:[%s3 + $0xc] sm:$0xf]
      %v657 = vadd.f32 %v631, %v632
      %658 = vadd.xlane.f32.xlu0 %v657
      %v659 = vpop.xlane.xlu0 %658
      %v660 = vrot.slane %v659, 4
      %v661 = vadd.f32 %v659, %v660
      %v662 = vrot.slane %v661, 2
      %v663 = vadd.f32 %v661, %v662
      %v664 = vrot.slane %v663, 1
      %v665 = vadd.f32 %v663, %v664
      %s666 = vtos %v665
      %v667 = vstv %s666
      %v668 = vrcp.pop 2048.0
      %v669 = vmul.f32 2048.0, %v668
      %v670 = vsub.f32 1.0, %v669
      %v671 = vmul.f32 %v668, %v670
      %v672 = vadd.f32 %v668, %v671
      %vm673 = vweird.f32 %v668
      %v674 = vsel %vm673, %v668, %v672
      %v675 = vmul.f32 %v667, %v674
      %v676 = vmul.f32 %v631, %v631
      %v677 = vmul.f32 %v632, %v632
      %v678 = vadd.f32 %v676, %v677
      %679 = vadd.xlane.f32.xlu0 %v678
      %v680 = vpop.xlane.xlu0 %679
      %v681 = vrot.slane %v680, 4
      %v682 = vadd.f32 %v680, %v681
      %v683 = vrot.slane %v682, 2
      %v684 = vadd.f32 %v682, %v683
      %v685 = vrot.slane %v684, 1
      %v686 = vadd.f32 %v684, %v685
      %s687 = vtos %v686
      %v688 = vstv %s687
      %v689 = vmul.f32 %v688, %v674
      %v690 = vmul.f32 %v675, %v675
      %v691 = vsub.f32 %v689, %v690
      %v692 = vmax.f32 %v691, 0.0
      %v693 = vsub.f32 %v631, %v675
      %v694 = vsub.f32 %v632, %v675
      %v695 = vadd.f32 %v692, 1e-05
      %v696 = vrsqrt.pop %v695
      %v697 = vmul.f32 %v696, %v695
      %v698 = vmul.f32 %v697, %v696
      %v699 = vmul.f32 0.5, %v698
      %v700 = vsub.f32 1.5, %v699
      %v701 = vmul.f32 %v696, %v700
      %vm702 = vweird.f32 %v695
      %vm703 = vweird.f32 %v696
      %vm704 = vmor %vm702, %vm703
      %v705 = vsel %vm704, %v696, %v701
      %v706 = vmul.f32 %v693, %v705
      %v707 = vmul.f32 %v694, %v705
      %v708 = vmul.f32 %v706, 0.2
      %v709 = vmul.f32 %v707, 0.2
      %v710 = vmax.f32 %v706, %v708
      %v711 = vmax.f32 %v707, %v709
      %v712 = vpack.c.bf16 %v711, %v710
      %v729 = vunpack.c.l.b16 %v633
      %v730 = vunpack.c.l.b16 %v634
      %v731 = vunpack.c.l.b16 %v635
      %v732 = vunpack.c.l.b16 %v636
      %v733 = vunpack.c.l.b16 %v637
      %v734 = vunpack.c.l.b16 %v638
      %v735 = vunpack.c.l.b16 %v639
      %v736 = vunpack.c.l.b16 %v640
      %v737 = vunpack.c.l.b16 %v641
      %v738 = vunpack.c.l.b16 %v642
      %v739 = vunpack.c.l.b16 %v643
      %v740 = vunpack.c.l.b16 %v644
      %v741 = vunpack.c.l.b16 %v645
      %v742 = vunpack.c.l.b16 %v646
      %v743 = vunpack.c.l.b16 %v647
      %v744 = vunpack.c.l.b16 %v648
      %v745 = vpack.c.b16 %v730, %v729
      %v746 = vpack.c.b16 %v732, %v731
      %v747 = vpack.c.b16 %v734, %v733
      %v748 = vpack.c.b16 %v736, %v735
      %v749 = vpack.c.b16 %v738, %v737
      %v750 = vpack.c.b16 %v740, %v739
      %v751 = vpack.c.b16 %v742, %v741
      %v752 = vpack.c.b16 %v744, %v743
      %761 = vmatpush.bf16.msra.mxu0 %v752
      %762 = vmatpush.bf16.msra.mxu0 %v751
      %763 = vmatpush.bf16.msra.mxu0 %v750
      %764 = vmatpush.bf16.msra.mxu0 %v749
      %765 = vmatpush.bf16.msra.mxu0 %v748
      %766 = vmatpush.bf16.msra.mxu0 %v747
      %767 = vmatpush.bf16.msra.mxu0 %v746
      %768 = vmatpush.bf16.msra.mxu0 %v745
      %769 = vmatmul.bf16.gmra.mxu0 %v712
      %v770 = vpop.f32.mrf.mxu0
      %v771 = vadd.f32 0.0, %v770
      %v772 = vpop.f32.mrf.mxu0
      %v773 = vadd.f32 0.0, %v772
      %774 = vdwg.mxu0
      %vm775 = vcmask 261120
      %v776 = vsel %vm775, %v771, 0.0
      %v777 = vsel %vm775, %v773, 0.0
      %v778 = vadd.f32 %v776, %v777
      %779 = vadd.xlane.f32.xlu0 %v778
      %v780 = vpop.xlane.xlu0 %779
      %v781 = vrot.slane %v780, 4
      %v782 = vadd.f32 %v780, %v781
      %v783 = vrot.slane %v782, 2
      %v784 = vadd.f32 %v782, %v783
      %v785 = vrot.slane %v784, 1
      %v786 = vadd.f32 %v784, %v785
      %s787 = vtos %v786
      %v788 = vstv %s787
      %v789 = vrcp.pop 512.0
      %v790 = vmul.f32 512.0, %v789
      %v791 = vsub.f32 1.0, %v790
      %v792 = vmul.f32 %v789, %v791
      %v793 = vadd.f32 %v789, %v792
      %vm794 = vweird.f32 %v789
      %v795 = vsel %vm794, %v789, %v793
      %v796 = vmul.f32 %v788, %v795
      %v797 = vmul.f32 %v771, %v771
      %v798 = vmul.f32 %v773, %v773
      %v799 = vsel %vm775, %v797, 0.0
      %v800 = vsel %vm775, %v798, 0.0
      %v801 = vadd.f32 %v799, %v800
      %802 = vadd.xlane.f32.xlu0 %v801
      %v803 = vpop.xlane.xlu0 %802
      %v804 = vrot.slane %v803, 4
      %v805 = vadd.f32 %v803, %v804
      %v806 = vrot.slane %v805, 2
      %v807 = vadd.f32 %v805, %v806
      %v808 = vrot.slane %v807, 1
      %v809 = vadd.f32 %v807, %v808
      %s810 = vtos %v809
      %v811 = vstv %s810
      %v812 = vmul.f32 %v811, %v795
      %v813 = vmul.f32 %v796, %v796
      %v814 = vsub.f32 %v812, %v813
      %v815 = vmax.f32 %v814, 0.0
      %v816 = vsub.f32 %v771, %v796
      %v817 = vsub.f32 %v773, %v796
      %v818 = vadd.f32 %v815, 1e-05
      %v819 = vrsqrt.pop %v818
      %v820 = vmul.f32 %v819, %v818
      %v821 = vmul.f32 %v820, %v819
      %v822 = vmul.f32 0.5, %v821
      %v823 = vsub.f32 1.5, %v822
      %v824 = vmul.f32 %v819, %v823
      %vm825 = vweird.f32 %v818
      %vm826 = vweird.f32 %v819
      %vm827 = vmor %vm825, %vm826
      %v828 = vsel %vm827, %v819, %v824
      %v829 = vmul.f32 %v816, %v828
      %v830 = vmul.f32 %v817, %v828
      %v831 = vmul.f32 %v829, 0.2
      %v832 = vmul.f32 %v830, 0.2
      %v833 = vmax.f32 %v829, %v831
      %v834 = vmax.f32 %v830, %v832
      %v835 = vpack.c.bf16 %v834, %v833
      %v840 = vunpack.c.l.b16 %v649
      %v841 = vunpack.c.l.b16 %v650
      %v842 = vunpack.c.l.b16 %v651
      %v843 = vunpack.c.l.b16 %v652
      %v844 = vpack.c.b16 %v841, %v840
      %v845 = vpack.c.b16 %v843, %v842
      %v849 = vsel %vm775, %v835, 0
      %851 = vmatpush.bf16.msra.mxu0 0
      %852 = vmatpush.bf16.msra.mxu0 0
      %853 = vmatpush.bf16.msra.mxu0 0
      %854 = vmatpush.bf16.msra.mxu0 0
      %855 = vmatpush.bf16.msra.mxu0 0
      %856 = vmatpush.bf16.msra.mxu0 0
      %857 = vmatpush.bf16.msra.mxu0 %v845
      %858 = vmatpush.bf16.msra.mxu0 %v844
      %859 = vmatmul.bf16.gmra.mxu0 %v849
      %v860 = vpop.f32.mrf.mxu0
      %v861 = vadd.f32 0.0, %v860
      %v862 = vpop.f32.mrf.mxu0
      %v863 = vadd.f32 0.0, %v862
      %864 = vdwg.mxu0
      %v866 = vrot.slane %v861, 1
      %vm869 = vcmask 1040384
      %v870 = vrot.slane %v861, 7
      %v871 = vrot.slane %v863, 7
      %v872 = vsel %vm869, %v870, %v871
      %v875 = vsel %vm869, %v866, %v870
      %vm876 = vcmask 1046528
      %v877 = vrot.slane %v863, 1
      %v878 = vsel %vm876, %v866, %v877
      %v881 = vsel %vm876, %v877, %v871
      %882 = vrot.lane.b32.xlu0 %v861, 96
      %v883 = vpop.permute.xlu0 %882
      %884 = vrot.lane.b32.xlu0 %v863, 96
      %v885 = vpop.permute.xlu0 %884
      %v888 = vadd.f32 %v875, %v883
      %v889 = vadd.f32 %v872, %v885
      %891 = vrot.lane.b32.xlu0 %v878, 64
      %v892 = vpop.permute.xlu0 %891
      %893 = vrot.lane.b32.xlu0 %v881, 64
      %v894 = vpop.permute.xlu0 %893
      %v897 = vadd.f32 %v888, %v892
      %v898 = vadd.f32 %v889, %v894
      %v899 = vsel %vm775, %v897, 0.0
      %v900 = vsel %vm775, %v898, 0.0
      %v901 = vadd.f32 %v899, %v900
      %902 = vadd.xlane.f32.xlu0 %v901
      %v903 = vpop.xlane.xlu0 %902
      %v904 = vrot.slane %v903, 4
      %v905 = vadd.f32 %v903, %v904
      %v906 = vrot.slane %v905, 2
      %v907 = vadd.f32 %v905, %v906
      %v908 = vrot.slane %v907, 1
      %v909 = vadd.f32 %v907, %v908
      %s910 = vtos %v909
      %v911 = vstv %s910
      %v912 = vmul.f32 %v911, %v795
      %v913 = vmul.f32 %v897, %v897
      %v914 = vmul.f32 %v898, %v898
      %v915 = vsel %vm775, %v913, 0.0
      %v916 = vsel %vm775, %v914, 0.0
      %v917 = vadd.f32 %v915, %v916
      %918 = vadd.xlane.f32.xlu0 %v917
      %v919 = vpop.xlane.xlu0 %918
      %v920 = vrot.slane %v919, 4
      %v921 = vadd.f32 %v919, %v920
      %v922 = vrot.slane %v921, 2
      %v923 = vadd.f32 %v921, %v922
      %v924 = vrot.slane %v923, 1
      %v925 = vadd.f32 %v923, %v924
      %s926 = vtos %v925
      %v927 = vstv %s926
      %v928 = vmul.f32 %v927, %v795
      %v929 = vmul.f32 %v912, %v912
      %v930 = vsub.f32 %v928, %v929
      %v931 = vmax.f32 %v930, 0.0
      %v932 = vsub.f32 %v897, %v912
      %v933 = vsub.f32 %v898, %v912
      %v934 = vadd.f32 %v931, 1e-05
      %v935 = vrsqrt.pop %v934
      %v936 = vmul.f32 %v935, %v934
      %v937 = vmul.f32 %v936, %v935
      %v938 = vmul.f32 0.5, %v937
      %v939 = vsub.f32 1.5, %v938
      %v940 = vmul.f32 %v935, %v939
      %vm941 = vweird.f32 %v934
      %vm942 = vweird.f32 %v935
      %vm943 = vmor %vm941, %vm942
      %v944 = vsel %vm943, %v935, %v940
      %v945 = vmul.f32 %v932, %v944
      %v946 = vmul.f32 %v933, %v944
      %v947 = vmul.f32 %v945, 0.2
      %v948 = vmul.f32 %v946, 0.2
      %v949 = vmax.f32 %v945, %v947
      %v950 = vmax.f32 %v946, %v948
      %v951 = vpack.c.bf16 %v950, %v949
      %v956 = vunpack.c.l.b16 %v653
      %v957 = vunpack.c.l.b16 %v654
      %v958 = vunpack.c.l.b16 %v655
      %v959 = vunpack.c.l.b16 %v656
      %v960 = vpack.c.b16 %v957, %v956
      %v961 = vpack.c.b16 %v959, %v958
      %v965 = vsel %vm775, %v951, 0
      %967 = vmatpush.bf16.msra.mxu0 0
      %968 = vmatpush.bf16.msra.mxu0 0
      %969 = vmatpush.bf16.msra.mxu0 0
      %970 = vmatpush.bf16.msra.mxu0 0
      %971 = vmatpush.bf16.msra.mxu0 0
      %972 = vmatpush.bf16.msra.mxu0 0
      %973 = vmatpush.bf16.msra.mxu0 %v961
      %974 = vmatpush.bf16.msra.mxu0 %v960
      %975 = vmatmul.bf16.gmra.mxu0 %v965
      %v976 = vpop.f32.mrf.mxu0
      %v977 = vadd.f32 %v631, %v976
      %v978 = vpop.f32.mrf.mxu0
      %v979 = vadd.f32 %v632, %v978
      %980 = vdwg.mxu0
      %s981 = scalar_lea.vmem %s1, 64
      %v982 = vld [vmem:[%s981] sm:$0xf]
      %v983 = vld [vmem:[%s981 + $0x4] sm:$0xf]
      %v984 = vld [vmem:[%s981 + $0x8] sm:$0xf]
      %v985 = vld [vmem:[%s981 + $0xc] sm:$0xf]
      %v986 = vld [vmem:[%s981 + $0x10] sm:$0xf]
      %v987 = vld [vmem:[%s981 + $0x14] sm:$0xf]
      %v988 = vld [vmem:[%s981 + $0x18] sm:$0xf]
      %v989 = vld [vmem:[%s981 + $0x1c] sm:$0xf]
      %v990 = vld [vmem:[%s981 + $0x20] sm:$0xf]
      %v991 = vld [vmem:[%s981 + $0x24] sm:$0xf]
      %v992 = vld [vmem:[%s981 + $0x28] sm:$0xf]
      %v993 = vld [vmem:[%s981 + $0x2c] sm:$0xf]
      %v994 = vld [vmem:[%s981 + $0x30] sm:$0xf]
      %v995 = vld [vmem:[%s981 + $0x34] sm:$0xf]
      %v996 = vld [vmem:[%s981 + $0x38] sm:$0xf]
      %v997 = vld [vmem:[%s981 + $0x3c] sm:$0xf]
      %s998 = scalar_lea.vmem %s2, 16
      %v999 = vld [vmem:[%s998] sm:$0xf]
      %v1000 = vld [vmem:[%s998 + $0x4] sm:$0xf]
      %v1001 = vld [vmem:[%s998 + $0x8] sm:$0xf]
      %v1002 = vld [vmem:[%s998 + $0xc] sm:$0xf]
      %s1003 = scalar_lea.vmem %s3, 16
      %v1004 = vld [vmem:[%s1003] sm:$0xf]
      %v1005 = vld [vmem:[%s1003 + $0x4] sm:$0xf]
      %v1006 = vld [vmem:[%s1003 + $0x8] sm:$0xf]
      %v1007 = vld [vmem:[%s1003 + $0xc] sm:$0xf]
      %v1008 = vadd.f32 %v977, %v979
      %1009 = vadd.xlane.f32.xlu0 %v1008
      %v1010 = vpop.xlane.xlu0 %1009
      %v1011 = vrot.slane %v1010, 4
      %v1012 = vadd.f32 %v1010, %v1011
      %v1013 = vrot.slane %v1012, 2
      %v1014 = vadd.f32 %v1012, %v1013
      %v1015 = vrot.slane %v1014, 1
      %v1016 = vadd.f32 %v1014, %v1015
      %s1017 = vtos %v1016
      %v1018 = vstv %s1017
      %v1019 = vmul.f32 %v1018, %v674
      %v1020 = vmul.f32 %v977, %v977
      %v1021 = vmul.f32 %v979, %v979
      %v1022 = vadd.f32 %v1020, %v1021
      %1023 = vadd.xlane.f32.xlu0 %v1022
      %v1024 = vpop.xlane.xlu0 %1023
      %v1025 = vrot.slane %v1024, 4
      %v1026 = vadd.f32 %v1024, %v1025
      %v1027 = vrot.slane %v1026, 2
      %v1028 = vadd.f32 %v1026, %v1027
      %v1029 = vrot.slane %v1028, 1
      %v1030 = vadd.f32 %v1028, %v1029
      %s1031 = vtos %v1030
      %v1032 = vstv %s1031
      %v1033 = vmul.f32 %v1032, %v674
      %v1034 = vmul.f32 %v1019, %v1019
      %v1035 = vsub.f32 %v1033, %v1034
      %v1036 = vmax.f32 %v1035, 0.0
      %v1037 = vsub.f32 %v977, %v1019
      %v1038 = vsub.f32 %v979, %v1019
      %v1039 = vadd.f32 %v1036, 1e-05
      %v1040 = vrsqrt.pop %v1039
      %v1041 = vmul.f32 %v1040, %v1039
      %v1042 = vmul.f32 %v1041, %v1040
      %v1043 = vmul.f32 0.5, %v1042
      %v1044 = vsub.f32 1.5, %v1043
      %v1045 = vmul.f32 %v1040, %v1044
      %vm1046 = vweird.f32 %v1039
      %vm1047 = vweird.f32 %v1040
      %vm1048 = vmor %vm1046, %vm1047
      %v1049 = vsel %vm1048, %v1040, %v1045
      %v1050 = vmul.f32 %v1037, %v1049
      %v1051 = vmul.f32 %v1038, %v1049
      %v1052 = vmul.f32 %v1050, 0.2
      %v1053 = vmul.f32 %v1051, 0.2
      %v1054 = vmax.f32 %v1050, %v1052
      %v1055 = vmax.f32 %v1051, %v1053
      %v1056 = vpack.c.bf16 %v1055, %v1054
      %v1073 = vunpack.c.l.b16 %v982
      %v1074 = vunpack.c.l.b16 %v983
      %v1075 = vunpack.c.l.b16 %v984
      %v1076 = vunpack.c.l.b16 %v985
      %v1077 = vunpack.c.l.b16 %v986
      %v1078 = vunpack.c.l.b16 %v987
      %v1079 = vunpack.c.l.b16 %v988
      %v1080 = vunpack.c.l.b16 %v989
      %v1081 = vunpack.c.l.b16 %v990
      %v1082 = vunpack.c.l.b16 %v991
      %v1083 = vunpack.c.l.b16 %v992
      %v1084 = vunpack.c.l.b16 %v993
      %v1085 = vunpack.c.l.b16 %v994
      %v1086 = vunpack.c.l.b16 %v995
      %v1087 = vunpack.c.l.b16 %v996
      %v1088 = vunpack.c.l.b16 %v997
      %v1089 = vpack.c.b16 %v1074, %v1073
      %v1090 = vpack.c.b16 %v1076, %v1075
      %v1091 = vpack.c.b16 %v1078, %v1077
      %v1092 = vpack.c.b16 %v1080, %v1079
      %v1093 = vpack.c.b16 %v1082, %v1081
      %v1094 = vpack.c.b16 %v1084, %v1083
      %v1095 = vpack.c.b16 %v1086, %v1085
      %v1096 = vpack.c.b16 %v1088, %v1087
      %1105 = vmatpush.bf16.msra.mxu0 %v1096
      %1106 = vmatpush.bf16.msra.mxu0 %v1095
      %1107 = vmatpush.bf16.msra.mxu0 %v1094
      %1108 = vmatpush.bf16.msra.mxu0 %v1093
      %1109 = vmatpush.bf16.msra.mxu0 %v1092
      %1110 = vmatpush.bf16.msra.mxu0 %v1091
      %1111 = vmatpush.bf16.msra.mxu0 %v1090
      %1112 = vmatpush.bf16.msra.mxu0 %v1089
      %1113 = vmatmul.bf16.gmra.mxu0 %v1056
      %v1114 = vpop.f32.mrf.mxu0
      %v1115 = vadd.f32 0.0, %v1114
      %v1116 = vpop.f32.mrf.mxu0
      %v1117 = vadd.f32 0.0, %v1116
      %1118 = vdwg.mxu0
      %v1119 = vsel %vm775, %v1115, 0.0
      %v1120 = vsel %vm775, %v1117, 0.0
      %v1121 = vadd.f32 %v1119, %v1120
      %1122 = vadd.xlane.f32.xlu0 %v1121
      %v1123 = vpop.xlane.xlu0 %1122
      %v1124 = vrot.slane %v1123, 4
      %v1125 = vadd.f32 %v1123, %v1124
      %v1126 = vrot.slane %v1125, 2
      %v1127 = vadd.f32 %v1125, %v1126
      %v1128 = vrot.slane %v1127, 1
      %v1129 = vadd.f32 %v1127, %v1128
      %s1130 = vtos %v1129
      %v1131 = vstv %s1130
      %v1132 = vmul.f32 %v1131, %v795
      %v1133 = vmul.f32 %v1115, %v1115
      %v1134 = vmul.f32 %v1117, %v1117
      %v1135 = vsel %vm775, %v1133, 0.0
      %v1136 = vsel %vm775, %v1134, 0.0
      %v1137 = vadd.f32 %v1135, %v1136
      %1138 = vadd.xlane.f32.xlu0 %v1137
      %v1139 = vpop.xlane.xlu0 %1138
      %v1140 = vrot.slane %v1139, 4
      %v1141 = vadd.f32 %v1139, %v1140
      %v1142 = vrot.slane %v1141, 2
      %v1143 = vadd.f32 %v1141, %v1142
      %v1144 = vrot.slane %v1143, 1
      %v1145 = vadd.f32 %v1143, %v1144
      %s1146 = vtos %v1145
      %v1147 = vstv %s1146
      %v1148 = vmul.f32 %v1147, %v795
      %v1149 = vmul.f32 %v1132, %v1132
      %v1150 = vsub.f32 %v1148, %v1149
      %v1151 = vmax.f32 %v1150, 0.0
      %v1152 = vsub.f32 %v1115, %v1132
      %v1153 = vsub.f32 %v1117, %v1132
      %v1154 = vadd.f32 %v1151, 1e-05
      %v1155 = vrsqrt.pop %v1154
      %v1156 = vmul.f32 %v1155, %v1154
      %v1157 = vmul.f32 %v1156, %v1155
      %v1158 = vmul.f32 0.5, %v1157
      %v1159 = vsub.f32 1.5, %v1158
      %v1160 = vmul.f32 %v1155, %v1159
      %vm1161 = vweird.f32 %v1154
      %vm1162 = vweird.f32 %v1155
      %vm1163 = vmor %vm1161, %vm1162
      %v1164 = vsel %vm1163, %v1155, %v1160
      %v1165 = vmul.f32 %v1152, %v1164
      %v1166 = vmul.f32 %v1153, %v1164
      %v1167 = vmul.f32 %v1165, 0.2
      %v1168 = vmul.f32 %v1166, 0.2
      %v1169 = vmax.f32 %v1165, %v1167
      %v1170 = vmax.f32 %v1166, %v1168
      %v1171 = vpack.c.bf16 %v1170, %v1169
      %v1176 = vunpack.c.l.b16 %v999
      %v1177 = vunpack.c.l.b16 %v1000
      %v1178 = vunpack.c.l.b16 %v1001
      %v1179 = vunpack.c.l.b16 %v1002
      %v1180 = vpack.c.b16 %v1177, %v1176
      %v1181 = vpack.c.b16 %v1179, %v1178
      %v1185 = vsel %vm775, %v1171, 0
      %1187 = vmatpush.bf16.msra.mxu0 0
      %1188 = vmatpush.bf16.msra.mxu0 0
      %1189 = vmatpush.bf16.msra.mxu0 0
      %1190 = vmatpush.bf16.msra.mxu0 0
      %1191 = vmatpush.bf16.msra.mxu0 0
      %1192 = vmatpush.bf16.msra.mxu0 0
      %1193 = vmatpush.bf16.msra.mxu0 %v1181
      %1194 = vmatpush.bf16.msra.mxu0 %v1180
      %1195 = vmatmul.bf16.gmra.mxu0 %v1185
      %v1196 = vpop.f32.mrf.mxu0
      %v1197 = vadd.f32 0.0, %v1196
      %v1198 = vpop.f32.mrf.mxu0
      %v1199 = vadd.f32 0.0, %v1198
      %1200 = vdwg.mxu0
      %v1202 = vrot.slane %v1197, 1
      %v1205 = vrot.slane %v1197, 7
      %v1206 = vrot.slane %v1199, 7
      %v1207 = vsel %vm869, %v1205, %v1206
      %v1210 = vsel %vm869, %v1202, %v1205
      %v1211 = vrot.slane %v1199, 1
      %v1212 = vsel %vm876, %v1202, %v1211
      %v1215 = vsel %vm876, %v1211, %v1206
      %1216 = vrot.lane.b32.xlu0 %v1197, 96
      %v1217 = vpop.permute.xlu0 %1216
      %1218 = vrot.lane.b32.xlu0 %v1199, 96
      %v1219 = vpop.permute.xlu0 %1218
      %v1222 = vadd.f32 %v1210, %v1217
      %v1223 = vadd.f32 %v1207, %v1219
      %1225 = vrot.lane.b32.xlu0 %v1212, 64
      %v1226 = vpop.permute.xlu0 %1225
      %1227 = vrot.lane.b32.xlu0 %v1215, 64
      %v1228 = vpop.permute.xlu0 %1227
      %v1231 = vadd.f32 %v1222, %v1226
      %v1232 = vadd.f32 %v1223, %v1228
      %v1233 = vsel %vm775, %v1231, 0.0
      %v1234 = vsel %vm775, %v1232, 0.0
      %v1235 = vadd.f32 %v1233, %v1234
      %1236 = vadd.xlane.f32.xlu0 %v1235
      %v1237 = vpop.xlane.xlu0 %1236
      %v1238 = vrot.slane %v1237, 4
      %v1239 = vadd.f32 %v1237, %v1238
      %v1240 = vrot.slane %v1239, 2
      %v1241 = vadd.f32 %v1239, %v1240
      %v1242 = vrot.slane %v1241, 1
      %v1243 = vadd.f32 %v1241, %v1242
      %s1244 = vtos %v1243
      %v1245 = vstv %s1244
      %v1246 = vmul.f32 %v1245, %v795
      %v1247 = vmul.f32 %v1231, %v1231
      %v1248 = vmul.f32 %v1232, %v1232
      %v1249 = vsel %vm775, %v1247, 0.0
      %v1250 = vsel %vm775, %v1248, 0.0
      %v1251 = vadd.f32 %v1249, %v1250
      %1252 = vadd.xlane.f32.xlu0 %v1251
      %v1253 = vpop.xlane.xlu0 %1252
      %v1254 = vrot.slane %v1253, 4
      %v1255 = vadd.f32 %v1253, %v1254
      %v1256 = vrot.slane %v1255, 2
      %v1257 = vadd.f32 %v1255, %v1256
      %v1258 = vrot.slane %v1257, 1
      %v1259 = vadd.f32 %v1257, %v1258
      %s1260 = vtos %v1259
      %v1261 = vstv %s1260
      %v1262 = vmul.f32 %v1261, %v795
      %v1263 = vmul.f32 %v1246, %v1246
      %v1264 = vsub.f32 %v1262, %v1263
      %v1265 = vmax.f32 %v1264, 0.0
      %v1266 = vsub.f32 %v1231, %v1246
      %v1267 = vsub.f32 %v1232, %v1246
      %v1268 = vadd.f32 %v1265, 1e-05
      %v1269 = vrsqrt.pop %v1268
      %v1270 = vmul.f32 %v1269, %v1268
      %v1271 = vmul.f32 %v1270, %v1269
      %v1272 = vmul.f32 0.5, %v1271
      %v1273 = vsub.f32 1.5, %v1272
      %v1274 = vmul.f32 %v1269, %v1273
      %vm1275 = vweird.f32 %v1268
      %vm1276 = vweird.f32 %v1269
      %vm1277 = vmor %vm1275, %vm1276
      %v1278 = vsel %vm1277, %v1269, %v1274
      %v1279 = vmul.f32 %v1266, %v1278
      %v1280 = vmul.f32 %v1267, %v1278
      %v1281 = vmul.f32 %v1279, 0.2
      %v1282 = vmul.f32 %v1280, 0.2
      %v1283 = vmax.f32 %v1279, %v1281
      %v1284 = vmax.f32 %v1280, %v1282
      %v1285 = vpack.c.bf16 %v1284, %v1283
      %v1290 = vunpack.c.l.b16 %v1004
      %v1291 = vunpack.c.l.b16 %v1005
      %v1292 = vunpack.c.l.b16 %v1006
      %v1293 = vunpack.c.l.b16 %v1007
      %v1294 = vpack.c.b16 %v1291, %v1290
      %v1295 = vpack.c.b16 %v1293, %v1292
      %v1299 = vsel %vm775, %v1285, 0
      %1301 = vmatpush.bf16.msra.mxu0 0
      %1302 = vmatpush.bf16.msra.mxu0 0
      %1303 = vmatpush.bf16.msra.mxu0 0
      %1304 = vmatpush.bf16.msra.mxu0 0
      %1305 = vmatpush.bf16.msra.mxu0 0
      %1306 = vmatpush.bf16.msra.mxu0 0
      %1307 = vmatpush.bf16.msra.mxu0 %v1295
      %1308 = vmatpush.bf16.msra.mxu0 %v1294
      %1309 = vmatmul.bf16.gmra.mxu0 %v1299
      %v1310 = vpop.f32.mrf.mxu0
      %v1311 = vadd.f32 %v977, %v1310
      %v1312 = vpop.f32.mrf.mxu0
      %v1313 = vadd.f32 %v979, %v1312
      %1314 = vdwg.mxu0
      %s1315 = scalar_lea.vmem %s1, 128
      %v1316 = vld [vmem:[%s1315] sm:$0xf]
      %v1317 = vld [vmem:[%s1315 + $0x4] sm:$0xf]
      %v1318 = vld [vmem:[%s1315 + $0x8] sm:$0xf]
      %v1319 = vld [vmem:[%s1315 + $0xc] sm:$0xf]
      %v1320 = vld [vmem:[%s1315 + $0x10] sm:$0xf]
      %v1321 = vld [vmem:[%s1315 + $0x14] sm:$0xf]
      %v1322 = vld [vmem:[%s1315 + $0x18] sm:$0xf]
      %v1323 = vld [vmem:[%s1315 + $0x1c] sm:$0xf]
      %v1324 = vld [vmem:[%s1315 + $0x20] sm:$0xf]
      %v1325 = vld [vmem:[%s1315 + $0x24] sm:$0xf]
      %v1326 = vld [vmem:[%s1315 + $0x28] sm:$0xf]
      %v1327 = vld [vmem:[%s1315 + $0x2c] sm:$0xf]
      %v1328 = vld [vmem:[%s1315 + $0x30] sm:$0xf]
      %v1329 = vld [vmem:[%s1315 + $0x34] sm:$0xf]
      %v1330 = vld [vmem:[%s1315 + $0x38] sm:$0xf]
      %v1331 = vld [vmem:[%s1315 + $0x3c] sm:$0xf]
      %s1332 = scalar_lea.vmem %s2, 32
      %v1333 = vld [vmem:[%s1332] sm:$0xf]
      %v1334 = vld [vmem:[%s1332 + $0x4] sm:$0xf]
      %v1335 = vld [vmem:[%s1332 + $0x8] sm:$0xf]
      %v1336 = vld [vmem:[%s1332 + $0xc] sm:$0xf]
      %s1337 = scalar_lea.vmem %s3, 32
      %v1338 = vld [vmem:[%s1337] sm:$0xf]
      %v1339 = vld [vmem:[%s1337 + $0x4] sm:$0xf]
      %v1340 = vld [vmem:[%s1337 + $0x8] sm:$0xf]
      %v1341 = vld [vmem:[%s1337 + $0xc] sm:$0xf]
      %v1342 = vadd.f32 %v1311, %v1313
      %1343 = vadd.xlane.f32.xlu0 %v1342
      %v1344 = vpop.xlane.xlu0 %1343
      %v1345 = vrot.slane %v1344, 4
      %v1346 = vadd.f32 %v1344, %v1345
      %v1347 = vrot.slane %v1346, 2
      %v1348 = vadd.f32 %v1346, %v1347
      %v1349 = vrot.slane %v1348, 1
      %v1350 = vadd.f32 %v1348, %v1349
      %s1351 = vtos %v1350
      %v1352 = vstv %s1351
      %v1353 = vmul.f32 %v1352, %v674
      %v1354 = vmul.f32 %v1311, %v1311
      %v1355 = vmul.f32 %v1313, %v1313
      %v1356 = vadd.f32 %v1354, %v1355
      %1357 = vadd.xlane.f32.xlu0 %v1356
      %v1358 = vpop.xlane.xlu0 %1357
      %v1359 = vrot.slane %v1358, 4
      %v1360 = vadd.f32 %v1358, %v1359
      %v1361 = vrot.slane %v1360, 2
      %v1362 = vadd.f32 %v1360, %v1361
      %v1363 = vrot.slane %v1362, 1
      %v1364 = vadd.f32 %v1362, %v1363
      %s1365 = vtos %v1364
      %v1366 = vstv %s1365
      %v1367 = vmul.f32 %v1366, %v674
      %v1368 = vmul.f32 %v1353, %v1353
      %v1369 = vsub.f32 %v1367, %v1368
      %v1370 = vmax.f32 %v1369, 0.0
      %v1371 = vsub.f32 %v1311, %v1353
      %v1372 = vsub.f32 %v1313, %v1353
      %v1373 = vadd.f32 %v1370, 1e-05
      %v1374 = vrsqrt.pop %v1373
      %v1375 = vmul.f32 %v1374, %v1373
      %v1376 = vmul.f32 %v1375, %v1374
      %v1377 = vmul.f32 0.5, %v1376
      %v1378 = vsub.f32 1.5, %v1377
      %v1379 = vmul.f32 %v1374, %v1378
      %vm1380 = vweird.f32 %v1373
      %vm1381 = vweird.f32 %v1374
      %vm1382 = vmor %vm1380, %vm1381
      %v1383 = vsel %vm1382, %v1374, %v1379
      %v1384 = vmul.f32 %v1371, %v1383
      %v1385 = vmul.f32 %v1372, %v1383
      %v1386 = vmul.f32 %v1384, 0.2
      %v1387 = vmul.f32 %v1385, 0.2
      %v1388 = vmax.f32 %v1384, %v1386
      %v1389 = vmax.f32 %v1385, %v1387
      %v1390 = vpack.c.bf16 %v1389, %v1388
      %v1407 = vunpack.c.l.b16 %v1316
      %v1408 = vunpack.c.l.b16 %v1317
      %v1409 = vunpack.c.l.b16 %v1318
      %v1410 = vunpack.c.l.b16 %v1319
      %v1411 = vunpack.c.l.b16 %v1320
      %v1412 = vunpack.c.l.b16 %v1321
      %v1413 = vunpack.c.l.b16 %v1322
      %v1414 = vunpack.c.l.b16 %v1323
      %v1415 = vunpack.c.l.b16 %v1324
      %v1416 = vunpack.c.l.b16 %v1325
      %v1417 = vunpack.c.l.b16 %v1326
      %v1418 = vunpack.c.l.b16 %v1327
      %v1419 = vunpack.c.l.b16 %v1328
      %v1420 = vunpack.c.l.b16 %v1329
      %v1421 = vunpack.c.l.b16 %v1330
      %v1422 = vunpack.c.l.b16 %v1331
      %v1423 = vpack.c.b16 %v1408, %v1407
      %v1424 = vpack.c.b16 %v1410, %v1409
      %v1425 = vpack.c.b16 %v1412, %v1411
      %v1426 = vpack.c.b16 %v1414, %v1413
      %v1427 = vpack.c.b16 %v1416, %v1415
      %v1428 = vpack.c.b16 %v1418, %v1417
      %v1429 = vpack.c.b16 %v1420, %v1419
      %v1430 = vpack.c.b16 %v1422, %v1421
      %1439 = vmatpush.bf16.msra.mxu0 %v1430
      %1440 = vmatpush.bf16.msra.mxu0 %v1429
      %1441 = vmatpush.bf16.msra.mxu0 %v1428
      %1442 = vmatpush.bf16.msra.mxu0 %v1427
      %1443 = vmatpush.bf16.msra.mxu0 %v1426
      %1444 = vmatpush.bf16.msra.mxu0 %v1425
      %1445 = vmatpush.bf16.msra.mxu0 %v1424
      %1446 = vmatpush.bf16.msra.mxu0 %v1423
      %1447 = vmatmul.bf16.gmra.mxu0 %v1390
      %v1448 = vpop.f32.mrf.mxu0
      %v1449 = vadd.f32 0.0, %v1448
      %v1450 = vpop.f32.mrf.mxu0
      %v1451 = vadd.f32 0.0, %v1450
      %1452 = vdwg.mxu0
      %v1453 = vsel %vm775, %v1449, 0.0
      %v1454 = vsel %vm775, %v1451, 0.0
      %v1455 = vadd.f32 %v1453, %v1454
      %1456 = vadd.xlane.f32.xlu0 %v1455
      %v1457 = vpop.xlane.xlu0 %1456
      %v1458 = vrot.slane %v1457, 4
      %v1459 = vadd.f32 %v1457, %v1458
      %v1460 = vrot.slane %v1459, 2
      %v1461 = vadd.f32 %v1459, %v1460
      %v1462 = vrot.slane %v1461, 1
      %v1463 = vadd.f32 %v1461, %v1462
      %s1464 = vtos %v1463
      %v1465 = vstv %s1464
      %v1466 = vmul.f32 %v1465, %v795
      %v1467 = vmul.f32 %v1449, %v1449
      %v1468 = vmul.f32 %v1451, %v1451
      %v1469 = vsel %vm775, %v1467, 0.0
      %v1470 = vsel %vm775, %v1468, 0.0
      %v1471 = vadd.f32 %v1469, %v1470
      %1472 = vadd.xlane.f32.xlu0 %v1471
      %v1473 = vpop.xlane.xlu0 %1472
      %v1474 = vrot.slane %v1473, 4
      %v1475 = vadd.f32 %v1473, %v1474
      %v1476 = vrot.slane %v1475, 2
      %v1477 = vadd.f32 %v1475, %v1476
      %v1478 = vrot.slane %v1477, 1
      %v1479 = vadd.f32 %v1477, %v1478
      %s1480 = vtos %v1479
      %v1481 = vstv %s1480
      %v1482 = vmul.f32 %v1481, %v795
      %v1483 = vmul.f32 %v1466, %v1466
      %v1484 = vsub.f32 %v1482, %v1483
      %v1485 = vmax.f32 %v1484, 0.0
      %v1486 = vsub.f32 %v1449, %v1466
      %v1487 = vsub.f32 %v1451, %v1466
      %v1488 = vadd.f32 %v1485, 1e-05
      %v1489 = vrsqrt.pop %v1488
      %v1490 = vmul.f32 %v1489, %v1488
      %v1491 = vmul.f32 %v1490, %v1489
      %v1492 = vmul.f32 0.5, %v1491
      %v1493 = vsub.f32 1.5, %v1492
      %v1494 = vmul.f32 %v1489, %v1493
      %vm1495 = vweird.f32 %v1488
      %vm1496 = vweird.f32 %v1489
      %vm1497 = vmor %vm1495, %vm1496
      %v1498 = vsel %vm1497, %v1489, %v1494
      %v1499 = vmul.f32 %v1486, %v1498
      %v1500 = vmul.f32 %v1487, %v1498
      %v1501 = vmul.f32 %v1499, 0.2
      %v1502 = vmul.f32 %v1500, 0.2
      %v1503 = vmax.f32 %v1499, %v1501
      %v1504 = vmax.f32 %v1500, %v1502
      %v1505 = vpack.c.bf16 %v1504, %v1503
      %v1510 = vunpack.c.l.b16 %v1333
      %v1511 = vunpack.c.l.b16 %v1334
      %v1512 = vunpack.c.l.b16 %v1335
      %v1513 = vunpack.c.l.b16 %v1336
      %v1514 = vpack.c.b16 %v1511, %v1510
      %v1515 = vpack.c.b16 %v1513, %v1512
      %v1519 = vsel %vm775, %v1505, 0
      %1521 = vmatpush.bf16.msra.mxu0 0
      %1522 = vmatpush.bf16.msra.mxu0 0
      %1523 = vmatpush.bf16.msra.mxu0 0
      %1524 = vmatpush.bf16.msra.mxu0 0
      %1525 = vmatpush.bf16.msra.mxu0 0
      %1526 = vmatpush.bf16.msra.mxu0 0
      %1527 = vmatpush.bf16.msra.mxu0 %v1515
      %1528 = vmatpush.bf16.msra.mxu0 %v1514
      %1529 = vmatmul.bf16.gmra.mxu0 %v1519
      %v1530 = vpop.f32.mrf.mxu0
      %v1531 = vadd.f32 0.0, %v1530
      %v1532 = vpop.f32.mrf.mxu0
      %v1533 = vadd.f32 0.0, %v1532
      %1534 = vdwg.mxu0
      %v1536 = vrot.slane %v1531, 1
      %v1539 = vrot.slane %v1531, 7
      %v1540 = vrot.slane %v1533, 7
      %v1541 = vsel %vm869, %v1539, %v1540
      %v1544 = vsel %vm869, %v1536, %v1539
      %v1545 = vrot.slane %v1533, 1
      %v1546 = vsel %vm876, %v1536, %v1545
      %v1549 = vsel %vm876, %v1545, %v1540
      %1550 = vrot.lane.b32.xlu0 %v1531, 96
      %v1551 = vpop.permute.xlu0 %1550
      %1552 = vrot.lane.b32.xlu0 %v1533, 96
      %v1553 = vpop.permute.xlu0 %1552
      %v1556 = vadd.f32 %v1544, %v1551
      %v1557 = vadd.f32 %v1541, %v1553
      %1559 = vrot.lane.b32.xlu0 %v1546, 64
      %v1560 = vpop.permute.xlu0 %1559
      %1561 = vrot.lane.b32.xlu0 %v1549, 64
      %v1562 = vpop.permute.xlu0 %1561
      %v1565 = vadd.f32 %v1556, %v1560
      %v1566 = vadd.f32 %v1557, %v1562
      %v1567 = vsel %vm775, %v1565, 0.0
      %v1568 = vsel %vm775, %v1566, 0.0
      %v1569 = vadd.f32 %v1567, %v1568
      %1570 = vadd.xlane.f32.xlu0 %v1569
      %v1571 = vpop.xlane.xlu0 %1570
      %v1572 = vrot.slane %v1571, 4
      %v1573 = vadd.f32 %v1571, %v1572
      %v1574 = vrot.slane %v1573, 2
      %v1575 = vadd.f32 %v1573, %v1574
      %v1576 = vrot.slane %v1575, 1
      %v1577 = vadd.f32 %v1575, %v1576
      %s1578 = vtos %v1577
      %v1579 = vstv %s1578
      %v1580 = vmul.f32 %v1579, %v795
      %v1581 = vmul.f32 %v1565, %v1565
      %v1582 = vmul.f32 %v1566, %v1566
      %v1583 = vsel %vm775, %v1581, 0.0
      %v1584 = vsel %vm775, %v1582, 0.0
      %v1585 = vadd.f32 %v1583, %v1584
      %1586 = vadd.xlane.f32.xlu0 %v1585
      %v1587 = vpop.xlane.xlu0 %1586
      %v1588 = vrot.slane %v1587, 4
      %v1589 = vadd.f32 %v1587, %v1588
      %v1590 = vrot.slane %v1589, 2
      %v1591 = vadd.f32 %v1589, %v1590
      %v1592 = vrot.slane %v1591, 1
      %v1593 = vadd.f32 %v1591, %v1592
      %s1594 = vtos %v1593
      %v1595 = vstv %s1594
      %v1596 = vmul.f32 %v1595, %v795
      %v1597 = vmul.f32 %v1580, %v1580
      %v1598 = vsub.f32 %v1596, %v1597
      %v1599 = vmax.f32 %v1598, 0.0
      %v1600 = vsub.f32 %v1565, %v1580
      %v1601 = vsub.f32 %v1566, %v1580
      %v1602 = vadd.f32 %v1599, 1e-05
      %v1603 = vrsqrt.pop %v1602
      %v1604 = vmul.f32 %v1603, %v1602
      %v1605 = vmul.f32 %v1604, %v1603
      %v1606 = vmul.f32 0.5, %v1605
      %v1607 = vsub.f32 1.5, %v1606
      %v1608 = vmul.f32 %v1603, %v1607
      %vm1609 = vweird.f32 %v1602
      %vm1610 = vweird.f32 %v1603
      %vm1611 = vmor %vm1609, %vm1610
      %v1612 = vsel %vm1611, %v1603, %v1608
      %v1613 = vmul.f32 %v1600, %v1612
      %v1614 = vmul.f32 %v1601, %v1612
      %v1615 = vmul.f32 %v1613, 0.2
      %v1616 = vmul.f32 %v1614, 0.2
      %v1617 = vmax.f32 %v1613, %v1615
      %v1618 = vmax.f32 %v1614, %v1616
      %v1619 = vpack.c.bf16 %v1618, %v1617
      %v1624 = vunpack.c.l.b16 %v1338
      %v1625 = vunpack.c.l.b16 %v1339
      %v1626 = vunpack.c.l.b16 %v1340
      %v1627 = vunpack.c.l.b16 %v1341
      %v1628 = vpack.c.b16 %v1625, %v1624
      %v1629 = vpack.c.b16 %v1627, %v1626
      %v1633 = vsel %vm775, %v1619, 0
      %1635 = vmatpush.bf16.msra.mxu0 0
      %1636 = vmatpush.bf16.msra.mxu0 0
      %1637 = vmatpush.bf16.msra.mxu0 0
      %1638 = vmatpush.bf16.msra.mxu0 0
      %1639 = vmatpush.bf16.msra.mxu0 0
      %1640 = vmatpush.bf16.msra.mxu0 0
      %1641 = vmatpush.bf16.msra.mxu0 %v1629
      %1642 = vmatpush.bf16.msra.mxu0 %v1628
      %1643 = vmatmul.bf16.gmra.mxu0 %v1633
      %v1644 = vpop.f32.mrf.mxu0
      %v1645 = vadd.f32 %v1311, %v1644
      %v1646 = vpop.f32.mrf.mxu0
      %v1647 = vadd.f32 %v1313, %v1646
      %1648 = vdwg.mxu0
      %v1651 = vrot.slane %v977, 7
      %v1652 = vrot.slane %v979, 7
      %v1653 = vsel %vm869, %v1651, %v1652
      %v1656 = vsel %vm869, %v977, %v1651
      %v1657 = vrot.slane %v977, 1
      %v1658 = vrot.slane %v979, 1
      %v1659 = vsel %vm876, %v1657, %v1658
      %v1662 = vsel %vm876, %v1658, %v979
      %v1663 = vmax.f32 %v977, %v1656
      %v1664 = vmax.f32 %v979, %v1653
      %v1665 = vmax.f32 %v1663, %v1659
      %v1666 = vmax.f32 %v1664, %v1662
      %v1667 = vld [vmem:[%s10] sm:$0xf]
      %v1668 = vpack.c.bf16 %v1666, %v1665
      %vm1669 = vcmask 130048
      %v1671 = vsel %vm1669, %v1667, 0
      %1673 = vmatpush.bf16.msra.mxu0 0
      %1674 = vmatpush.bf16.msra.mxu0 0
      %1675 = vmatpush.bf16.msra.mxu0 0
      %1676 = vmatpush.bf16.msra.mxu0 0
      %1677 = vmatpush.bf16.msra.mxu0 0
      %1678 = vmatpush.bf16.msra.mxu0 0
      %1679 = vmatpush.bf16.msra.mxu0 0
      %1680 = vmatpush.bf16.msra.mxu0 %v1668
      %1681 = vmatmul.bf16.gmra.mxu0 %v1671
      %v1682 = vpop.f32.mrf.mxu0
      %v1683 = vadd.f32 0.0, %v1682
      %v1684 = vpop.f32.mrf.mxu0
      %1685 = vdwg.mxu0
      %v1686 = vld [vmem:[%s11] sm:$0xf]
      %v1687 = vld [vmem:[%s11 + $0x4] sm:$0xf]
      %v1688 = vld [vmem:[%s11 + $0x8] sm:$0xf]
      %v1689 = vld [vmem:[%s11 + $0xc] sm:$0xf]
      %v1690 = vld [vmem:[%s11 + $0x10] sm:$0xf]
      %v1691 = vld [vmem:[%s11 + $0x14] sm:$0xf]
      %v1692 = vld [vmem:[%s11 + $0x18] sm:$0xf]
      %v1693 = vld [vmem:[%s11 + $0x1c] sm:$0xf]
      %v1694 = vld [vmem:[%s11 + $0x20] sm:$0xf]
      %v1695 = vld [vmem:[%s11 + $0x24] sm:$0xf]
      %v1696 = vld [vmem:[%s11 + $0x28] sm:$0xf]
      %v1697 = vld [vmem:[%s11 + $0x2c] sm:$0xf]
      %v1698 = vld [vmem:[%s11 + $0x30] sm:$0xf]
      %v1699 = vld [vmem:[%s11 + $0x34] sm:$0xf]
      %v1700 = vld [vmem:[%s11 + $0x38] sm:$0xf]
      %v1701 = vld [vmem:[%s11 + $0x3c] sm:$0xf]
      %v1702 = vpack.c.bf16 %v1683, %v1683
      %v1719 = vunpack.c.l.b16 %v1686
      %v1720 = vunpack.c.l.b16 %v1687
      %v1721 = vunpack.c.l.b16 %v1688
      %v1722 = vunpack.c.l.b16 %v1689
      %v1723 = vunpack.c.l.b16 %v1690
      %v1724 = vunpack.c.l.b16 %v1691
      %v1725 = vunpack.c.l.b16 %v1692
      %v1726 = vunpack.c.l.b16 %v1693
      %v1727 = vunpack.c.l.b16 %v1694
      %v1728 = vunpack.c.l.b16 %v1695
      %v1729 = vunpack.c.l.b16 %v1696
      %v1730 = vunpack.c.l.b16 %v1697
      %v1731 = vunpack.c.l.b16 %v1698
      %v1732 = vunpack.c.l.b16 %v1699
      %v1733 = vunpack.c.l.b16 %v1700
      %v1734 = vunpack.c.l.b16 %v1701
      %v1735 = vpack.c.b16 %v1720, %v1719
      %v1736 = vpack.c.b16 %v1722, %v1721
      %v1737 = vpack.c.b16 %v1724, %v1723
      %v1738 = vpack.c.b16 %v1726, %v1725
      %v1739 = vpack.c.b16 %v1728, %v1727
      %v1740 = vpack.c.b16 %v1730, %v1729
      %v1741 = vpack.c.b16 %v1732, %v1731
      %v1742 = vpack.c.b16 %v1734, %v1733
      %1751 = vmatpush.bf16.msra.mxu0 %v1742
      %1752 = vmatpush.bf16.msra.mxu0 %v1741
      %1753 = vmatpush.bf16.msra.mxu0 %v1740
      %1754 = vmatpush.bf16.msra.mxu0 %v1739
      %1755 = vmatpush.bf16.msra.mxu0 %v1738
      %1756 = vmatpush.bf16.msra.mxu0 %v1737
      %1757 = vmatpush.bf16.msra.mxu0 %v1736
      %1758 = vmatpush.bf16.msra.mxu0 %v1735
      %1759 = vmatmul.bf16.gmra.mxu0 %v1702
      %v1760 = vpop.f32.mrf.mxu0
      %v1761 = vadd.f32 0.0, %v1760
      %v1762 = vpop.f32.mrf.mxu0
      %1763 = vdwg.mxu0
      %s1764 = scalar_lea.vmem %s11, 64
      %v1765 = vld [vmem:[%s1764] sm:$0xf]
      %v1766 = vld [vmem:[%s1764 + $0x4] sm:$0xf]
      %v1767 = vld [vmem:[%s1764 + $0x8] sm:$0xf]
      %v1768 = vld [vmem:[%s1764 + $0xc] sm:$0xf]
      %v1769 = vld [vmem:[%s1764 + $0x10] sm:$0xf]
      %v1770 = vld [vmem:[%s1764 + $0x14] sm:$0xf]
      %v1771 = vld [vmem:[%s1764 + $0x18] sm:$0xf]
      %v1772 = vld [vmem:[%s1764 + $0x1c] sm:$0xf]
      %v1773 = vld [vmem:[%s1764 + $0x20] sm:$0xf]
      %v1774 = vld [vmem:[%s1764 + $0x24] sm:$0xf]
      %v1775 = vld [vmem:[%s1764 + $0x28] sm:$0xf]
      %v1776 = vld [vmem:[%s1764 + $0x2c] sm:$0xf]
      %v1777 = vld [vmem:[%s1764 + $0x30] sm:$0xf]
      %v1778 = vld [vmem:[%s1764 + $0x34] sm:$0xf]
      %v1779 = vld [vmem:[%s1764 + $0x38] sm:$0xf]
      %v1780 = vld [vmem:[%s1764 + $0x3c] sm:$0xf]
      %v1797 = vunpack.c.l.b16 %v1765
      %v1798 = vunpack.c.l.b16 %v1766
      %v1799 = vunpack.c.l.b16 %v1767
      %v1800 = vunpack.c.l.b16 %v1768
      %v1801 = vunpack.c.l.b16 %v1769
      %v1802 = vunpack.c.l.b16 %v1770
      %v1803 = vunpack.c.l.b16 %v1771
      %v1804 = vunpack.c.l.b16 %v1772
      %v1805 = vunpack.c.l.b16 %v1773
      %v1806 = vunpack.c.l.b16 %v1774
      %v1807 = vunpack.c.l.b16 %v1775
      %v1808 = vunpack.c.l.b16 %v1776
      %v1809 = vunpack.c.l.b16 %v1777
      %v1810 = vunpack.c.l.b16 %v1778
      %v1811 = vunpack.c.l.b16 %v1779
      %v1812 = vunpack.c.l.b16 %v1780
      %v1813 = vpack.c.b16 %v1798, %v1797
      %v1814 = vpack.c.b16 %v1800, %v1799
      %v1815 = vpack.c.b16 %v1802, %v1801
      %v1816 = vpack.c.b16 %v1804, %v1803
      %v1817 = vpack.c.b16 %v1806, %v1805
      %v1818 = vpack.c.b16 %v1808, %v1807
      %v1819 = vpack.c.b16 %v1810, %v1809
      %v1820 = vpack.c.b16 %v1812, %v1811
      %1829 = vmatpush.bf16.msra.mxu0 %v1820
      %1830 = vmatpush.bf16.msra.mxu0 %v1819
      %1831 = vmatpush.bf16.msra.mxu0 %v1818
      %1832 = vmatpush.bf16.msra.mxu0 %v1817
      %1833 = vmatpush.bf16.msra.mxu0 %v1816
      %1834 = vmatpush.bf16.msra.mxu0 %v1815
      %1835 = vmatpush.bf16.msra.mxu0 %v1814
      %1836 = vmatpush.bf16.msra.mxu0 %v1813
      %1837 = vmatmul.bf16.gmra.mxu0 %v1702
      %v1838 = vpop.f32.mrf.mxu0
      %v1839 = vadd.f32 0.0, %v1838
      %v1840 = vpop.f32.mrf.mxu0
      %1841 = vdwg.mxu0
      %v1842 = vmax.f32 %v1761, %v1839
      %s1843 = scalar_lea.vmem %s11, 128
      %v1844 = vld [vmem:[%s1843] sm:$0xf]
      %v1845 = vld [vmem:[%s1843 + $0x4] sm:$0xf]
      %v1846 = vld [vmem:[%s1843 + $0x8] sm:$0xf]
      %v1847 = vld [vmem:[%s1843 + $0xc] sm:$0xf]
      %v1848 = vld [vmem:[%s1843 + $0x10] sm:$0xf]
      %v1849 = vld [vmem:[%s1843 + $0x14] sm:$0xf]
      %v1850 = vld [vmem:[%s1843 + $0x18] sm:$0xf]
      %v1851 = vld [vmem:[%s1843 + $0x1c] sm:$0xf]
      %v1852 = vld [vmem:[%s1843 + $0x20] sm:$0xf]
      %v1853 = vld [vmem:[%s1843 + $0x24] sm:$0xf]
      %v1854 = vld [vmem:[%s1843 + $0x28] sm:$0xf]
      %v1855 = vld [vmem:[%s1843 + $0x2c] sm:$0xf]
      %v1856 = vld [vmem:[%s1843 + $0x30] sm:$0xf]
      %v1857 = vld [vmem:[%s1843 + $0x34] sm:$0xf]
      %v1858 = vld [vmem:[%s1843 + $0x38] sm:$0xf]
      %v1859 = vld [vmem:[%s1843 + $0x3c] sm:$0xf]
      %v1876 = vunpack.c.l.b16 %v1844
      %v1877 = vunpack.c.l.b16 %v1845
      %v1878 = vunpack.c.l.b16 %v1846
      %v1879 = vunpack.c.l.b16 %v1847
      %v1880 = vunpack.c.l.b16 %v1848
      %v1881 = vunpack.c.l.b16 %v1849
      %v1882 = vunpack.c.l.b16 %v1850
      %v1883 = vunpack.c.l.b16 %v1851
      %v1884 = vunpack.c.l.b16 %v1852
      %v1885 = vunpack.c.l.b16 %v1853
      %v1886 = vunpack.c.l.b16 %v1854
      %v1887 = vunpack.c.l.b16 %v1855
      %v1888 = vunpack.c.l.b16 %v1856
      %v1889 = vunpack.c.l.b16 %v1857
      %v1890 = vunpack.c.l.b16 %v1858
      %v1891 = vunpack.c.l.b16 %v1859
      %v1892 = vpack.c.b16 %v1877, %v1876
      %v1893 = vpack.c.b16 %v1879, %v1878
      %v1894 = vpack.c.b16 %v1881, %v1880
      %v1895 = vpack.c.b16 %v1883, %v1882
      %v1896 = vpack.c.b16 %v1885, %v1884
      %v1897 = vpack.c.b16 %v1887, %v1886
      %v1898 = vpack.c.b16 %v1889, %v1888
      %v1899 = vpack.c.b16 %v1891, %v1890
      %1908 = vmatpush.bf16.msra.mxu0 %v1899
      %1909 = vmatpush.bf16.msra.mxu0 %v1898
      %1910 = vmatpush.bf16.msra.mxu0 %v1897
      %1911 = vmatpush.bf16.msra.mxu0 %v1896
      %1912 = vmatpush.bf16.msra.mxu0 %v1895
      %1913 = vmatpush.bf16.msra.mxu0 %v1894
      %1914 = vmatpush.bf16.msra.mxu0 %v1893
      %1915 = vmatpush.bf16.msra.mxu0 %v1892
      %1916 = vmatmul.bf16.gmra.mxu0 %v1702
      %v1917 = vpop.f32.mrf.mxu0
      %v1918 = vadd.f32 0.0, %v1917
      %v1919 = vpop.f32.mrf.mxu0
      %1920 = vdwg.mxu0
      %v1921 = vmax.f32 %v1842, %v1918
      %v1922 = vld [vmem:[%s4] sm:$0xf]
      %v1923 = vld [vmem:[%s4 + $0x4] sm:$0xf]
      %v1924 = vld [vmem:[%s4 + $0x8] sm:$0xf]
      %v1925 = vld [vmem:[%s4 + $0xc] sm:$0xf]
      %v1926 = vld [vmem:[%s4 + $0x10] sm:$0xf]
      %v1927 = vld [vmem:[%s4 + $0x14] sm:$0xf]
      %v1928 = vld [vmem:[%s4 + $0x18] sm:$0xf]
      %v1929 = vld [vmem:[%s4 + $0x1c] sm:$0xf]
      %v1930 = vld [vmem:[%s5] sm:$0xf]
      %v1931 = vld [vmem:[%s5 + $0x4] sm:$0xf]
      %v1932 = vld [vmem:[%s6] sm:$0xf]
      %v1933 = vld [vmem:[%s6 + $0x4] sm:$0xf]
      %vm1934 = vcmask 523264
      %v1935 = vsel %vm1934, %v1921, 0.0
      %1936 = vadd.xlane.f32.xlu0 %v1935
      %v1937 = vpop.xlane.xlu0 %1936
      %v1938 = vrot.slane %v1937, 4
      %v1939 = vadd.f32 %v1937, %v1938
      %v1940 = vrot.slane %v1939, 2
      %v1941 = vadd.f32 %v1939, %v1940
      %v1942 = vrot.slane %v1941, 1
      %v1943 = vadd.f32 %v1941, %v1942
      %s1944 = vtos %v1943
      %v1945 = vstv %s1944
      %v1946 = vmul.f32 %v1945, %v795
      %v1947 = vmul.f32 %v1921, %v1921
      %v1948 = vsel %vm1934, %v1947, 0.0
      %1949 = vadd.xlane.f32.xlu0 %v1948
      %v1950 = vpop.xlane.xlu0 %1949
      %v1951 = vrot.slane %v1950, 4
      %v1952 = vadd.f32 %v1950, %v1951
      %v1953 = vrot.slane %v1952, 2
      %v1954 = vadd.f32 %v1952, %v1953
      %v1955 = vrot.slane %v1954, 1
      %v1956 = vadd.f32 %v1954, %v1955
      %s1957 = vtos %v1956
      %v1958 = vstv %s1957
      %v1959 = vmul.f32 %v1958, %v795
      %v1960 = vmul.f32 %v1946, %v1946
      %v1961 = vsub.f32 %v1959, %v1960
      %v1962 = vmax.f32 %v1961, 0.0
      %v1963 = vsub.f32 %v1921, %v1946
      %v1964 = vadd.f32 %v1962, 1e-05
      %v1965 = vrsqrt.pop %v1964
      %v1966 = vmul.f32 %v1965, %v1964
      %v1967 = vmul.f32 %v1966, %v1965
      %v1968 = vmul.f32 0.5, %v1967
      %v1969 = vsub.f32 1.5, %v1968
      %v1970 = vmul.f32 %v1965, %v1969
      %vm1971 = vweird.f32 %v1964
      %vm1972 = vweird.f32 %v1965
      %vm1973 = vmor %vm1971, %vm1972
      %v1974 = vsel %vm1973, %v1965, %v1970
      %v1975 = vmul.f32 %v1963, %v1974
      %v1976 = vmul.f32 %v1975, 0.2
      %v1977 = vmax.f32 %v1975, %v1976
      %v1978 = vpack.c.bf16 %v1977, %v1977
      %v1987 = vunpack.c.l.b16 %v1922
      %v1988 = vunpack.c.l.b16 %v1923
      %v1989 = vunpack.c.l.b16 %v1924
      %v1990 = vunpack.c.l.b16 %v1925
      %v1991 = vunpack.c.l.b16 %v1926
      %v1992 = vunpack.c.l.b16 %v1927
      %v1993 = vunpack.c.l.b16 %v1928
      %v1994 = vunpack.c.l.b16 %v1929
      %v1995 = vpack.c.b16 %v1988, %v1987
      %v1996 = vpack.c.b16 %v1990, %v1989
      %v1997 = vpack.c.b16 %v1992, %v1991
      %v1998 = vpack.c.b16 %v1994, %v1993
      %v2004 = vsel %vm1934, %v1978, 0
      %2006 = vmatpush.bf16.msra.mxu0 0
      %2007 = vmatpush.bf16.msra.mxu0 0
      %2008 = vmatpush.bf16.msra.mxu0 0
      %2009 = vmatpush.bf16.msra.mxu0 0
      %2010 = vmatpush.bf16.msra.mxu0 %v1998
      %2011 = vmatpush.bf16.msra.mxu0 %v1997
      %2012 = vmatpush.bf16.msra.mxu0 %v1996
      %2013 = vmatpush.bf16.msra.mxu0 %v1995
      %2014 = vmatmul.bf16.gmra.mxu0 %v2004
      %v2015 = vpop.f32.mrf.mxu0
      %v2016 = vadd.f32 0.0, %v2015
      %v2017 = vpop.f32.mrf.mxu0
      %2018 = vdwg.mxu0
      %v2019 = vsel %vm1669, %v2016, 0.0
      %2020 = vadd.xlane.f32.xlu0 %v2019
      %v2021 = vpop.xlane.xlu0 %2020
      %v2022 = vrot.slane %v2021, 4
      %v2023 = vadd.f32 %v2021, %v2022
      %v2024 = vrot.slane %v2023, 2
      %v2025 = vadd.f32 %v2023, %v2024
      %v2026 = vrot.slane %v2025, 1
      %v2027 = vadd.f32 %v2025, %v2026
      %s2028 = vtos %v2027
      %v2029 = vstv %s2028
      %v2030 = vrcp.pop 128.0
      %v2031 = vmul.f32 128.0, %v2030
      %v2032 = vsub.f32 1.0, %v2031
      %v2033 = vmul.f32 %v2030, %v2032
      %v2034 = vadd.f32 %v2030, %v2033
      %vm2035 = vweird.f32 %v2030
      %v2036 = vsel %vm2035, %v2030, %v2034
      %v2037 = vmul.f32 %v2029, %v2036
      %v2038 = vmul.f32 %v2016, %v2016
      %v2039 = vsel %vm1669, %v2038, 0.0
      %2040 = vadd.xlane.f32.xlu0 %v2039
      %v2041 = vpop.xlane.xlu0 %2040
      %v2042 = vrot.slane %v2041, 4
      %v2043 = vadd.f32 %v2041, %v2042
      %v2044 = vrot.slane %v2043, 2
      %v2045 = vadd.f32 %v2043, %v2044
      %v2046 = vrot.slane %v2045, 1
      %v2047 = vadd.f32 %v2045, %v2046
      %s2048 = vtos %v2047
      %v2049 = vstv %s2048
      %v2050 = vmul.f32 %v2049, %v2036
      %v2051 = vmul.f32 %v2037, %v2037
      %v2052 = vsub.f32 %v2050, %v2051
      %v2053 = vmax.f32 %v2052, 0.0
      %v2054 = vsub.f32 %v2016, %v2037
      %v2055 = vadd.f32 %v2053, 1e-05
      %v2056 = vrsqrt.pop %v2055
      %v2057 = vmul.f32 %v2056, %v2055
      %v2058 = vmul.f32 %v2057, %v2056
      %v2059 = vmul.f32 0.5, %v2058
      %v2060 = vsub.f32 1.5, %v2059
      %v2061 = vmul.f32 %v2056, %v2060
      %vm2062 = vweird.f32 %v2055
      %vm2063 = vweird.f32 %v2056
      %vm2064 = vmor %vm2062, %vm2063
      %v2065 = vsel %vm2064, %v2056, %v2061
      %v2066 = vmul.f32 %v2054, %v2065
      %v2067 = vmul.f32 %v2066, 0.2
      %v2068 = vmax.f32 %v2066, %v2067
      %v2069 = vpack.c.bf16 %v2068, %v2068
      %v2072 = vunpack.c.l.b16 %v1930
      %v2073 = vunpack.c.l.b16 %v1931
      %v2074 = vpack.c.b16 %v2073, %v2072
      %v2077 = vsel %vm1669, %v2069, 0
      %2079 = vmatpush.bf16.msra.mxu0 0
      %2080 = vmatpush.bf16.msra.mxu0 0
      %2081 = vmatpush.bf16.msra.mxu0 0
      %2082 = vmatpush.bf16.msra.mxu0 0
      %2083 = vmatpush.bf16.msra.mxu0 0
      %2084 = vmatpush.bf16.msra.mxu0 0
      %2085 = vmatpush.bf16.msra.mxu0 0
      %2086 = vmatpush.bf16.msra.mxu0 %v2074
      %2087 = vmatmul.bf16.gmra.mxu0 %v2077
      %v2088 = vpop.f32.mrf.mxu0
      %v2089 = vadd.f32 0.0, %v2088
      %v2090 = vpop.f32.mrf.mxu0
      %2091 = vdwg.mxu0
      %v2093 = vrot.slane %v2089, 1
      %v2095 = vrot.slane %v2089, 7
      %v2097 = vsel %vm869, %v2093, %v2095
      %v2098 = vsel %vm876, %v2093, %v2095
      %2099 = vrot.lane.b32.xlu0 %v2089, 112
      %v2100 = vpop.permute.xlu0 %2099
      %v2102 = vadd.f32 %v2097, %v2100
      %2104 = vrot.lane.b32.xlu0 %v2098, 96
      %v2105 = vpop.permute.xlu0 %2104
      %v2107 = vadd.f32 %v2102, %v2105
      %v2108 = vsel %vm1669, %v2107, 0.0
      %2109 = vadd.xlane.f32.xlu0 %v2108
      %v2110 = vpop.xlane.xlu0 %2109
      %v2111 = vrot.slane %v2110, 4
      %v2112 = vadd.f32 %v2110, %v2111
      %v2113 = vrot.slane %v2112, 2
      %v2114 = vadd.f32 %v2112, %v2113
      %v2115 = vrot.slane %v2114, 1
      %v2116 = vadd.f32 %v2114, %v2115
      %s2117 = vtos %v2116
      %v2118 = vstv %s2117
      %v2119 = vmul.f32 %v2118, %v2036
      %v2120 = vmul.f32 %v2107, %v2107
      %v2121 = vsel %vm1669, %v2120, 0.0
      %2122 = vadd.xlane.f32.xlu0 %v2121
      %v2123 = vpop.xlane.xlu0 %2122
      %v2124 = vrot.slane %v2123, 4
      %v2125 = vadd.f32 %v2123, %v2124
      %v2126 = vrot.slane %v2125, 2
      %v2127 = vadd.f32 %v2125, %v2126
      %v2128 = vrot.slane %v2127, 1
      %v2129 = vadd.f32 %v2127, %v2128
      %s2130 = vtos %v2129
      %v2131 = vstv %s2130
      %v2132 = vmul.f32 %v2131, %v2036
      %v2133 = vmul.f32 %v2119, %v2119
      %v2134 = vsub.f32 %v2132, %v2133
      %v2135 = vmax.f32 %v2134, 0.0
      %v2136 = vsub.f32 %v2107, %v2119
      %v2137 = vadd.f32 %v2135, 1e-05
      %v2138 = vrsqrt.pop %v2137
      %v2139 = vmul.f32 %v2138, %v2137
      %v2140 = vmul.f32 %v2139, %v2138
      %v2141 = vmul.f32 0.5, %v2140
      %v2142 = vsub.f32 1.5, %v2141
      %v2143 = vmul.f32 %v2138, %v2142
      %vm2144 = vweird.f32 %v2137
      %vm2145 = vweird.f32 %v2138
      %vm2146 = vmor %vm2144, %vm2145
      %v2147 = vsel %vm2146, %v2138, %v2143
      %v2148 = vmul.f32 %v2136, %v2147
      %v2149 = vmul.f32 %v2148, 0.2
      %v2150 = vmax.f32 %v2148, %v2149
      %v2151 = vpack.c.bf16 %v2150, %v2150
      %v2154 = vunpack.c.l.b16 %v1932
      %v2155 = vunpack.c.l.b16 %v1933
      %v2156 = vpack.c.b16 %v2155, %v2154
      %v2159 = vsel %vm1669, %v2151, 0
      %2161 = vmatpush.bf16.msra.mxu0 0
      %2162 = vmatpush.bf16.msra.mxu0 0
      %2163 = vmatpush.bf16.msra.mxu0 0
      %2164 = vmatpush.bf16.msra.mxu0 0
      %2165 = vmatpush.bf16.msra.mxu0 0
      %2166 = vmatpush.bf16.msra.mxu0 0
      %2167 = vmatpush.bf16.msra.mxu0 0
      %2168 = vmatpush.bf16.msra.mxu0 %v2156
      %2169 = vmatmul.bf16.gmra.mxu0 %v2159
      %v2170 = vpop.f32.mrf.mxu0
      %v2171 = vadd.f32 %v1921, %v2170
      %v2172 = vpop.f32.mrf.mxu0
      %2173 = vdwg.mxu0
      %s2174 = scalar_lea.vmem %s4, 32
      %v2175 = vld [vmem:[%s2174] sm:$0xf]
      %v2176 = vld [vmem:[%s2174 + $0x4] sm:$0xf]
      %v2177 = vld [vmem:[%s2174 + $0x8] sm:$0xf]
      %v2178 = vld [vmem:[%s2174 + $0xc] sm:$0xf]
      %v2179 = vld [vmem:[%s2174 + $0x10] sm:$0xf]
      %v2180 = vld [vmem:[%s2174 + $0x14] sm:$0xf]
      %v2181 = vld [vmem:[%s2174 + $0x18] sm:$0xf]
      %v2182 = vld [vmem:[%s2174 + $0x1c] sm:$0xf]
      %s2183 = scalar_lea.vmem %s5, 8
      %v2184 = vld [vmem:[%s2183] sm:$0xf]
      %v2185 = vld [vmem:[%s2183 + $0x4] sm:$0xf]
      %s2186 = scalar_lea.vmem %s6, 8
      %v2187 = vld [vmem:[%s2186] sm:$0xf]
      %v2188 = vld [vmem:[%s2186 + $0x4] sm:$0xf]
      %v2189 = vsel %vm1934, %v2171, 0.0
      %2190 = vadd.xlane.f32.xlu0 %v2189
      %v2191 = vpop.xlane.xlu0 %2190
      %v2192 = vrot.slane %v2191, 4
      %v2193 = vadd.f32 %v2191, %v2192
      %v2194 = vrot.slane %v2193, 2
      %v2195 = vadd.f32 %v2193, %v2194
      %v2196 = vrot.slane %v2195, 1
      %v2197 = vadd.f32 %v2195, %v2196
      %s2198 = vtos %v2197
      %v2199 = vstv %s2198
      %v2200 = vmul.f32 %v2199, %v795
      %v2201 = vmul.f32 %v2171, %v2171
      %v2202 = vsel %vm1934, %v2201, 0.0
      %2203 = vadd.xlane.f32.xlu0 %v2202
      %v2204 = vpop.xlane.xlu0 %2203
      %v2205 = vrot.slane %v2204, 4
      %v2206 = vadd.f32 %v2204, %v2205
      %v2207 = vrot.slane %v2206, 2
      %v2208 = vadd.f32 %v2206, %v2207
      %v2209 = vrot.slane %v2208, 1
      %v2210 = vadd.f32 %v2208, %v2209
      %s2211 = vtos %v2210
      %v2212 = vstv %s2211
      %v2213 = vmul.f32 %v2212, %v795
      %v2214 = vmul.f32 %v2200, %v2200
      %v2215 = vsub.f32 %v2213, %v2214
      %v2216 = vmax.f32 %v2215, 0.0
      %v2217 = vsub.f32 %v2171, %v2200
      %v2218 = vadd.f32 %v2216, 1e-05
      %v2219 = vrsqrt.pop %v2218
      %v2220 = vmul.f32 %v2219, %v2218
      %v2221 = vmul.f32 %v2220, %v2219
      %v2222 = vmul.f32 0.5, %v2221
      %v2223 = vsub.f32 1.5, %v2222
      %v2224 = vmul.f32 %v2219, %v2223
      %vm2225 = vweird.f32 %v2218
      %vm2226 = vweird.f32 %v2219
      %vm2227 = vmor %vm2225, %vm2226
      %v2228 = vsel %vm2227, %v2219, %v2224
      %v2229 = vmul.f32 %v2217, %v2228
      %v2230 = vmul.f32 %v2229, 0.2
      %v2231 = vmax.f32 %v2229, %v2230
      %v2232 = vpack.c.bf16 %v2231, %v2231
      %v2241 = vunpack.c.l.b16 %v2175
      %v2242 = vunpack.c.l.b16 %v2176
      %v2243 = vunpack.c.l.b16 %v2177
      %v2244 = vunpack.c.l.b16 %v2178
      %v2245 = vunpack.c.l.b16 %v2179
      %v2246 = vunpack.c.l.b16 %v2180
      %v2247 = vunpack.c.l.b16 %v2181
      %v2248 = vunpack.c.l.b16 %v2182
      %v2249 = vpack.c.b16 %v2242, %v2241
      %v2250 = vpack.c.b16 %v2244, %v2243
      %v2251 = vpack.c.b16 %v2246, %v2245
      %v2252 = vpack.c.b16 %v2248, %v2247
      %v2258 = vsel %vm1934, %v2232, 0
      %2260 = vmatpush.bf16.msra.mxu0 0
      %2261 = vmatpush.bf16.msra.mxu0 0
      %2262 = vmatpush.bf16.msra.mxu0 0
      %2263 = vmatpush.bf16.msra.mxu0 0
      %2264 = vmatpush.bf16.msra.mxu0 %v2252
      %2265 = vmatpush.bf16.msra.mxu0 %v2251
      %2266 = vmatpush.bf16.msra.mxu0 %v2250
      %2267 = vmatpush.bf16.msra.mxu0 %v2249
      %2268 = vmatmul.bf16.gmra.mxu0 %v2258
      %v2269 = vpop.f32.mrf.mxu0
      %v2270 = vadd.f32 0.0, %v2269
      %v2271 = vpop.f32.mrf.mxu0
      %2272 = vdwg.mxu0
      %v2273 = vsel %vm1669, %v2270, 0.0
      %2274 = vadd.xlane.f32.xlu0 %v2273
      %v2275 = vpop.xlane.xlu0 %2274
      %v2276 = vrot.slane %v2275, 4
      %v2277 = vadd.f32 %v2275, %v2276
      %v2278 = vrot.slane %v2277, 2
      %v2279 = vadd.f32 %v2277, %v2278
      %v2280 = vrot.slane %v2279, 1
      %v2281 = vadd.f32 %v2279, %v2280
      %s2282 = vtos %v2281
      %v2283 = vstv %s2282
      %v2284 = vmul.f32 %v2283, %v2036
      %v2285 = vmul.f32 %v2270, %v2270
      %v2286 = vsel %vm1669, %v2285, 0.0
      %2287 = vadd.xlane.f32.xlu0 %v2286
      %v2288 = vpop.xlane.xlu0 %2287
      %v2289 = vrot.slane %v2288, 4
      %v2290 = vadd.f32 %v2288, %v2289
      %v2291 = vrot.slane %v2290, 2
      %v2292 = vadd.f32 %v2290, %v2291
      %v2293 = vrot.slane %v2292, 1
      %v2294 = vadd.f32 %v2292, %v2293
      %s2295 = vtos %v2294
      %v2296 = vstv %s2295
      %v2297 = vmul.f32 %v2296, %v2036
      %v2298 = vmul.f32 %v2284, %v2284
      %v2299 = vsub.f32 %v2297, %v2298
      %v2300 = vmax.f32 %v2299, 0.0
      %v2301 = vsub.f32 %v2270, %v2284
      %v2302 = vadd.f32 %v2300, 1e-05
      %v2303 = vrsqrt.pop %v2302
      %v2304 = vmul.f32 %v2303, %v2302
      %v2305 = vmul.f32 %v2304, %v2303
      %v2306 = vmul.f32 0.5, %v2305
      %v2307 = vsub.f32 1.5, %v2306
      %v2308 = vmul.f32 %v2303, %v2307
      %vm2309 = vweird.f32 %v2302
      %vm2310 = vweird.f32 %v2303
      %vm2311 = vmor %vm2309, %vm2310
      %v2312 = vsel %vm2311, %v2303, %v2308
      %v2313 = vmul.f32 %v2301, %v2312
      %v2314 = vmul.f32 %v2313, 0.2
      %v2315 = vmax.f32 %v2313, %v2314
      %v2316 = vpack.c.bf16 %v2315, %v2315
      %v2319 = vunpack.c.l.b16 %v2184
      %v2320 = vunpack.c.l.b16 %v2185
      %v2321 = vpack.c.b16 %v2320, %v2319
      %v2324 = vsel %vm1669, %v2316, 0
      %2326 = vmatpush.bf16.msra.mxu0 0
      %2327 = vmatpush.bf16.msra.mxu0 0
      %2328 = vmatpush.bf16.msra.mxu0 0
      %2329 = vmatpush.bf16.msra.mxu0 0
      %2330 = vmatpush.bf16.msra.mxu0 0
      %2331 = vmatpush.bf16.msra.mxu0 0
      %2332 = vmatpush.bf16.msra.mxu0 0
      %2333 = vmatpush.bf16.msra.mxu0 %v2321
      %2334 = vmatmul.bf16.gmra.mxu0 %v2324
      %v2335 = vpop.f32.mrf.mxu0
      %v2336 = vadd.f32 0.0, %v2335
      %v2337 = vpop.f32.mrf.mxu0
      %2338 = vdwg.mxu0
      %v2340 = vrot.slane %v2336, 1
      %v2342 = vrot.slane %v2336, 7
      %v2344 = vsel %vm869, %v2340, %v2342
      %v2345 = vsel %vm876, %v2340, %v2342
      %2346 = vrot.lane.b32.xlu0 %v2336, 112
      %v2347 = vpop.permute.xlu0 %2346
      %v2349 = vadd.f32 %v2344, %v2347
      %2351 = vrot.lane.b32.xlu0 %v2345, 96
      %v2352 = vpop.permute.xlu0 %2351
      %v2354 = vadd.f32 %v2349, %v2352
      %v2355 = vsel %vm1669, %v2354, 0.0
      %2356 = vadd.xlane.f32.xlu0 %v2355
      %v2357 = vpop.xlane.xlu0 %2356
      %v2358 = vrot.slane %v2357, 4
      %v2359 = vadd.f32 %v2357, %v2358
      %v2360 = vrot.slane %v2359, 2
      %v2361 = vadd.f32 %v2359, %v2360
      %v2362 = vrot.slane %v2361, 1
      %v2363 = vadd.f32 %v2361, %v2362
      %s2364 = vtos %v2363
      %v2365 = vstv %s2364
      %v2366 = vmul.f32 %v2365, %v2036
      %v2367 = vmul.f32 %v2354, %v2354
      %v2368 = vsel %vm1669, %v2367, 0.0
      %2369 = vadd.xlane.f32.xlu0 %v2368
      %v2370 = vpop.xlane.xlu0 %2369
      %v2371 = vrot.slane %v2370, 4
      %v2372 = vadd.f32 %v2370, %v2371
      %v2373 = vrot.slane %v2372, 2
      %v2374 = vadd.f32 %v2372, %v2373
      %v2375 = vrot.slane %v2374, 1
      %v2376 = vadd.f32 %v2374, %v2375
      %s2377 = vtos %v2376
      %v2378 = vstv %s2377
      %v2379 = vmul.f32 %v2378, %v2036
      %v2380 = vmul.f32 %v2366, %v2366
      %v2381 = vsub.f32 %v2379, %v2380
      %v2382 = vmax.f32 %v2381, 0.0
      %v2383 = vsub.f32 %v2354, %v2366
      %v2384 = vadd.f32 %v2382, 1e-05
      %v2385 = vrsqrt.pop %v2384
      %v2386 = vmul.f32 %v2385, %v2384
      %v2387 = vmul.f32 %v2386, %v2385
      %v2388 = vmul.f32 0.5, %v2387
      %v2389 = vsub.f32 1.5, %v2388
      %v2390 = vmul.f32 %v2385, %v2389
      %vm2391 = vweird.f32 %v2384
      %vm2392 = vweird.f32 %v2385
      %vm2393 = vmor %vm2391, %vm2392
      %v2394 = vsel %vm2393, %v2385, %v2390
      %v2395 = vmul.f32 %v2383, %v2394
      %v2396 = vmul.f32 %v2395, 0.2
      %v2397 = vmax.f32 %v2395, %v2396
      %v2398 = vpack.c.bf16 %v2397, %v2397
      %v2401 = vunpack.c.l.b16 %v2187
      %v2402 = vunpack.c.l.b16 %v2188
      %v2403 = vpack.c.b16 %v2402, %v2401
      %v2406 = vsel %vm1669, %v2398, 0
      %2408 = vmatpush.bf16.msra.mxu0 0
      %2409 = vmatpush.bf16.msra.mxu0 0
      %2410 = vmatpush.bf16.msra.mxu0 0
      %2411 = vmatpush.bf16.msra.mxu0 0
      %2412 = vmatpush.bf16.msra.mxu0 0
      %2413 = vmatpush.bf16.msra.mxu0 0
      %2414 = vmatpush.bf16.msra.mxu0 0
      %2415 = vmatpush.bf16.msra.mxu0 %v2403
      %2416 = vmatmul.bf16.gmra.mxu0 %v2406
      %v2417 = vpop.f32.mrf.mxu0
      %v2418 = vadd.f32 %v2171, %v2417
      %v2419 = vpop.f32.mrf.mxu0
      %2420 = vdwg.mxu0
      %v2422 = vrot.slane %v2171, 7
      %v2424 = vsel %vm869, %v2171, %v2422
      %v2425 = vrot.slane %v2171, 1
      %v2427 = vsel %vm876, %v2425, %v2171
      %v2428 = vmax.f32 %v2171, %v2424
      %v2429 = vmax.f32 %v2428, %v2427
      %v2430 = vld [vmem:[%s12] sm:$0x3]
      %v2431 = vpack.c.bf16 %v2429, %v2429
      %vm2432 = vcmask 64512
      %v2434 = vsel %vm2432, %v2430, 0
      %vm2436 = vcmask 1043456
      %v2438 = vsel %vm2436, %v2431, 0
      %2440 = vmatpush.bf16.msra.mxu0 0
      %2441 = vmatpush.bf16.msra.mxu0 0
      %2442 = vmatpush.bf16.msra.mxu0 0
      %2443 = vmatpush.bf16.msra.mxu0 0
      %2444 = vmatpush.bf16.msra.mxu0 0
      %2445 = vmatpush.bf16.msra.mxu0 0
      %2446 = vmatpush.bf16.msra.mxu0 0
      %2447 = vmatpush.bf16.msra.mxu0 %v2438
      %2448 = vmatmul.bf16.gmra.mxu0 %v2434
      %v2449 = vpop.f32.mrf.mxu0
      %v2450 = vadd.f32 0.0, %v2449
      %v2451 = vpop.f32.mrf.mxu0
      %2452 = vdwg.mxu0
      %v2453 = vld [vmem:[%s13] sm:$0xf]
      %v2454 = vld [vmem:[%s13 + $0x4] sm:$0xf]
      %v2455 = vld [vmem:[%s13 + $0x8] sm:$0xf]
      %v2456 = vld [vmem:[%s13 + $0xc] sm:$0xf]
      %v2457 = vld [vmem:[%s13 + $0x10] sm:$0xf]
      %v2458 = vld [vmem:[%s13 + $0x14] sm:$0xf]
      %v2459 = vld [vmem:[%s13 + $0x18] sm:$0xf]
      %v2460 = vld [vmem:[%s13 + $0x1c] sm:$0xf]
      %v2461 = vpack.c.bf16 %v2450, %v2450
      %v2470 = vunpack.c.l.b16 %v2453
      %v2471 = vunpack.c.l.b16 %v2454
      %v2472 = vunpack.c.l.b16 %v2455
      %v2473 = vunpack.c.l.b16 %v2456
      %v2474 = vunpack.c.l.b16 %v2457
      %v2475 = vunpack.c.l.b16 %v2458
      %v2476 = vunpack.c.l.b16 %v2459
      %v2477 = vunpack.c.l.b16 %v2460
      %v2478 = vpack.c.b16 %v2471, %v2470
      %v2479 = vpack.c.b16 %v2473, %v2472
      %v2480 = vpack.c.b16 %v2475, %v2474
      %v2481 = vpack.c.b16 %v2477, %v2476
      %v2487 = vsel %vm1934, %v2461, 0
      %2489 = vmatpush.bf16.msra.mxu0 0
      %2490 = vmatpush.bf16.msra.mxu0 0
      %2491 = vmatpush.bf16.msra.mxu0 0
      %2492 = vmatpush.bf16.msra.mxu0 0
      %2493 = vmatpush.bf16.msra.mxu0 %v2481
      %2494 = vmatpush.bf16.msra.mxu0 %v2480
      %2495 = vmatpush.bf16.msra.mxu0 %v2479
      %2496 = vmatpush.bf16.msra.mxu0 %v2478
      %2497 = vmatmul.bf16.gmra.mxu0 %v2487
      %v2498 = vpop.f32.mrf.mxu0
      %v2499 = vadd.f32 0.0, %v2498
      %v2500 = vpop.f32.mrf.mxu0
      %2501 = vdwg.mxu0
      %s2502 = scalar_lea.vmem %s13, 32
      %v2503 = vld [vmem:[%s2502] sm:$0xf]
      %v2504 = vld [vmem:[%s2502 + $0x4] sm:$0xf]
      %v2505 = vld [vmem:[%s2502 + $0x8] sm:$0xf]
      %v2506 = vld [vmem:[%s2502 + $0xc] sm:$0xf]
      %v2507 = vld [vmem:[%s2502 + $0x10] sm:$0xf]
      %v2508 = vld [vmem:[%s2502 + $0x14] sm:$0xf]
      %v2509 = vld [vmem:[%s2502 + $0x18] sm:$0xf]
      %v2510 = vld [vmem:[%s2502 + $0x1c] sm:$0xf]
      %v2519 = vunpack.c.l.b16 %v2503
      %v2520 = vunpack.c.l.b16 %v2504
      %v2521 = vunpack.c.l.b16 %v2505
      %v2522 = vunpack.c.l.b16 %v2506
      %v2523 = vunpack.c.l.b16 %v2507
      %v2524 = vunpack.c.l.b16 %v2508
      %v2525 = vunpack.c.l.b16 %v2509
      %v2526 = vunpack.c.l.b16 %v2510
      %v2527 = vpack.c.b16 %v2520, %v2519
      %v2528 = vpack.c.b16 %v2522, %v2521
      %v2529 = vpack.c.b16 %v2524, %v2523
      %v2530 = vpack.c.b16 %v2526, %v2525
      %2535 = vmatpush.bf16.msra.mxu0 0
      %2536 = vmatpush.bf16.msra.mxu0 0
      %2537 = vmatpush.bf16.msra.mxu0 0
      %2538 = vmatpush.bf16.msra.mxu0 0
      %2539 = vmatpush.bf16.msra.mxu0 %v2530
      %2540 = vmatpush.bf16.msra.mxu0 %v2529
      %2541 = vmatpush.bf16.msra.mxu0 %v2528
      %2542 = vmatpush.bf16.msra.mxu0 %v2527
      %2543 = vmatmul.bf16.gmra.mxu0 %v2487
      %v2544 = vpop.f32.mrf.mxu0
      %v2545 = vadd.f32 0.0, %v2544
      %v2546 = vpop.f32.mrf.mxu0
      %2547 = vdwg.mxu0
      %v2548 = vmax.f32 %v2499, %v2545
      %s2549 = scalar_lea.vmem %s13, 64
      %v2550 = vld [vmem:[%s2549] sm:$0xf]
      %v2551 = vld [vmem:[%s2549 + $0x4] sm:$0xf]
      %v2552 = vld [vmem:[%s2549 + $0x8] sm:$0xf]
      %v2553 = vld [vmem:[%s2549 + $0xc] sm:$0xf]
      %v2554 = vld [vmem:[%s2549 + $0x10] sm:$0xf]
      %v2555 = vld [vmem:[%s2549 + $0x14] sm:$0xf]
      %v2556 = vld [vmem:[%s2549 + $0x18] sm:$0xf]
      %v2557 = vld [vmem:[%s2549 + $0x1c] sm:$0xf]
      %v2566 = vunpack.c.l.b16 %v2550
      %v2567 = vunpack.c.l.b16 %v2551
      %v2568 = vunpack.c.l.b16 %v2552
      %v2569 = vunpack.c.l.b16 %v2553
      %v2570 = vunpack.c.l.b16 %v2554
      %v2571 = vunpack.c.l.b16 %v2555
      %v2572 = vunpack.c.l.b16 %v2556
      %v2573 = vunpack.c.l.b16 %v2557
      %v2574 = vpack.c.b16 %v2567, %v2566
      %v2575 = vpack.c.b16 %v2569, %v2568
      %v2576 = vpack.c.b16 %v2571, %v2570
      %v2577 = vpack.c.b16 %v2573, %v2572
      %2582 = vmatpush.bf16.msra.mxu0 0
      %2583 = vmatpush.bf16.msra.mxu0 0
      %2584 = vmatpush.bf16.msra.mxu0 0
      %2585 = vmatpush.bf16.msra.mxu0 0
      %2586 = vmatpush.bf16.msra.mxu0 %v2577
      %2587 = vmatpush.bf16.msra.mxu0 %v2576
      %2588 = vmatpush.bf16.msra.mxu0 %v2575
      %2589 = vmatpush.bf16.msra.mxu0 %v2574
      %2590 = vmatmul.bf16.gmra.mxu0 %v2487
      %v2591 = vpop.f32.mrf.mxu0
      %v2592 = vadd.f32 0.0, %v2591
      %v2593 = vpop.f32.mrf.mxu0
      %2594 = vdwg.mxu0
      %v2595 = vmax.f32 %v2548, %v2592
      %v2596 = vld [vmem:[%s7] sm:$0xf]
      %v2597 = vld [vmem:[%s7 + $0x4] sm:$0xf]
      %v2598 = vld [vmem:[%s7 + $0x8] sm:$0xf]
      %v2599 = vld [vmem:[%s7 + $0xc] sm:$0xf]
      %v2600 = vld [vmem:[%s8] sm:$0xf]
      %v2601 = vld [vmem:[%s9] sm:$0xf]
      %vm2602 = vcmask 257024
      %v2603 = vsel %vm2602, %v2595, 0.0
      %2604 = vadd.xlane.f32.xlu0 %v2603
      %v2605 = vpop.xlane.xlu0 %2604
      %v2606 = vrot.slane %v2605, 4
      %v2607 = vadd.f32 %v2605, %v2606
      %v2608 = vrot.slane %v2607, 2
      %v2609 = vadd.f32 %v2607, %v2608
      %v2610 = vrot.slane %v2609, 1
      %v2611 = vadd.f32 %v2609, %v2610
      %s2612 = vtos %v2611
      %v2613 = vstv %s2612
      %v2614 = vmul.f32 %v2613, %v2036
      %v2615 = vmul.f32 %v2595, %v2595
      %v2616 = vsel %vm2602, %v2615, 0.0
      %2617 = vadd.xlane.f32.xlu0 %v2616
      %v2618 = vpop.xlane.xlu0 %2617
      %v2619 = vrot.slane %v2618, 4
      %v2620 = vadd.f32 %v2618, %v2619
      %v2621 = vrot.slane %v2620, 2
      %v2622 = vadd.f32 %v2620, %v2621
      %v2623 = vrot.slane %v2622, 1
      %v2624 = vadd.f32 %v2622, %v2623
      %s2625 = vtos %v2624
      %v2626 = vstv %s2625
      %v2627 = vmul.f32 %v2626, %v2036
      %v2628 = vmul.f32 %v2614, %v2614
      %v2629 = vsub.f32 %v2627, %v2628
      %v2630 = vmax.f32 %v2629, 0.0
      %v2631 = vsub.f32 %v2595, %v2614
      %v2632 = vadd.f32 %v2630, 1e-05
      %v2633 = vrsqrt.pop %v2632
      %v2634 = vmul.f32 %v2633, %v2632
      %v2635 = vmul.f32 %v2634, %v2633
      %v2636 = vmul.f32 0.5, %v2635
      %v2637 = vsub.f32 1.5, %v2636
      %v2638 = vmul.f32 %v2633, %v2637
      %vm2639 = vweird.f32 %v2632
      %vm2640 = vweird.f32 %v2633
      %vm2641 = vmor %vm2639, %vm2640
      %v2642 = vsel %vm2641, %v2633, %v2638
      %v2643 = vmul.f32 %v2631, %v2642
      %v2644 = vmul.f32 %v2643, 0.2
      %v2645 = vmax.f32 %v2643, %v2644
      %v2646 = vpack.c.bf16 %v2645, %v2645
      %v2651 = vunpack.c.l.b16 %v2596
      %v2652 = vunpack.c.l.b16 %v2597
      %v2653 = vunpack.c.l.b16 %v2598
      %v2654 = vunpack.c.l.b16 %v2599
      %v2655 = vpack.c.b16 %v2652, %v2651
      %v2656 = vpack.c.b16 %v2654, %v2653
      %v2660 = vsel %vm775, %v2646, 0
      %2662 = vmatpush.bf16.msra.mxu0 0
      %2663 = vmatpush.bf16.msra.mxu0 0
      %2664 = vmatpush.bf16.msra.mxu0 0
      %2665 = vmatpush.bf16.msra.mxu0 0
      %2666 = vmatpush.bf16.msra.mxu0 0
      %2667 = vmatpush.bf16.msra.mxu0 0
      %2668 = vmatpush.bf16.msra.mxu0 %v2656
      %2669 = vmatpush.bf16.msra.mxu0 %v2655
      %2670 = vmatmul.bf16.gmra.mxu0 %v2660
      %v2671 = vpop.f32.mrf.mxu0
      %v2672 = vadd.f32 0.0, %v2671
      %v2673 = vpop.f32.mrf.mxu0
      %2674 = vdwg.mxu0
      %vm2675 = vcmask 60416
      %v2676 = vsel %vm2675, %v2672, 0.0
      %2677 = vadd.xlane.f32.xlu0 %v2676
      %v2678 = vpop.xlane.xlu0 %2677
      %v2679 = vrot.slane %v2678, 4
      %v2680 = vadd.f32 %v2678, %v2679
      %v2681 = vrot.slane %v2680, 2
      %v2682 = vadd.f32 %v2680, %v2681
      %v2683 = vrot.slane %v2682, 1
      %v2684 = vadd.f32 %v2682, %v2683
      %s2685 = vtos %v2684
      %v2686 = vstv %s2685
      %v2687 = vrcp.pop 32.0
      %v2688 = vmul.f32 32.0, %v2687
      %v2689 = vsub.f32 1.0, %v2688
      %v2690 = vmul.f32 %v2687, %v2689
      %v2691 = vadd.f32 %v2687, %v2690
      %vm2692 = vweird.f32 %v2687
      %v2693 = vsel %vm2692, %v2687, %v2691
      %v2694 = vmul.f32 %v2686, %v2693
      %v2695 = vmul.f32 %v2672, %v2672
      %v2696 = vsel %vm2675, %v2695, 0.0
      %2697 = vadd.xlane.f32.xlu0 %v2696
      %v2698 = vpop.xlane.xlu0 %2697
      %v2699 = vrot.slane %v2698, 4
      %v2700 = vadd.f32 %v2698, %v2699
      %v2701 = vrot.slane %v2700, 2
      %v2702 = vadd.f32 %v2700, %v2701
      %v2703 = vrot.slane %v2702, 1
      %v2704 = vadd.f32 %v2702, %v2703
      %s2705 = vtos %v2704
      %v2706 = vstv %s2705
      %v2707 = vmul.f32 %v2706, %v2693
      %v2708 = vmul.f32 %v2694, %v2694
      %v2709 = vsub.f32 %v2707, %v2708
      %v2710 = vmax.f32 %v2709, 0.0
      %v2711 = vsub.f32 %v2672, %v2694
      %v2712 = vadd.f32 %v2710, 1e-05
      %v2713 = vrsqrt.pop %v2712
      %v2714 = vmul.f32 %v2713, %v2712
      %v2715 = vmul.f32 %v2714, %v2713
      %v2716 = vmul.f32 0.5, %v2715
      %v2717 = vsub.f32 1.5, %v2716
      %v2718 = vmul.f32 %v2713, %v2717
      %vm2719 = vweird.f32 %v2712
      %vm2720 = vweird.f32 %v2713
      %vm2721 = vmor %vm2719, %vm2720
      %v2722 = vsel %vm2721, %v2713, %v2718
      %v2723 = vmul.f32 %v2711, %v2722
      %v2724 = vmul.f32 %v2723, 0.2
      %v2725 = vmax.f32 %v2723, %v2724
      %v2726 = vpack.c.bf16 %v2725, %v2725
      %v2728 = vsel %vm2432, %v2726, 0
      %v2731 = vsel %vm2436, %v2600, 0
      %2733 = vmatpush.bf16.msra.mxu0 0
      %2734 = vmatpush.bf16.msra.mxu0 0
      %2735 = vmatpush.bf16.msra.mxu0 0
      %2736 = vmatpush.bf16.msra.mxu0 0
      %2737 = vmatpush.bf16.msra.mxu0 0
      %2738 = vmatpush.bf16.msra.mxu0 0
      %2739 = vmatpush.bf16.msra.mxu0 0
      %2740 = vmatpush.bf16.msra.mxu0 %v2731
      %2741 = vmatmul.bf16.gmra.mxu0 %v2728
      %v2742 = vpop.f32.mrf.mxu0
      %v2743 = vadd.f32 0.0, %v2742
      %v2744 = vpop.f32.mrf.mxu0
      %2745 = vdwg.mxu0
      %v2747 = vrot.slane %v2743, 1
      %v2749 = vrot.slane %v2743, 7
      %v2751 = vsel %vm869, %v2747, %v2749
      %vm2752 = vcmask 1042432
      %v2753 = vsel %vm2752, %v2747, %v2749
      %2754 = vrot.lane.b32.xlu0 %v2743, 120
      %v2755 = vpop.permute.xlu0 %2754
      %v2757 = vadd.f32 %v2751, %v2755
      %2759 = vrot.lane.b32.xlu0 %v2753, 112
      %v2760 = vpop.permute.xlu0 %2759
      %v2762 = vadd.f32 %v2757, %v2760
      %v2763 = vsel %vm2675, %v2762, 0.0
      %2764 = vadd.xlane.f32.xlu0 %v2763
      %v2765 = vpop.xlane.xlu0 %2764
      %v2766 = vrot.slane %v2765, 4
      %v2767 = vadd.f32 %v2765, %v2766
      %v2768 = vrot.slane %v2767, 2
      %v2769 = vadd.f32 %v2767, %v2768
      %v2770 = vrot.slane %v2769, 1
      %v2771 = vadd.f32 %v2769, %v2770
      %s2772 = vtos %v2771
      %v2773 = vstv %s2772
      %v2774 = vmul.f32 %v2773, %v2693
      %v2775 = vmul.f32 %v2762, %v2762
      %v2776 = vsel %vm2675, %v2775, 0.0
      %2777 = vadd.xlane.f32.xlu0 %v2776
      %v2778 = vpop.xlane.xlu0 %2777
      %v2779 = vrot.slane %v2778, 4
      %v2780 = vadd.f32 %v2778, %v2779
      %v2781 = vrot.slane %v2780, 2
      %v2782 = vadd.f32 %v2780, %v2781
      %v2783 = vrot.slane %v2782, 1
      %v2784 = vadd.f32 %v2782, %v2783
      %s2785 = vtos %v2784
      %v2786 = vstv %s2785
      %v2787 = vmul.f32 %v2786, %v2693
      %v2788 = vmul.f32 %v2774, %v2774
      %v2789 = vsub.f32 %v2787, %v2788
      %v2790 = vmax.f32 %v2789, 0.0
      %v2791 = vsub.f32 %v2762, %v2774
      %v2792 = vadd.f32 %v2790, 1e-05
      %v2793 = vrsqrt.pop %v2792
      %v2794 = vmul.f32 %v2793, %v2792
      %v2795 = vmul.f32 %v2794, %v2793
      %v2796 = vmul.f32 0.5, %v2795
      %v2797 = vsub.f32 1.5, %v2796
      %v2798 = vmul.f32 %v2793, %v2797
      %vm2799 = vweird.f32 %v2792
      %vm2800 = vweird.f32 %v2793
      %vm2801 = vmor %vm2799, %vm2800
      %v2802 = vsel %vm2801, %v2793, %v2798
      %v2803 = vmul.f32 %v2791, %v2802
      %v2804 = vmul.f32 %v2803, 0.2
      %v2805 = vmax.f32 %v2803, %v2804
      %v2806 = vpack.c.bf16 %v2805, %v2805
      %v2808 = vsel %vm2432, %v2806, 0
      %v2811 = vsel %vm2436, %v2601, 0
      %2813 = vmatpush.bf16.msra.mxu0 0
      %2814 = vmatpush.bf16.msra.mxu0 0
      %2815 = vmatpush.bf16.msra.mxu0 0
      %2816 = vmatpush.bf16.msra.mxu0 0
      %2817 = vmatpush.bf16.msra.mxu0 0
      %2818 = vmatpush.bf16.msra.mxu0 0
      %2819 = vmatpush.bf16.msra.mxu0 0
      %2820 = vmatpush.bf16.msra.mxu0 %v2811
      %2821 = vmatmul.bf16.gmra.mxu0 %v2808
      %v2822 = vpop.f32.mrf.mxu0
      %v2823 = vadd.f32 %v2595, %v2822
      %v2824 = vpop.f32.mrf.mxu0
      %2825 = vdwg.mxu0
      %s2826 = scalar_lea.vmem %s7, 16
      %v2827 = vld [vmem:[%s2826] sm:$0xf]
      %v2828 = vld [vmem:[%s2826 + $0x4] sm:$0xf]
      %v2829 = vld [vmem:[%s2826 + $0x8] sm:$0xf]
      %v2830 = vld [vmem:[%s2826 + $0xc] sm:$0xf]
      %s2831 = scalar_lea.vmem %s8, 4
      %v2832 = vld [vmem:[%s2831] sm:$0xf]
      %s2833 = scalar_lea.vmem %s9, 4
      %v2834 = vld [vmem:[%s2833] sm:$0xf]
      %v2835 = vsel %vm2602, %v2823, 0.0
      %2836 = vadd.xlane.f32.xlu0 %v2835
      %v2837 = vpop.xlane.xlu0 %2836
      %v2838 = vrot.slane %v2837, 4
      %v2839 = vadd.f32 %v2837, %v2838
      %v2840 = vrot.slane %v2839, 2
      %v2841 = vadd.f32 %v2839, %v2840
      %v2842 = vrot.slane %v2841, 1
      %v2843 = vadd.f32 %v2841, %v2842
      %s2844 = vtos %v2843
      %v2845 = vstv %s2844
      %v2846 = vmul.f32 %v2845, %v2036
      %v2847 = vmul.f32 %v2823, %v2823
      %v2848 = vsel %vm2602, %v2847, 0.0
      %2849 = vadd.xlane.f32.xlu0 %v2848
      %v2850 = vpop.xlane.xlu0 %2849
      %v2851 = vrot.slane %v2850, 4
      %v2852 = vadd.f32 %v2850, %v2851
      %v2853 = vrot.slane %v2852, 2
      %v2854 = vadd.f32 %v2852, %v2853
      %v2855 = vrot.slane %v2854, 1
      %v2856 = vadd.f32 %v2854, %v2855
      %s2857 = vtos %v2856
      %v2858 = vstv %s2857
      %v2859 = vmul.f32 %v2858, %v2036
      %v2860 = vmul.f32 %v2846, %v2846
      %v2861 = vsub.f32 %v2859, %v2860
      %v2862 = vmax.f32 %v2861, 0.0
      %v2863 = vsub.f32 %v2823, %v2846
      %v2864 = vadd.f32 %v2862, 1e-05
      %v2865 = vrsqrt.pop %v2864
      %v2866 = vmul.f32 %v2865, %v2864
      %v2867 = vmul.f32 %v2866, %v2865
      %v2868 = vmul.f32 0.5, %v2867
      %v2869 = vsub.f32 1.5, %v2868
      %v2870 = vmul.f32 %v2865, %v2869
      %vm2871 = vweird.f32 %v2864
      %vm2872 = vweird.f32 %v2865
      %vm2873 = vmor %vm2871, %vm2872
      %v2874 = vsel %vm2873, %v2865, %v2870
      %v2875 = vmul.f32 %v2863, %v2874
      %v2876 = vmul.f32 %v2875, 0.2
      %v2877 = vmax.f32 %v2875, %v2876
      %v2878 = vpack.c.bf16 %v2877, %v2877
      %v2883 = vunpack.c.l.b16 %v2827
      %v2884 = vunpack.c.l.b16 %v2828
      %v2885 = vunpack.c.l.b16 %v2829
      %v2886 = vunpack.c.l.b16 %v2830
      %v2887 = vpack.c.b16 %v2884, %v2883
      %v2888 = vpack.c.b16 %v2886, %v2885
      %v2892 = vsel %vm775, %v2878, 0
      %2894 = vmatpush.bf16.msra.mxu0 0
      %2895 = vmatpush.bf16.msra.mxu0 0
      %2896 = vmatpush.bf16.msra.mxu0 0
      %2897 = vmatpush.bf16.msra.mxu0 0
      %2898 = vmatpush.bf16.msra.mxu0 0
      %2899 = vmatpush.bf16.msra.mxu0 0
      %2900 = vmatpush.bf16.msra.mxu0 %v2888
      %2901 = vmatpush.bf16.msra.mxu0 %v2887
      %2902 = vmatmul.bf16.gmra.mxu0 %v2892
      %v2903 = vpop.f32.mrf.mxu0
      %v2904 = vadd.f32 0.0, %v2903
      %v2905 = vpop.f32.mrf.mxu0
      %2906 = vdwg.mxu0
      %v2907 = vsel %vm2675, %v2904, 0.0
      %2908 = vadd.xlane.f32.xlu0 %v2907
      %v2909 = vpop.xlane.xlu0 %2908
      %v2910 = vrot.slane %v2909, 4
      %v2911 = vadd.f32 %v2909, %v2910
      %v2912 = vrot.slane %v2911, 2
      %v2913 = vadd.f32 %v2911, %v2912
      %v2914 = vrot.slane %v2913, 1
      %v2915 = vadd.f32 %v2913, %v2914
      %s2916 = vtos %v2915
      %v2917 = vstv %s2916
      %v2918 = vmul.f32 %v2917, %v2693
      %v2919 = vmul.f32 %v2904, %v2904
      %v2920 = vsel %vm2675, %v2919, 0.0
      %2921 = vadd.xlane.f32.xlu0 %v2920
      %v2922 = vpop.xlane.xlu0 %2921
      %v2923 = vrot.slane %v2922, 4
      %v2924 = vadd.f32 %v2922, %v2923
      %v2925 = vrot.slane %v2924, 2
      %v2926 = vadd.f32 %v2924, %v2925
      %v2927 = vrot.slane %v2926, 1
      %v2928 = vadd.f32 %v2926, %v2927
      %s2929 = vtos %v2928
      %v2930 = vstv %s2929
      %v2931 = vmul.f32 %v2930, %v2693
      %v2932 = vmul.f32 %v2918, %v2918
      %v2933 = vsub.f32 %v2931, %v2932
      %v2934 = vmax.f32 %v2933, 0.0
      %v2935 = vsub.f32 %v2904, %v2918
      %v2936 = vadd.f32 %v2934, 1e-05
      %v2937 = vrsqrt.pop %v2936
      %v2938 = vmul.f32 %v2937, %v2936
      %v2939 = vmul.f32 %v2938, %v2937
      %v2940 = vmul.f32 0.5, %v2939
      %v2941 = vsub.f32 1.5, %v2940
      %v2942 = vmul.f32 %v2937, %v2941
      %vm2943 = vweird.f32 %v2936
      %vm2944 = vweird.f32 %v2937
      %vm2945 = vmor %vm2943, %vm2944
      %v2946 = vsel %vm2945, %v2937, %v2942
      %v2947 = vmul.f32 %v2935, %v2946
      %v2948 = vmul.f32 %v2947, 0.2
      %v2949 = vmax.f32 %v2947, %v2948
      %v2950 = vpack.c.bf16 %v2949, %v2949
      %v2952 = vsel %vm2432, %v2950, 0
      %v2955 = vsel %vm2436, %v2832, 0
      %2957 = vmatpush.bf16.msra.mxu0 0
      %2958 = vmatpush.bf16.msra.mxu0 0
      %2959 = vmatpush.bf16.msra.mxu0 0
      %2960 = vmatpush.bf16.msra.mxu0 0
      %2961 = vmatpush.bf16.msra.mxu0 0
      %2962 = vmatpush.bf16.msra.mxu0 0
      %2963 = vmatpush.bf16.msra.mxu0 0
      %2964 = vmatpush.bf16.msra.mxu0 %v2955
      %2965 = vmatmul.bf16.gmra.mxu0 %v2952
      %v2966 = vpop.f32.mrf.mxu0
      %v2967 = vadd.f32 0.0, %v2966
      %v2968 = vpop.f32.mrf.mxu0
      %2969 = vdwg.mxu0
      %v2971 = vrot.slane %v2967, 1
      %v2973 = vrot.slane %v2967, 7
      %v2975 = vsel %vm869, %v2971, %v2973
      %v2976 = vsel %vm2752, %v2971, %v2973
      %2977 = vrot.lane.b32.xlu0 %v2967, 120
      %v2978 = vpop.permute.xlu0 %2977
      %v2980 = vadd.f32 %v2975, %v2978
      %2982 = vrot.lane.b32.xlu0 %v2976, 112
      %v2983 = vpop.permute.xlu0 %2982
      %v2985 = vadd.f32 %v2980, %v2983
      %v2986 = vsel %vm2675, %v2985, 0.0
      %2987 = vadd.xlane.f32.xlu0 %v2986
      %v2988 = vpop.xlane.xlu0 %2987
      %v2989 = vrot.slane %v2988, 4
      %v2990 = vadd.f32 %v2988, %v2989
      %v2991 = vrot.slane %v2990, 2
      %v2992 = vadd.f32 %v2990, %v2991
      %v2993 = vrot.slane %v2992, 1
      %v2994 = vadd.f32 %v2992, %v2993
      %s2995 = vtos %v2994
      %v2996 = vstv %s2995
      %v2997 = vmul.f32 %v2996, %v2693
      %v2998 = vmul.f32 %v2985, %v2985
      %v2999 = vsel %vm2675, %v2998, 0.0
      %3000 = vadd.xlane.f32.xlu0 %v2999
      %v3001 = vpop.xlane.xlu0 %3000
      %v3002 = vrot.slane %v3001, 4
      %v3003 = vadd.f32 %v3001, %v3002
      %v3004 = vrot.slane %v3003, 2
      %v3005 = vadd.f32 %v3003, %v3004
      %v3006 = vrot.slane %v3005, 1
      %v3007 = vadd.f32 %v3005, %v3006
      %s3008 = vtos %v3007
      %v3009 = vstv %s3008
      %v3010 = vmul.f32 %v3009, %v2693
      %v3011 = vmul.f32 %v2997, %v2997
      %v3012 = vsub.f32 %v3010, %v3011
      %v3013 = vmax.f32 %v3012, 0.0
      %v3014 = vsub.f32 %v2985, %v2997
      %v3015 = vadd.f32 %v3013, 1e-05
      %v3016 = vrsqrt.pop %v3015
      %v3017 = vmul.f32 %v3016, %v3015
      %v3018 = vmul.f32 %v3017, %v3016
      %v3019 = vmul.f32 0.5, %v3018
      %v3020 = vsub.f32 1.5, %v3019
      %v3021 = vmul.f32 %v3016, %v3020
      %vm3022 = vweird.f32 %v3015
      %vm3023 = vweird.f32 %v3016
      %vm3024 = vmor %vm3022, %vm3023
      %v3025 = vsel %vm3024, %v3016, %v3021
      %v3026 = vmul.f32 %v3014, %v3025
      %v3027 = vmul.f32 %v3026, 0.2
      %v3028 = vmax.f32 %v3026, %v3027
      %v3029 = vpack.c.bf16 %v3028, %v3028
      %v3031 = vsel %vm2432, %v3029, 0
      %v3034 = vsel %vm2436, %v2834, 0
      %3036 = vmatpush.bf16.msra.mxu0 0
      %3037 = vmatpush.bf16.msra.mxu0 0
      %3038 = vmatpush.bf16.msra.mxu0 0
      %3039 = vmatpush.bf16.msra.mxu0 0
      %3040 = vmatpush.bf16.msra.mxu0 0
      %3041 = vmatpush.bf16.msra.mxu0 0
      %3042 = vmatpush.bf16.msra.mxu0 0
      %3043 = vmatpush.bf16.msra.mxu0 %v3034
      %3044 = vmatmul.bf16.gmra.mxu0 %v3031
      %v3045 = vpop.f32.mrf.mxu0
      %v3046 = vadd.f32 %v2823, %v3045
      %v3047 = vpop.f32.mrf.mxu0
      %3048 = vdwg.mxu0
      %v3049 = vld [vmem:[%s14] sm:$0xf]
      %v3050 = vld [vmem:[%s15] sm:$0xf]
      %v3051 = vld [vmem:[%s15 + $0x4] sm:$0xf]
      %v3052 = vld [vmem:[%s15 + $0x8] sm:$0xf]
      %v3053 = vld [vmem:[%s15 + $0xc] sm:$0xf]
      %v3054 = vpack.c.bf16 %v3046, %v3046
      %v3059 = vunpack.c.l.b16 %v3050
      %v3060 = vunpack.c.l.b16 %v3051
      %v3061 = vunpack.c.l.b16 %v3052
      %v3062 = vunpack.c.l.b16 %v3053
      %v3063 = vpack.c.b16 %v3060, %v3059
      %v3064 = vpack.c.b16 %v3062, %v3061
      %v3068 = vsel %vm775, %v3054, 0
      %3070 = vmatpush.bf16.msra.mxu0 0
      %3071 = vmatpush.bf16.msra.mxu0 0
      %3072 = vmatpush.bf16.msra.mxu0 0
      %3073 = vmatpush.bf16.msra.mxu0 0
      %3074 = vmatpush.bf16.msra.mxu0 0
      %3075 = vmatpush.bf16.msra.mxu0 0
      %3076 = vmatpush.bf16.msra.mxu0 %v3064
      %3077 = vmatpush.bf16.msra.mxu0 %v3063
      %3078 = vmatmul.bf16.gmra.mxu0 %v3068
      %v3079 = vpop.f32.mrf.mxu0
      %v3080 = vadd.f32 0.0, %v3079
      %v3081 = vpop.f32.mrf.mxu0
      %3082 = vdwg.mxu0
      %v3083 = vpack.c.bf16 %v3080, %v3080
      %vm3084 = vcmask 31744
      %v3086 = vsel %vm3084, %v3049, 0
      %vm3088 = vcmask 1041408
      %v3090 = vsel %vm3088, %v3083, 0
      %3092 = vmatpush.bf16.msra.mxu0 0
      %3093 = vmatpush.bf16.msra.mxu0 0
      %3094 = vmatpush.bf16.msra.mxu0 0
      %3095 = vmatpush.bf16.msra.mxu0 0
      %3096 = vmatpush.bf16.msra.mxu0 0
      %3097 = vmatpush.bf16.msra.mxu0 0
      %3098 = vmatpush.bf16.msra.mxu0 0
      %3099 = vmatpush.bf16.msra.mxu0 %v3090
      %3100 = vmatmul.bf16.gmra.mxu0 %v3086
      %v3101 = vpop.f32.mrf.mxu0
      %v3102 = vadd.f32 %v2171, %v3101
      %v3103 = vpop.f32.mrf.mxu0
      %3104 = vdwg.mxu0
      %v3105 = vadd.f32 %v3102, %v2418
      %s3106 = scalar_lea.vmem %s4, 64
      %v3107 = vld [vmem:[%s3106] sm:$0xf]
      %v3108 = vld [vmem:[%s3106 + $0x4] sm:$0xf]
      %v3109 = vld [vmem:[%s3106 + $0x8] sm:$0xf]
      %v3110 = vld [vmem:[%s3106 + $0xc] sm:$0xf]
      %v3111 = vld [vmem:[%s3106 + $0x10] sm:$0xf]
      %v3112 = vld [vmem:[%s3106 + $0x14] sm:$0xf]
      %v3113 = vld [vmem:[%s3106 + $0x18] sm:$0xf]
      %v3114 = vld [vmem:[%s3106 + $0x1c] sm:$0xf]
      %s3115 = scalar_lea.vmem %s5, 16
      %v3116 = vld [vmem:[%s3115] sm:$0xf]
      %v3117 = vld [vmem:[%s3115 + $0x4] sm:$0xf]
      %s3118 = scalar_lea.vmem %s6, 16
      %v3119 = vld [vmem:[%s3118] sm:$0xf]
      %v3120 = vld [vmem:[%s3118 + $0x4] sm:$0xf]
      %v3121 = vsel %vm1934, %v3105, 0.0
      %3122 = vadd.xlane.f32.xlu0 %v3121
      %v3123 = vpop.xlane.xlu0 %3122
      %v3124 = vrot.slane %v3123, 4
      %v3125 = vadd.f32 %v3123, %v3124
      %v3126 = vrot.slane %v3125, 2
      %v3127 = vadd.f32 %v3125, %v3126
      %v3128 = vrot.slane %v3127, 1
      %v3129 = vadd.f32 %v3127, %v3128
      %s3130 = vtos %v3129
      %v3131 = vstv %s3130
      %v3132 = vmul.f32 %v3131, %v795
      %v3133 = vmul.f32 %v3105, %v3105
      %v3134 = vsel %vm1934, %v3133, 0.0
      %3135 = vadd.xlane.f32.xlu0 %v3134
      %v3136 = vpop.xlane.xlu0 %3135
      %v3137 = vrot.slane %v3136, 4
      %v3138 = vadd.f32 %v3136, %v3137
      %v3139 = vrot.slane %v3138, 2
      %v3140 = vadd.f32 %v3138, %v3139
      %v3141 = vrot.slane %v3140, 1
      %v3142 = vadd.f32 %v3140, %v3141
      %s3143 = vtos %v3142
      %v3144 = vstv %s3143
      %v3145 = vmul.f32 %v3144, %v795
      %v3146 = vmul.f32 %v3132, %v3132
      %v3147 = vsub.f32 %v3145, %v3146
      %v3148 = vmax.f32 %v3147, 0.0
      %v3149 = vsub.f32 %v3105, %v3132
      %v3150 = vadd.f32 %v3148, 1e-05
      %v3151 = vrsqrt.pop %v3150
      %v3152 = vmul.f32 %v3151, %v3150
      %v3153 = vmul.f32 %v3152, %v3151
      %v3154 = vmul.f32 0.5, %v3153
      %v3155 = vsub.f32 1.5, %v3154
      %v3156 = vmul.f32 %v3151, %v3155
      %vm3157 = vweird.f32 %v3150
      %vm3158 = vweird.f32 %v3151
      %vm3159 = vmor %vm3157, %vm3158
      %v3160 = vsel %vm3159, %v3151, %v3156
      %v3161 = vmul.f32 %v3149, %v3160
      %v3162 = vmul.f32 %v3161, 0.2
      %v3163 = vmax.f32 %v3161, %v3162
      %v3164 = vpack.c.bf16 %v3163, %v3163
      %v3173 = vunpack.c.l.b16 %v3107
      %v3174 = vunpack.c.l.b16 %v3108
      %v3175 = vunpack.c.l.b16 %v3109
      %v3176 = vunpack.c.l.b16 %v3110
      %v3177 = vunpack.c.l.b16 %v3111
      %v3178 = vunpack.c.l.b16 %v3112
      %v3179 = vunpack.c.l.b16 %v3113
      %v3180 = vunpack.c.l.b16 %v3114
      %v3181 = vpack.c.b16 %v3174, %v3173
      %v3182 = vpack.c.b16 %v3176, %v3175
      %v3183 = vpack.c.b16 %v3178, %v3177
      %v3184 = vpack.c.b16 %v3180, %v3179
      %v3190 = vsel %vm1934, %v3164, 0
      %3192 = vmatpush.bf16.msra.mxu0 0
      %3193 = vmatpush.bf16.msra.mxu0 0
      %3194 = vmatpush.bf16.msra.mxu0 0
      %3195 = vmatpush.bf16.msra.mxu0 0
      %3196 = vmatpush.bf16.msra.mxu0 %v3184
      %3197 = vmatpush.bf16.msra.mxu0 %v3183
      %3198 = vmatpush.bf16.msra.mxu0 %v3182
      %3199 = vmatpush.bf16.msra.mxu0 %v3181
      %3200 = vmatmul.bf16.gmra.mxu0 %v3190
      %v3201 = vpop.f32.mrf.mxu0
      %v3202 = vadd.f32 0.0, %v3201
      %v3203 = vpop.f32.mrf.mxu0
      %3204 = vdwg.mxu0
      %v3205 = vsel %vm1669, %v3202, 0.0
      %3206 = vadd.xlane.f32.xlu0 %v3205
      %v3207 = vpop.xlane.xlu0 %3206
      %v3208 = vrot.slane %v3207, 4
      %v3209 = vadd.f32 %v3207, %v3208
      %v3210 = vrot.slane %v3209, 2
      %v3211 = vadd.f32 %v3209, %v3210
      %v3212 = vrot.slane %v3211, 1
      %v3213 = vadd.f32 %v3211, %v3212
      %s3214 = vtos %v3213
      %v3215 = vstv %s3214
      %v3216 = vmul.f32 %v3215, %v2036
      %v3217 = vmul.f32 %v3202, %v3202
      %v3218 = vsel %vm1669, %v3217, 0.0
      %3219 = vadd.xlane.f32.xlu0 %v3218
      %v3220 = vpop.xlane.xlu0 %3219
      %v3221 = vrot.slane %v3220, 4
      %v3222 = vadd.f32 %v3220, %v3221
      %v3223 = vrot.slane %v3222, 2
      %v3224 = vadd.f32 %v3222, %v3223
      %v3225 = vrot.slane %v3224, 1
      %v3226 = vadd.f32 %v3224, %v3225
      %s3227 = vtos %v3226
      %v3228 = vstv %s3227
      %v3229 = vmul.f32 %v3228, %v2036
      %v3230 = vmul.f32 %v3216, %v3216
      %v3231 = vsub.f32 %v3229, %v3230
      %v3232 = vmax.f32 %v3231, 0.0
      %v3233 = vsub.f32 %v3202, %v3216
      %v3234 = vadd.f32 %v3232, 1e-05
      %v3235 = vrsqrt.pop %v3234
      %v3236 = vmul.f32 %v3235, %v3234
      %v3237 = vmul.f32 %v3236, %v3235
      %v3238 = vmul.f32 0.5, %v3237
      %v3239 = vsub.f32 1.5, %v3238
      %v3240 = vmul.f32 %v3235, %v3239
      %vm3241 = vweird.f32 %v3234
      %vm3242 = vweird.f32 %v3235
      %vm3243 = vmor %vm3241, %vm3242
      %v3244 = vsel %vm3243, %v3235, %v3240
      %v3245 = vmul.f32 %v3233, %v3244
      %v3246 = vmul.f32 %v3245, 0.2
      %v3247 = vmax.f32 %v3245, %v3246
      %v3248 = vpack.c.bf16 %v3247, %v3247
      %v3251 = vunpack.c.l.b16 %v3116
      %v3252 = vunpack.c.l.b16 %v3117
      %v3253 = vpack.c.b16 %v3252, %v3251
      %v3256 = vsel %vm1669, %v3248, 0
      %3258 = vmatpush.bf16.msra.mxu0 0
      %3259 = vmatpush.bf16.msra.mxu0 0
      %3260 = vmatpush.bf16.msra.mxu0 0
      %3261 = vmatpush.bf16.msra.mxu0 0
      %3262 = vmatpush.bf16.msra.mxu0 0
      %3263 = vmatpush.bf16.msra.mxu0 0
      %3264 = vmatpush.bf16.msra.mxu0 0
      %3265 = vmatpush.bf16.msra.mxu0 %v3253
      %3266 = vmatmul.bf16.gmra.mxu0 %v3256
      %v3267 = vpop.f32.mrf.mxu0
      %v3268 = vadd.f32 0.0, %v3267
      %v3269 = vpop.f32.mrf.mxu0
      %3270 = vdwg.mxu0
      %v3272 = vrot.slane %v3268, 1
      %v3274 = vrot.slane %v3268, 7
      %v3276 = vsel %vm869, %v3272, %v3274
      %v3277 = vsel %vm876, %v3272, %v3274
      %3278 = vrot.lane.b32.xlu0 %v3268, 112
      %v3279 = vpop.permute.xlu0 %3278
      %v3281 = vadd.f32 %v3276, %v3279
      %3283 = vrot.lane.b32.xlu0 %v3277, 96
      %v3284 = vpop.permute.xlu0 %3283
      %v3286 = vadd.f32 %v3281, %v3284
      %v3287 = vsel %vm1669, %v3286, 0.0
      %3288 = vadd.xlane.f32.xlu0 %v3287
      %v3289 = vpop.xlane.xlu0 %3288
      %v3290 = vrot.slane %v3289, 4
      %v3291 = vadd.f32 %v3289, %v3290
      %v3292 = vrot.slane %v3291, 2
      %v3293 = vadd.f32 %v3291, %v3292
      %v3294 = vrot.slane %v3293, 1
      %v3295 = vadd.f32 %v3293, %v3294
      %s3296 = vtos %v3295
      %v3297 = vstv %s3296
      %v3298 = vmul.f32 %v3297, %v2036
      %v3299 = vmul.f32 %v3286, %v3286
      %v3300 = vsel %vm1669, %v3299, 0.0
      %3301 = vadd.xlane.f32.xlu0 %v3300
      %v3302 = vpop.xlane.xlu0 %3301
      %v3303 = vrot.slane %v3302, 4
      %v3304 = vadd.f32 %v3302, %v3303
      %v3305 = vrot.slane %v3304, 2
      %v3306 = vadd.f32 %v3304, %v3305
      %v3307 = vrot.slane %v3306, 1
      %v3308 = vadd.f32 %v3306, %v3307
      %s3309 = vtos %v3308
      %v3310 = vstv %s3309
      %v3311 = vmul.f32 %v3310, %v2036
      %v3312 = vmul.f32 %v3298, %v3298
      %v3313 = vsub.f32 %v3311, %v3312
      %v3314 = vmax.f32 %v3313, 0.0
      %v3315 = vsub.f32 %v3286, %v3298
      %v3316 = vadd.f32 %v3314, 1e-05
      %v3317 = vrsqrt.pop %v3316
      %v3318 = vmul.f32 %v3317, %v3316
      %v3319 = vmul.f32 %v3318, %v3317
      %v3320 = vmul.f32 0.5, %v3319
      %v3321 = vsub.f32 1.5, %v3320
      %v3322 = vmul.f32 %v3317, %v3321
      %vm3323 = vweird.f32 %v3316
      %vm3324 = vweird.f32 %v3317
      %vm3325 = vmor %vm3323, %vm3324
      %v3326 = vsel %vm3325, %v3317, %v3322
      %v3327 = vmul.f32 %v3315, %v3326
      %v3328 = vmul.f32 %v3327, 0.2
      %v3329 = vmax.f32 %v3327, %v3328
      %v3330 = vpack.c.bf16 %v3329, %v3329
      %v3333 = vunpack.c.l.b16 %v3119
      %v3334 = vunpack.c.l.b16 %v3120
      %v3335 = vpack.c.b16 %v3334, %v3333
      %v3338 = vsel %vm1669, %v3330, 0
      %3340 = vmatpush.bf16.msra.mxu0 0
      %3341 = vmatpush.bf16.msra.mxu0 0
      %3342 = vmatpush.bf16.msra.mxu0 0
      %3343 = vmatpush.bf16.msra.mxu0 0
      %3344 = vmatpush.bf16.msra.mxu0 0
      %3345 = vmatpush.bf16.msra.mxu0 0
      %3346 = vmatpush.bf16.msra.mxu0 0
      %3347 = vmatpush.bf16.msra.mxu0 %v3335
      %3348 = vmatmul.bf16.gmra.mxu0 %v3338
      %v3349 = vpop.f32.mrf.mxu0
      %v3350 = vadd.f32 %v3105, %v3349
      %v3351 = vpop.f32.mrf.mxu0
      %3352 = vdwg.mxu0
      %v3353 = vld [vmem:[%s16] sm:$0xf]
      %v3354 = vld [vmem:[%s16 + $0x4] sm:$0xf]
      %v3355 = vld [vmem:[%s17] sm:$0xf]
      %v3356 = vld [vmem:[%s17 + $0x4] sm:$0xf]
      %v3357 = vld [vmem:[%s17 + $0x8] sm:$0xf]
      %v3358 = vld [vmem:[%s17 + $0xc] sm:$0xf]
      %v3359 = vld [vmem:[%s17 + $0x10] sm:$0xf]
      %v3360 = vld [vmem:[%s17 + $0x14] sm:$0xf]
      %v3361 = vld [vmem:[%s17 + $0x18] sm:$0xf]
      %v3362 = vld [vmem:[%s17 + $0x1c] sm:$0xf]
      %v3363 = vpack.c.bf16 %v3350, %v3350
      %v3372 = vunpack.c.l.b16 %v3355
      %v3373 = vunpack.c.l.b16 %v3356
      %v3374 = vunpack.c.l.b16 %v3357
      %v3375 = vunpack.c.l.b16 %v3358
      %v3376 = vunpack.c.l.b16 %v3359
      %v3377 = vunpack.c.l.b16 %v3360
      %v3378 = vunpack.c.l.b16 %v3361
      %v3379 = vunpack.c.l.b16 %v3362
      %v3380 = vpack.c.b16 %v3373, %v3372
      %v3381 = vpack.c.b16 %v3375, %v3374
      %v3382 = vpack.c.b16 %v3377, %v3376
      %v3383 = vpack.c.b16 %v3379, %v3378
      %v3389 = vsel %vm1934, %v3363, 0
      %3391 = vmatpush.bf16.msra.mxu0 0
      %3392 = vmatpush.bf16.msra.mxu0 0
      %3393 = vmatpush.bf16.msra.mxu0 0
      %3394 = vmatpush.bf16.msra.mxu0 0
      %3395 = vmatpush.bf16.msra.mxu0 %v3383
      %3396 = vmatpush.bf16.msra.mxu0 %v3382
      %3397 = vmatpush.bf16.msra.mxu0 %v3381
      %3398 = vmatpush.bf16.msra.mxu0 %v3380
      %3399 = vmatmul.bf16.gmra.mxu0 %v3389
      %v3400 = vpop.f32.mrf.mxu0
      %v3401 = vadd.f32 0.0, %v3400
      %v3402 = vpop.f32.mrf.mxu0
      %3403 = vdwg.mxu0
      %v3404 = vpack.c.bf16 %v3401, %v3401
      %v3407 = vunpack.c.l.b16 %v3353
      %v3408 = vunpack.c.l.b16 %v3354
      %v3409 = vpack.c.b16 %v3408, %v3407
      %v3411 = vsel %vm2432, %v3409, 0
      %v3414 = vsel %vm2436, %v3404, 0
      %3416 = vmatpush.bf16.msra.mxu0 0
      %3417 = vmatpush.bf16.msra.mxu0 0
      %3418 = vmatpush.bf16.msra.mxu0 0
      %3419 = vmatpush.bf16.msra.mxu0 0
      %3420 = vmatpush.bf16.msra.mxu0 0
      %3421 = vmatpush.bf16.msra.mxu0 0
      %3422 = vmatpush.bf16.msra.mxu0 0
      %3423 = vmatpush.bf16.msra.mxu0 %v3414
      %3424 = vmatmul.bf16.gmra.mxu0 %v3411
      %v3425 = vpop.f32.mrf.mxu0
      %v3426 = vadd.f32 %v1645, %v3425
      %v3427 = vpop.f32.mrf.mxu0
      %v3428 = vadd.f32 %v1647, %v3427
      %3429 = vdwg.mxu0
      %v3430 = vadd.f32 %v3426, %v3428
      %3431 = vadd.xlane.f32.xlu0 %v3430
      %v3432 = vpop.xlane.xlu0 %3431
      %v3433 = vrot.slane %v3432, 4
      %v3434 = vadd.f32 %v3432, %v3433
      %v3435 = vrot.slane %v3434, 2
      %v3436 = vadd.f32 %v3434, %v3435
      %v3437 = vrot.slane %v3436, 1
      %v3438 = vadd.f32 %v3436, %v3437
      %s3439 = vtos %v3438
      %v3440 = vstv %s3439
      %v3441 = vmul.f32 %v3440, %v674
      %v3442 = vmul.f32 %v3426, %v3426
      %v3443 = vmul.f32 %v3428, %v3428
      %v3444 = vadd.f32 %v3442, %v3443
      %3445 = vadd.xlane.f32.xlu0 %v3444
      %v3446 = vpop.xlane.xlu0 %3445
      %v3447 = vrot.slane %v3446, 4
      %v3448 = vadd.f32 %v3446, %v3447
      %v3449 = vrot.slane %v3448, 2
      %v3450 = vadd.f32 %v3448, %v3449
      %v3451 = vrot.slane %v3450, 1
      %v3452 = vadd.f32 %v3450, %v3451
      %s3453 = vtos %v3452
      %v3454 = vstv %s3453
      %v3455 = vmul.f32 %v3454, %v674
      %v3456 = vmul.f32 %v3441, %v3441
      %v3457 = vsub.f32 %v3455, %v3456
      %v3458 = vmax.f32 %v3457, 0.0
      %v3459 = vsub.f32 %v3426, %v3441
      %v3460 = vsub.f32 %v3428, %v3441
      %v3461 = vadd.f32 %v3458, 1e-05
      %v3462 = vrsqrt.pop %v3461
      %v3463 = vmul.f32 %v3462, %v3461
      %v3464 = vmul.f32 %v3463, %v3462
      %v3465 = vmul.f32 0.5, %v3464
      %v3466 = vsub.f32 1.5, %v3465
      %v3467 = vmul.f32 %v3462, %v3466
      %vm3468 = vweird.f32 %v3461
      %vm3469 = vweird.f32 %v3462
      %vm3470 = vmor %vm3468, %vm3469
      %v3471 = vsel %vm3470, %v3462, %v3467
      %v3472 = vmul.f32 %v3459, %v3471
      %v3473 = vmul.f32 %v3460, %v3471
      %v3474 = vmul.f32 %v3472, 0.2
      %v3475 = vmul.f32 %v3473, 0.2
      %v3476 = vmax.f32 %v3472, %v3474
      %v3477 = vmax.f32 %v3473, %v3475
      %v3478 = vld [vmem:[%s18] sm:$0xf]
      %v3479 = vld [vmem:[%s18 + $0x4] sm:$0xf]
      %v3480 = vld [vmem:[%s18 + $0x8] sm:$0xf]
      %v3481 = vld [vmem:[%s18 + $0xc] sm:$0xf]
      %v3482 = vld [vmem:[%s18 + $0x10] sm:$0xf]
      %v3483 = vld [vmem:[%s18 + $0x14] sm:$0xf]
      %v3484 = vld [vmem:[%s18 + $0x18] sm:$0xf]
      %v3485 = vld [vmem:[%s18 + $0x1c] sm:$0xf]
      %v3486 = vld [vmem:[%s18 + $0x20] sm:$0xf]
      %v3487 = vld [vmem:[%s18 + $0x24] sm:$0xf]
      %v3488 = vld [vmem:[%s18 + $0x28] sm:$0xf]
      %v3489 = vld [vmem:[%s18 + $0x2c] sm:$0xf]
      %v3490 = vld [vmem:[%s18 + $0x30] sm:$0xf]
      %v3491 = vld [vmem:[%s18 + $0x34] sm:$0xf]
      %v3492 = vld [vmem:[%s18 + $0x38] sm:$0xf]
      %v3493 = vld [vmem:[%s18 + $0x3c] sm:$0xf]
      %v3494 = vpack.c.bf16 %v3477, %v3476
      %v3511 = vunpack.c.l.b16 %v3478
      %v3512 = vunpack.c.l.b16 %v3479
      %v3513 = vunpack.c.l.b16 %v3480
      %v3514 = vunpack.c.l.b16 %v3481
      %v3515 = vunpack.c.l.b16 %v3482
      %v3516 = vunpack.c.l.b16 %v3483
      %v3517 = vunpack.c.l.b16 %v3484
      %v3518 = vunpack.c.l.b16 %v3485
      %v3519 = vunpack.c.l.b16 %v3486
      %v3520 = vunpack.c.l.b16 %v3487
      %v3521 = vunpack.c.l.b16 %v3488
      %v3522 = vunpack.c.l.b16 %v3489
      %v3523 = vunpack.c.l.b16 %v3490
      %v3524 = vunpack.c.l.b16 %v3491
      %v3525 = vunpack.c.l.b16 %v3492
      %v3526 = vunpack.c.l.b16 %v3493
      %v3527 = vpack.c.b16 %v3512, %v3511
      %v3528 = vpack.c.b16 %v3514, %v3513
      %v3529 = vpack.c.b16 %v3516, %v3515
      %v3530 = vpack.c.b16 %v3518, %v3517
      %v3531 = vpack.c.b16 %v3520, %v3519
      %v3532 = vpack.c.b16 %v3522, %v3521
      %v3533 = vpack.c.b16 %v3524, %v3523
      %v3534 = vpack.c.b16 %v3526, %v3525
      %3543 = vmatpush.bf16.msra.mxu0 %v3534
      %3544 = vmatpush.bf16.msra.mxu0 %v3533
      %3545 = vmatpush.bf16.msra.mxu0 %v3532
      %3546 = vmatpush.bf16.msra.mxu0 %v3531
      %3547 = vmatpush.bf16.msra.mxu0 %v3530
      %3548 = vmatpush.bf16.msra.mxu0 %v3529
      %3549 = vmatpush.bf16.msra.mxu0 %v3528
      %3550 = vmatpush.bf16.msra.mxu0 %v3527
      %3551 = vmatmul.bf16.gmra.mxu0 %v3494
      %v3552 = vpop.f32.mrf.mxu0
      %v3553 = vadd.f32 0.0, %v3552
      %v3554 = vpop.f32.mrf.mxu0
      %v3555 = vadd.f32 0.0, %v3554
      %3556 = vdwg.mxu0
      %v3557 = vadd.f32 %v3553, %v3555
      %3558 = vadd.xlane.f32.xlu0 %v3557
      %v3559 = vpop.xlane.xlu0 %3558
      %v3560 = vrot.slane %v3559, 4
      %v3561 = vadd.f32 %v3559, %v3560
      %v3562 = vrot.slane %v3561, 2
      %v3563 = vadd.f32 %v3561, %v3562
      %v3564 = vrot.slane %v3563, 1
      %v3565 = vadd.f32 %v3563, %v3564
      %s3566 = vtos %v3565
      %v3567 = vstv %s3566
      %v3568 = vmul.f32 %v3567, %v674
      %v3569 = vmul.f32 %v3553, %v3553
      %v3570 = vmul.f32 %v3555, %v3555
      %v3571 = vadd.f32 %v3569, %v3570
      %3572 = vadd.xlane.f32.xlu0 %v3571
      %v3573 = vpop.xlane.xlu0 %3572
      %v3574 = vrot.slane %v3573, 4
      %v3575 = vadd.f32 %v3573, %v3574
      %v3576 = vrot.slane %v3575, 2
      %v3577 = vadd.f32 %v3575, %v3576
      %v3578 = vrot.slane %v3577, 1
      %v3579 = vadd.f32 %v3577, %v3578
      %s3580 = vtos %v3579
      %v3581 = vstv %s3580
      %v3582 = vmul.f32 %v3581, %v674
      %v3583 = vmul.f32 %v3568, %v3568
      %v3584 = vsub.f32 %v3582, %v3583
      %v3585 = vmax.f32 %v3584, 0.0
      %v3586 = vsub.f32 %v3553, %v3568
      %v3587 = vsub.f32 %v3555, %v3568
      %v3588 = vadd.f32 %v3585, 1e-05
      %v3589 = vrsqrt.pop %v3588
      %v3590 = vmul.f32 %v3589, %v3588
      %v3591 = vmul.f32 %v3590, %v3589
      %v3592 = vmul.f32 0.5, %v3591
      %v3593 = vsub.f32 1.5, %v3592
      %v3594 = vmul.f32 %v3589, %v3593
      %vm3595 = vweird.f32 %v3588
      %vm3596 = vweird.f32 %v3589
      %vm3597 = vmor %vm3595, %vm3596
      %v3598 = vsel %vm3597, %v3589, %v3594
      %v3599 = vmul.f32 %v3586, %v3598
      %v3600 = vmul.f32 %v3587, %v3598
      %v3601 = vmul.f32 %v3599, 0.2
      %v3602 = vmul.f32 %v3600, 0.2
      %v3603 = vmax.f32 %v3599, %v3601
      %v3604 = vmax.f32 %v3600, %v3602
      %v3605 = vld [vmem:[%s19] sm:$0xf]
      %v3606 = vld [vmem:[%s19 + $0x4] sm:$0xf]
      %v3607 = vld [vmem:[%s19 + $0x8] sm:$0xf]
      %v3608 = vld [vmem:[%s19 + $0xc] sm:$0xf]
      %v3609 = vld [vmem:[%s19 + $0x10] sm:$0xf]
      %v3610 = vld [vmem:[%s19 + $0x14] sm:$0xf]
      %v3611 = vld [vmem:[%s19 + $0x18] sm:$0xf]
      %v3612 = vld [vmem:[%s19 + $0x1c] sm:$0xf]
      %v3613 = vld [vmem:[%s19 + $0x20] sm:$0xf]
      %v3614 = vld [vmem:[%s19 + $0x24] sm:$0xf]
      %v3615 = vld [vmem:[%s19 + $0x28] sm:$0xf]
      %v3616 = vld [vmem:[%s19 + $0x2c] sm:$0xf]
      %v3617 = vld [vmem:[%s19 + $0x30] sm:$0xf]
      %v3618 = vld [vmem:[%s19 + $0x34] sm:$0xf]
      %v3619 = vld [vmem:[%s19 + $0x38] sm:$0xf]
      %v3620 = vld [vmem:[%s19 + $0x3c] sm:$0xf]
      %v3621 = vpack.c.bf16 %v3604, %v3603
      %v3638 = vunpack.c.l.b16 %v3605
      %v3639 = vunpack.c.l.b16 %v3606
      %v3640 = vunpack.c.l.b16 %v3607
      %v3641 = vunpack.c.l.b16 %v3608
      %v3642 = vunpack.c.l.b16 %v3609
      %v3643 = vunpack.c.l.b16 %v3610
      %v3644 = vunpack.c.l.b16 %v3611
      %v3645 = vunpack.c.l.b16 %v3612
      %v3646 = vunpack.c.l.b16 %v3613
      %v3647 = vunpack.c.l.b16 %v3614
      %v3648 = vunpack.c.l.b16 %v3615
      %v3649 = vunpack.c.l.b16 %v3616
      %v3650 = vunpack.c.l.b16 %v3617
      %v3651 = vunpack.c.l.b16 %v3618
      %v3652 = vunpack.c.l.b16 %v3619
      %v3653 = vunpack.c.l.b16 %v3620
      %v3654 = vpack.c.b16 %v3639, %v3638
      %v3655 = vpack.c.b16 %v3641, %v3640
      %v3656 = vpack.c.b16 %v3643, %v3642
      %v3657 = vpack.c.b16 %v3645, %v3644
      %v3658 = vpack.c.b16 %v3647, %v3646
      %v3659 = vpack.c.b16 %v3649, %v3648
      %v3660 = vpack.c.b16 %v3651, %v3650
      %v3661 = vpack.c.b16 %v3653, %v3652
      %3670 = vmatpush.bf16.msra.mxu0 %v3661
      %3671 = vmatpush.bf16.msra.mxu0 %v3660
      %3672 = vmatpush.bf16.msra.mxu0 %v3659
      %3673 = vmatpush.bf16.msra.mxu0 %v3658
      %3674 = vmatpush.bf16.msra.mxu0 %v3657
      %3675 = vmatpush.bf16.msra.mxu0 %v3656
      %3676 = vmatpush.bf16.msra.mxu0 %v3655
      %3677 = vmatpush.bf16.msra.mxu0 %v3654
      %3678 = vmatmul.bf16.gmra.mxu0 %v3621
      %v3679 = vpop.f32.mrf.mxu0
      %v3680 = vadd.f32 0.0, %v3679
      %v3681 = vpop.f32.mrf.mxu0
      %v3682 = vadd.f32 0.0, %v3681
      %3683 = vdwg.mxu0
      %v3684 = vsub.f32 0.0, %v3680
      %v3685 = vsub.f32 0.0, %v3682
      %v3686 = vmul.f32 %v3684, 1.442695
      %v3687 = vpow.pop %v3686
      %v3688 = vmul.f32 %v3685, 1.442695
      %v3689 = vpow.pop %v3688
      %v3690 = vadd.f32 %v3687, 1.0
      %v3691 = vadd.f32 %v3689, 1.0
      %v3692 = vrcp.pop %v3690
      %v3693 = vmul.f32 %v3690, %v3692
      %v3694 = vsub.f32 1.0, %v3693
      %v3695 = vmul.f32 %v3692, %v3694
      %v3696 = vadd.f32 %v3692, %v3695
      %vm3697 = vweird.f32 %v3690
      %vm3698 = vweird.f32 %v3692
      %vm3699 = vmor %vm3697, %vm3698
      %v3700 = vsel %vm3699, %v3692, %v3696
      %v3701 = vand.u32 2147483647, %v3690
      %vm3702 = vcmp.eq.f32.partialorder %v3701, 8.507059e+37
      %v3703 = vand.u32 %v3690, 2147483648
      %v3704 = vor.u32 1.1754944e-38, %v3703
      %v3705 = vsel %vm3702, %v3704, %v3700
      %v3706 = vmul.f32 1.0, %v3705
      %v3707 = vrcp.pop %v3691
      %v3708 = vmul.f32 %v3691, %v3707
      %v3709 = vsub.f32 1.0, %v3708
      %v3710 = vmul.f32 %v3707, %v3709
      %v3711 = vadd.f32 %v3707, %v3710
      %vm3712 = vweird.f32 %v3691
      %vm3713 = vweird.f32 %v3707
      %vm3714 = vmor %vm3712, %vm3713
      %v3715 = vsel %vm3714, %v3707, %v3711
      %v3716 = vand.u32 2147483647, %v3691
      %vm3717 = vcmp.eq.f32.partialorder %v3716, 8.507059e+37
      %v3718 = vand.u32 %v3691, 2147483648
      %v3719 = vor.u32 1.1754944e-38, %v3718
      %v3720 = vsel %vm3717, %v3719, %v3715
      %v3721 = vmul.f32 1.0, %v3720
      %v3722 = vmul.f32 %v1645, %v3706
      %v3723 = vmul.f32 %v1647, %v3721
      %v3724 = vadd.f32 %v1645, %v3722
      %v3725 = vadd.f32 %v1647, %v3723
      %s3726 = scalar_lea.vmem %s1, 192
      %v3727 = vld [vmem:[%s3726] sm:$0xf]
      %v3728 = vld [vmem:[%s3726 + $0x4] sm:$0xf]
      %v3729 = vld [vmem:[%s3726 + $0x8] sm:$0xf]
      %v3730 = vld [vmem:[%s3726 + $0xc] sm:$0xf]
      %v3731 = vld [vmem:[%s3726 + $0x10] sm:$0xf]
      %v3732 = vld [vmem:[%s3726 + $0x14] sm:$0xf]
      %v3733 = vld [vmem:[%s3726 + $0x18] sm:$0xf]
      %v3734 = vld [vmem:[%s3726 + $0x1c] sm:$0xf]
      %v3735 = vld [vmem:[%s3726 + $0x20] sm:$0xf]
      %v3736 = vld [vmem:[%s3726 + $0x24] sm:$0xf]
      %v3737 = vld [vmem:[%s3726 + $0x28] sm:$0xf]
      %v3738 = vld [vmem:[%s3726 + $0x2c] sm:$0xf]
      %v3739 = vld [vmem:[%s3726 + $0x30] sm:$0xf]
      %v3740 = vld [vmem:[%s3726 + $0x34] sm:$0xf]
      %v3741 = vld [vmem:[%s3726 + $0x38] sm:$0xf]
      %v3742 = vld [vmem:[%s3726 + $0x3c] sm:$0xf]
      %s3743 = scalar_lea.vmem %s2, 48
      %v3744 = vld [vmem:[%s3743] sm:$0xf]
      %v3745 = vld [vmem:[%s3743 + $0x4] sm:$0xf]
      %v3746 = vld [vmem:[%s3743 + $0x8] sm:$0xf]
      %v3747 = vld [vmem:[%s3743 + $0xc] sm:$0xf]
      %s3748 = scalar_lea.vmem %s3, 48
      %v3749 = vld [vmem:[%s3748] sm:$0xf]
      %v3750 = vld [vmem:[%s3748 + $0x4] sm:$0xf]
      %v3751 = vld [vmem:[%s3748 + $0x8] sm:$0xf]
      %v3752 = vld [vmem:[%s3748 + $0xc] sm:$0xf]
      %v3753 = vadd.f32 %v3724, %v3725
      %3754 = vadd.xlane.f32.xlu0 %v3753
      %v3755 = vpop.xlane.xlu0 %3754
      %v3756 = vrot.slane %v3755, 4
      %v3757 = vadd.f32 %v3755, %v3756
      %v3758 = vrot.slane %v3757, 2
      %v3759 = vadd.f32 %v3757, %v3758
      %v3760 = vrot.slane %v3759, 1
      %v3761 = vadd.f32 %v3759, %v3760
      %s3762 = vtos %v3761
      %v3763 = vstv %s3762
      %v3764 = vmul.f32 %v3763, %v674
      %v3765 = vmul.f32 %v3724, %v3724
      %v3766 = vmul.f32 %v3725, %v3725
      %v3767 = vadd.f32 %v3765, %v3766
      %3768 = vadd.xlane.f32.xlu0 %v3767
      %v3769 = vpop.xlane.xlu0 %3768
      %v3770 = vrot.slane %v3769, 4
      %v3771 = vadd.f32 %v3769, %v3770
      %v3772 = vrot.slane %v3771, 2
      %v3773 = vadd.f32 %v3771, %v3772
      %v3774 = vrot.slane %v3773, 1
      %v3775 = vadd.f32 %v3773, %v3774
      %s3776 = vtos %v3775
      %v3777 = vstv %s3776
      %v3778 = vmul.f32 %v3777, %v674
      %v3779 = vmul.f32 %v3764, %v3764
      %v3780 = vsub.f32 %v3778, %v3779
      %v3781 = vmax.f32 %v3780, 0.0
      %v3782 = vsub.f32 %v3724, %v3764
      %v3783 = vsub.f32 %v3725, %v3764
      %v3784 = vadd.f32 %v3781, 1e-05
      %v3785 = vrsqrt.pop %v3784
      %v3786 = vmul.f32 %v3785, %v3784
      %v3787 = vmul.f32 %v3786, %v3785
      %v3788 = vmul.f32 0.5, %v3787
      %v3789 = vsub.f32 1.5, %v3788
      %v3790 = vmul.f32 %v3785, %v3789
      %vm3791 = vweird.f32 %v3784
      %vm3792 = vweird.f32 %v3785
      %vm3793 = vmor %vm3791, %vm3792
      %v3794 = vsel %vm3793, %v3785, %v3790
      %v3795 = vmul.f32 %v3782, %v3794
      %v3796 = vmul.f32 %v3783, %v3794
      %v3797 = vmul.f32 %v3795, 0.2
      %v3798 = vmul.f32 %v3796, 0.2
      %v3799 = vmax.f32 %v3795, %v3797
      %v3800 = vmax.f32 %v3796, %v3798
      %v3801 = vpack.c.bf16 %v3800, %v3799
      %v3818 = vunpack.c.l.b16 %v3727
      %v3819 = vunpack.c.l.b16 %v3728
      %v3820 = vunpack.c.l.b16 %v3729
      %v3821 = vunpack.c.l.b16 %v3730
      %v3822 = vunpack.c.l.b16 %v3731
      %v3823 = vunpack.c.l.b16 %v3732
      %v3824 = vunpack.c.l.b16 %v3733
      %v3825 = vunpack.c.l.b16 %v3734
      %v3826 = vunpack.c.l.b16 %v3735
      %v3827 = vunpack.c.l.b16 %v3736
      %v3828 = vunpack.c.l.b16 %v3737
      %v3829 = vunpack.c.l.b16 %v3738
      %v3830 = vunpack.c.l.b16 %v3739
      %v3831 = vunpack.c.l.b16 %v3740
      %v3832 = vunpack.c.l.b16 %v3741
      %v3833 = vunpack.c.l.b16 %v3742
      %v3834 = vpack.c.b16 %v3819, %v3818
      %v3835 = vpack.c.b16 %v3821, %v3820
      %v3836 = vpack.c.b16 %v3823, %v3822
      %v3837 = vpack.c.b16 %v3825, %v3824
      %v3838 = vpack.c.b16 %v3827, %v3826
      %v3839 = vpack.c.b16 %v3829, %v3828
      %v3840 = vpack.c.b16 %v3831, %v3830
      %v3841 = vpack.c.b16 %v3833, %v3832
      %3850 = vmatpush.bf16.msra.mxu0 %v3841
      %3851 = vmatpush.bf16.msra.mxu0 %v3840
      %3852 = vmatpush.bf16.msra.mxu0 %v3839
      %3853 = vmatpush.bf16.msra.mxu0 %v3838
      %3854 = vmatpush.bf16.msra.mxu0 %v3837
      %3855 = vmatpush.bf16.msra.mxu0 %v3836
      %3856 = vmatpush.bf16.msra.mxu0 %v3835
      %3857 = vmatpush.bf16.msra.mxu0 %v3834
      %3858 = vmatmul.bf16.gmra.mxu0 %v3801
      %v3859 = vpop.f32.mrf.mxu0
      %v3860 = vadd.f32 0.0, %v3859
      %v3861 = vpop.f32.mrf.mxu0
      %v3862 = vadd.f32 0.0, %v3861
      %3863 = vdwg.mxu0
      %v3864 = vsel %vm775, %v3860, 0.0
      %v3865 = vsel %vm775, %v3862, 0.0
      %v3866 = vadd.f32 %v3864, %v3865
      %3867 = vadd.xlane.f32.xlu0 %v3866
      %v3868 = vpop.xlane.xlu0 %3867
      %v3869 = vrot.slane %v3868, 4
      %v3870 = vadd.f32 %v3868, %v3869
      %v3871 = vrot.slane %v3870, 2
      %v3872 = vadd.f32 %v3870, %v3871
      %v3873 = vrot.slane %v3872, 1
      %v3874 = vadd.f32 %v3872, %v3873
      %s3875 = vtos %v3874
      %v3876 = vstv %s3875
      %v3877 = vmul.f32 %v3876, %v795
      %v3878 = vmul.f32 %v3860, %v3860
      %v3879 = vmul.f32 %v3862, %v3862
      %v3880 = vsel %vm775, %v3878, 0.0
      %v3881 = vsel %vm775, %v3879, 0.0
      %v3882 = vadd.f32 %v3880, %v3881
      %3883 = vadd.xlane.f32.xlu0 %v3882
      %v3884 = vpop.xlane.xlu0 %3883
      %v3885 = vrot.slane %v3884, 4
      %v3886 = vadd.f32 %v3884, %v3885
      %v3887 = vrot.slane %v3886, 2
      %v3888 = vadd.f32 %v3886, %v3887
      %v3889 = vrot.slane %v3888, 1
      %v3890 = vadd.f32 %v3888, %v3889
      %s3891 = vtos %v3890
      %v3892 = vstv %s3891
      %v3893 = vmul.f32 %v3892, %v795
      %v3894 = vmul.f32 %v3877, %v3877
      %v3895 = vsub.f32 %v3893, %v3894
      %v3896 = vmax.f32 %v3895, 0.0
      %v3897 = vsub.f32 %v3860, %v3877
      %v3898 = vsub.f32 %v3862, %v3877
      %v3899 = vadd.f32 %v3896, 1e-05
      %v3900 = vrsqrt.pop %v3899
      %v3901 = vmul.f32 %v3900, %v3899
      %v3902 = vmul.f32 %v3901, %v3900
      %v3903 = vmul.f32 0.5, %v3902
      %v3904 = vsub.f32 1.5, %v3903
      %v3905 = vmul.f32 %v3900, %v3904
      %vm3906 = vweird.f32 %v3899
      %vm3907 = vweird.f32 %v3900
      %vm3908 = vmor %vm3906, %vm3907
      %v3909 = vsel %vm3908, %v3900, %v3905
      %v3910 = vmul.f32 %v3897, %v3909
      %v3911 = vmul.f32 %v3898, %v3909
      %v3912 = vmul.f32 %v3910, 0.2
      %v3913 = vmul.f32 %v3911, 0.2
      %v3914 = vmax.f32 %v3910, %v3912
      %v3915 = vmax.f32 %v3911, %v3913
      %v3916 = vpack.c.bf16 %v3915, %v3914
      %v3921 = vunpack.c.l.b16 %v3744
      %v3922 = vunpack.c.l.b16 %v3745
      %v3923 = vunpack.c.l.b16 %v3746
      %v3924 = vunpack.c.l.b16 %v3747
      %v3925 = vpack.c.b16 %v3922, %v3921
      %v3926 = vpack.c.b16 %v3924, %v3923
      %v3930 = vsel %vm775, %v3916, 0
      %3932 = vmatpush.bf16.msra.mxu0 0
      %3933 = vmatpush.bf16.msra.mxu0 0
      %3934 = vmatpush.bf16.msra.mxu0 0
      %3935 = vmatpush.bf16.msra.mxu0 0
      %3936 = vmatpush.bf16.msra.mxu0 0
      %3937 = vmatpush.bf16.msra.mxu0 0
      %3938 = vmatpush.bf16.msra.mxu0 %v3926
      %3939 = vmatpush.bf16.msra.mxu0 %v3925
      %3940 = vmatmul.bf16.gmra.mxu0 %v3930
      %v3941 = vpop.f32.mrf.mxu0
      %v3942 = vadd.f32 0.0, %v3941
      %v3943 = vpop.f32.mrf.mxu0
      %v3944 = vadd.f32 0.0, %v3943
      %3945 = vdwg.mxu0
      %v3947 = vrot.slane %v3942, 1
      %v3950 = vrot.slane %v3942, 7
      %v3951 = vrot.slane %v3944, 7
      %v3952 = vsel %vm869, %v3950, %v3951
      %v3955 = vsel %vm869, %v3947, %v3950
      %v3956 = vrot.slane %v3944, 1
      %v3957 = vsel %vm876, %v3947, %v3956
      %v3960 = vsel %vm876, %v3956, %v3951
      %3961 = vrot.lane.b32.xlu0 %v3942, 96
      %v3962 = vpop.permute.xlu0 %3961
      %3963 = vrot.lane.b32.xlu0 %v3944, 96
      %v3964 = vpop.permute.xlu0 %3963
      %v3967 = vadd.f32 %v3955, %v3962
      %v3968 = vadd.f32 %v3952, %v3964
      %3970 = vrot.lane.b32.xlu0 %v3957, 64
      %v3971 = vpop.permute.xlu0 %3970
      %3972 = vrot.lane.b32.xlu0 %v3960, 64
      %v3973 = vpop.permute.xlu0 %3972
      %v3976 = vadd.f32 %v3967, %v3971
      %v3977 = vadd.f32 %v3968, %v3973
      %v3978 = vsel %vm775, %v3976, 0.0
      %v3979 = vsel %vm775, %v3977, 0.0
      %v3980 = vadd.f32 %v3978, %v3979
      %3981 = vadd.xlane.f32.xlu0 %v3980
      %v3982 = vpop.xlane.xlu0 %3981
      %v3983 = vrot.slane %v3982, 4
      %v3984 = vadd.f32 %v3982, %v3983
      %v3985 = vrot.slane %v3984, 2
      %v3986 = vadd.f32 %v3984, %v3985
      %v3987 = vrot.slane %v3986, 1
      %v3988 = vadd.f32 %v3986, %v3987
      %s3989 = vtos %v3988
      %v3990 = vstv %s3989
      %v3991 = vmul.f32 %v3990, %v795
      %v3992 = vmul.f32 %v3976, %v3976
      %v3993 = vmul.f32 %v3977, %v3977
      %v3994 = vsel %vm775, %v3992, 0.0
      %v3995 = vsel %vm775, %v3993, 0.0
      %v3996 = vadd.f32 %v3994, %v3995
      %3997 = vadd.xlane.f32.xlu0 %v3996
      %v3998 = vpop.xlane.xlu0 %3997
      %v3999 = vrot.slane %v3998, 4
      %v4000 = vadd.f32 %v3998, %v3999
      %v4001 = vrot.slane %v4000, 2
      %v4002 = vadd.f32 %v4000, %v4001
      %v4003 = vrot.slane %v4002, 1
      %v4004 = vadd.f32 %v4002, %v4003
      %s4005 = vtos %v4004
      %v4006 = vstv %s4005
      %v4007 = vmul.f32 %v4006, %v795
      %v4008 = vmul.f32 %v3991, %v3991
      %v4009 = vsub.f32 %v4007, %v4008
      %v4010 = vmax.f32 %v4009, 0.0
      %v4011 = vsub.f32 %v3976, %v3991
      %v4012 = vsub.f32 %v3977, %v3991
      %v4013 = vadd.f32 %v4010, 1e-05
      %v4014 = vrsqrt.pop %v4013
      %v4015 = vmul.f32 %v4014, %v4013
      %v4016 = vmul.f32 %v4015, %v4014
      %v4017 = vmul.f32 0.5, %v4016
      %v4018 = vsub.f32 1.5, %v4017
      %v4019 = vmul.f32 %v4014, %v4018
      %vm4020 = vweird.f32 %v4013
      %vm4021 = vweird.f32 %v4014
      %vm4022 = vmor %vm4020, %vm4021
      %v4023 = vsel %vm4022, %v4014, %v4019
      %v4024 = vmul.f32 %v4011, %v4023
      %v4025 = vmul.f32 %v4012, %v4023
      %v4026 = vmul.f32 %v4024, 0.2
      %v4027 = vmul.f32 %v4025, 0.2
      %v4028 = vmax.f32 %v4024, %v4026
      %v4029 = vmax.f32 %v4025, %v4027
      %v4030 = vpack.c.bf16 %v4029, %v4028
      %v4035 = vunpack.c.l.b16 %v3749
      %v4036 = vunpack.c.l.b16 %v3750
      %v4037 = vunpack.c.l.b16 %v3751
      %v4038 = vunpack.c.l.b16 %v3752
      %v4039 = vpack.c.b16 %v4036, %v4035
      %v4040 = vpack.c.b16 %v4038, %v4037
      %v4044 = vsel %vm775, %v4030, 0
      %4046 = vmatpush.bf16.msra.mxu0 0
      %4047 = vmatpush.bf16.msra.mxu0 0
      %4048 = vmatpush.bf16.msra.mxu0 0
      %4049 = vmatpush.bf16.msra.mxu0 0
      %4050 = vmatpush.bf16.msra.mxu0 0
      %4051 = vmatpush.bf16.msra.mxu0 0
      %4052 = vmatpush.bf16.msra.mxu0 %v4040
      %4053 = vmatpush.bf16.msra.mxu0 %v4039
      %4054 = vmatmul.bf16.gmra.mxu0 %v4044
      %v4055 = vpop.f32.mrf.mxu0
      %v4056 = vadd.f32 %v3724, %v4055
      %v4057 = vpop.f32.mrf.mxu0
      %v4058 = vadd.f32 %v3725, %v4057
      %4059 = vdwg.mxu0
      %4060 = vst [vmem:[%s629] sm:$0xff] %v4056
      %4061 = vst [vmem:[%s629 + $0x8] sm:$0xff] %v4058
      %p4062 = scmp.lt.s32.totalorder %s31, 1
      %s4063 = scalar_select %p4062, %s31, 1
      %s4064 = smul.addr %s4063, 2
      %s4065 = smul.addr %s4064, 8
      %s4066 = scalar_lea.vmem %s20, %s4065
      // Predicated region
      $region101: #{attention_module_stage2.1} parent=99 // pred_check
        %p4067 = pneg %p474
      $region102: #{attention_module_stage2.1} parent=99 // pred_check_branch
        %4069 = sbr.rel (%p4067) target = $region104
      $region103: #{attention_module_stage2.1} parent=99 // pred_region
        _
      $region104: #{attention_module_stage2.1} parent=99 // pred_fallthru
        _
    $region100: #{attention_module_stage2.1} parent=5 // pred_fallthru
      _
    %p4070 = scmp.le.s32.totalorder 2, %s26
    // Predicated region
    $region105: #{attention_module_stage2.1} parent=5 // pred_check
      %p4071 = pneg %p4070
    $region106: #{attention_module_stage2.1} parent=5 // pred_check_branch
      %4073 = sbr.rel (%p4071) target = $region108
    $region107: #{attention_module_stage2.1} parent=5 // pred_region
      %s4074 = ssub.s32 %s26, 2
      // Predicated region
      $region109: #{attention_module_stage2.1} parent=107 // pred_check
        %p4075 = pneg %p480
      $region110: #{attention_module_stage2.1} parent=107 // pred_check_branch
        %4077 = sbr.rel (%p4075) target = $region112
      $region111: #{attention_module_stage2.1} parent=107 // pred_region
        %p4078 = scmp.lt.s32.totalorder %s32, 1
        %s4079 = scalar_select %p4078, %s32, 1
        %s4080 = smul.addr %s4079, 2
        %s4081 = smul.addr %s4080, 8
        %s4082 = scalar_lea.vmem %s20, %s4081
      $region112: #{attention_module_stage2.1} parent=107 // pred_fallthru
        _
    $region108: #{attention_module_stage2.1} parent=5 // pred_fallthru
      _
  $region6: #{attention_module_stage2.1} parent=0 // loop_footer
    %s30 = sadd.s32 1, %s26
  $region7: #{attention_module_stage2.1} parent=0 // loop_footer_branch
    %25 = sbr.rel target = $region3
  $region8: #{attention_module_stage2.1} parent=0 // loop_exit
    _

</llo_original>
